<compile_context>
chip_gen: v7x
topology: tpu7x:2x2x1
jax: 0.10.0
libtpu: 0.0.40
codegen_flags: <defaults>
</compile_context>

<pallas_src>
import functools

import jax
import jax.numpy as jnp
from jax import lax
from jax.experimental import pallas as pl
from jax.experimental.pallas import tpu as pltpu


def _round_up(x, m):
    return ((x + m - 1) // m) * m


# -----------------------------------------------------------------------------
# Pallas kernel: recurrent part of one GRU layer.
#   grid = (num_chunks,), "arbitrary" (sequential h dependence carried in VMEM).
#   Both directions (if bidirectional) are advanced inside the same time loop.
# Ref layout (num_dirs = n):
#   refs[0:n]        gi_d    (chunk, B, 3*Hp)  bf16  input-side gate pre-acts
#   refs[n]          h0      (n, B, Hp)        f32
#   refs[n+1]        whh_t   (n, Hp, 3*Hp)     bf16  fused per-direction W_hh^T
#   refs[n+2]        bhh     (n, 1, 3*Hp)      f32   [0 | 0 | b_hh_n] per dir
#   refs[n+3:2n+3]   out_d   (chunk, B, Hp)    f32
#   refs[2n+3]       h_last  (n, B, Hp)        f32
#   refs[2n+4:]      h_scr_d (B, Hp)           f32 VMEM scratch (carry)
# -----------------------------------------------------------------------------
def _gru_chunk_kernel(*refs, num_dirs, chunk, hp, t_total, t_pad):
    n = num_dirs
    gi_refs = refs[:n]
    h0_ref, whh_ref, bhh_ref = refs[n], refs[n + 1], refs[n + 2]
    out_refs = refs[n + 3:2 * n + 3]
    hlast_ref = refs[2 * n + 3]
    h_scrs = refs[2 * n + 4:2 * n + 4 + n]

    c = pl.program_id(0)
    nc = t_pad // chunk
    need_mask = t_pad != t_total          # static: only emit masking if padded T

    @pl.when(c == 0)
    def _init():
        for d in range(n):
            h_scrs[d][...] = h0_ref[d]

    # Loop-invariant loads, hoisted out of the recurrence.
    ws = [whh_ref[d] for d in range(n)]   # (Hp, 3Hp) bf16 each
    bs = [bhh_ref[d] for d in range(n)]   # (1, 3Hp)  f32  each

    def gates(g_raw, h, w, b):
        # One fused hidden matmul; gate slices are 128-lane aligned (free).
        g = g_raw.astype(jnp.float32)
        gh = jnp.dot(h.astype(jnp.bfloat16), w,
                     preferred_element_type=jnp.float32) + b
        r = jax.nn.sigmoid(g[:, :hp] + gh[:, :hp])
        z = jax.nn.sigmoid(g[:, hp:2 * hp] + gh[:, hp:2 * hp])
        m = jnp.tanh(g[:, 2 * hp:] + r * gh[:, 2 * hp:])
        return (1.0 - z) * m + z * h

    base_f = c * chunk                    # global offset of the forward chunk
    if n == 2:
        base_b = (nc - 1 - c) * chunk     # global offset of the backward chunk

    def step(t, carry):
        new = []
        # Forward chain: local position t (ascending).
        hf = carry[0]
        hf_new = gates(gi_refs[0][t], hf, ws[0], bs[0])
        if need_mask:
            hf_new = jnp.where(base_f + t < t_total, hf_new, hf)
        out_refs[0][t] = hf_new
        new.append(hf_new)
        if n == 2:
            # Backward chain: local position chunk-1-t (descending globals).
            pos = chunk - 1 - t
            hb = carry[1]
            hb_new = gates(gi_refs[1][pos], hb, ws[1], bs[1])
            if need_mask:
                hb_new = jnp.where(base_b + pos < t_total, hb_new, hb)
            out_refs[1][pos] = hb_new
            new.append(hb_new)
        return tuple(new)

    carry0 = tuple(h_scrs[d][...] for d in range(n))
    carry = lax.fori_loop(0, chunk, step, carry0, unroll=min(chunk, 8))
    for d in range(n):
        h_scrs[d][...] = carry[d]
        hlast_ref[d] = carry[d]


def gru_layer_pallas(gi_list, h0, whh_t, bhh_vec, *, chunk, t_total):
    """Recurrent part of one GRU layer (all directions in one kernel).

    gi_list : list of D arrays (Tp, B, 3*Hp) bf16 — per-direction input pre-acts
    h0      : (D, B, Hp) f32
    whh_t   : (D, Hp, 3*Hp) bf16
    bhh_vec : (D, 1, 3*Hp) f32
    returns (list of D (Tp, B, Hp) f32 outputs, (D, B, Hp) f32 final hidden)
    """
    D = len(gi_list)
    Tp, B, H3p = gi_list[0].shape
    Hp = H3p // 3
    NC = Tp // chunk

    kernel = functools.partial(_gru_chunk_kernel, num_dirs=D, chunk=chunk,
                               hp=Hp, t_total=t_total, t_pad=Tp)

    def fwd_map(c):
        return (c, 0, 0)

    def bwd_map(c):
        return (NC - 1 - c, 0, 0)

    gi_specs = [pl.BlockSpec((chunk, B, H3p), fwd_map if d == 0 else bwd_map)
                for d in range(D)]
    out_seq_specs = [pl.BlockSpec((chunk, B, Hp), fwd_map if d == 0 else bwd_map)
                     for d in range(D)]

    in_specs = gi_specs + [
        pl.BlockSpec((D, B, Hp), lambda c: (0, 0, 0)),      # h0 (resident)
        pl.BlockSpec((D, Hp, H3p), lambda c: (0, 0, 0)),    # W_hh^T (resident)
        pl.BlockSpec((D, 1, H3p), lambda c: (0, 0, 0)),     # b_hh_n (resident)
    ]
    out_specs = out_seq_specs + [
        pl.BlockSpec((D, B, Hp), lambda c: (0, 0, 0)),      # h_last (resident)
    ]
    out_shape = tuple(jax.ShapeDtypeStruct((Tp, B, Hp), jnp.float32)
                      for _ in range(D)) + (
        jax.ShapeDtypeStruct((D, B, Hp), jnp.float32),)

    results = pl.pallas_call(
        kernel,
        out_shape=out_shape,
        grid_spec=pltpu.PrefetchScalarGridSpec(
            num_scalar_prefetch=0,
            grid=(NC,),
            in_specs=in_specs,
            out_specs=list(out_specs),
            scratch_shapes=[pltpu.VMEM((B, Hp), jnp.float32) for _ in range(D)]),
        compiler_params=pltpu.CompilerParams(
            dimension_semantics=("arbitrary",)),
    )(*gi_list, h0, whh_t, bhh_vec)

    outs = list(results[:D])
    h_last = results[D]
    return outs, h_last


# -----------------------------------------------------------------------------
# Weight re-layout: PyTorch-shaped GRU weights -> padded, fused kernel layout.
# Padded lanes (H..Hp) are zero in every weight/bias, so padded hidden lanes
# remain exactly zero through the recurrence and can be sliced off afterwards.
# -----------------------------------------------------------------------------
def _prep_layer_weights(layer_params, hp):
    wih_list, bias_list, whh_list, bhh_list = [], [], [], []
    for p in layer_params:
        H3, I = p["w_ih"].shape
        H = H3 // 3
        pad = hp - H

        # W_ih -> (I, 3*Hp): x @ this gives [i_r | i_z | i_n] at lane offsets
        # 0, Hp, 2*Hp.
        w_ih = jnp.pad(p["w_ih"].reshape(3, H, I), ((0, 0), (0, pad), (0, 0)))
        w_ih = jnp.transpose(w_ih, (2, 0, 1)).reshape(I, 3 * hp)

        # W_hh^T -> (Hp, 3*Hp): h @ this gives [h_r | h_z | h_n].
        w_hh_t = jnp.transpose(p["w_hh"].reshape(3, H, H), (0, 2, 1))
        w_hh_t = jnp.pad(w_hh_t, ((0, 0), (0, pad), (0, pad)))
        w_hh_t = jnp.transpose(w_hh_t, (1, 0, 2)).reshape(hp, 3 * hp)

        b_i = p["b_ih"].reshape(3, H)
        b_h = p["b_hh"].reshape(3, H)
        # Fuse b_ih+b_hh for r,z into the input-side bias; n keeps only b_ih_n
        # (PyTorch: n = tanh(i_n + b_in + r*(W_hn h + b_hn))).
        bias = jnp.stack([b_i[0] + b_h[0], b_i[1] + b_h[1], b_i[2]], axis=0)
        bias = jnp.pad(bias, ((0, 0), (0, pad))).reshape(3 * hp)

        bhh_n = jnp.pad(b_h[2], (0, pad))
        bhh = jnp.concatenate(
            [jnp.zeros((2 * hp,), jnp.float32), bhh_n])[None, :]

        wih_list.append(w_ih)
        bias_list.append(bias)
        whh_list.append(w_hh_t.astype(jnp.bfloat16))
        bhh_list.append(bhh)
    return (jnp.stack(wih_list), jnp.stack(bias_list),
            jnp.stack(whh_list), jnp.stack(bhh_list))


# -----------------------------------------------------------------------------
# Parameter init (deterministic, PyTorch-shaped).
# -----------------------------------------------------------------------------
def init_params(key, *, n_dimensions, n_classes, hidden_size, num_layers,
                embedding_size, is_bidirectional):
    D = 2 if is_bidirectional else 1
    std = 1.0 / jnp.sqrt(hidden_size)
    params = {}
    key, k_emb = jax.random.split(key)
    params["embedding"] = jax.random.normal(
        k_emb, (n_classes, embedding_size), jnp.float32)

    gru = []
    for l in range(num_layers):
        in_size = embedding_size * n_dimensions if l == 0 else hidden_size * D
        dirs = []
        for _ in range(D):
            key, k1, k2, k3, k4 = jax.random.split(key, 5)
            dirs.append(dict(
                w_ih=jax.random.uniform(k1, (3 * hidden_size, in_size),
                                        jnp.float32, -std, std),
                w_hh=jax.random.uniform(k2, (3 * hidden_size, hidden_size),
                                        jnp.float32, -std, std),
                b_ih=jax.random.uniform(k3, (3 * hidden_size,),
                                        jnp.float32, -std, std),
                b_hh=jax.random.uniform(k4, (3 * hidden_size,),
                                        jnp.float32, -std, std),
            ))
        gru.append(dirs)
    params["gru"] = gru
    return params


# -----------------------------------------------------------------------------
# Full forward pass (matches GraphEncoderRNN.forward).
# -----------------------------------------------------------------------------
@functools.partial(jax.jit,
                   static_argnames=("num_layers", "hidden_size",
                                    "is_bidirectional", "time_chunk"))
def graph_encoder_forward(params, x, h, *, num_layers, hidden_size,
                          is_bidirectional, time_chunk=64):
    """
    x: (batch, seq_len, n_dimensions) int32 class indices
    h: (num_layers * num_directions, batch, hidden_size) f32
    returns (output (batch, seq, hidden*D), hidden_next (L*D, batch, hidden))
    """
    D = 2 if is_bidirectional else 1
    B, T, _ = x.shape
    Hp = _round_up(hidden_size, 128)
    chunk = min(time_chunk, T)
    NC = -(-T // chunk)
    Tp = NC * chunk

    # Embedding lookup + flatten last two dims (plain JAX gather — glue).
    emb = jnp.take(params["embedding"], x, axis=0)               # (B,T,nd,E)
    layer_in = jnp.transpose(emb.reshape(B, T, -1), (1, 0, 2))   # (T,B,F)
    layer_in = layer_in.astype(jnp.float32)

    h = h.reshape(num_layers, D, B, hidden_size)
    h = jnp.pad(h, ((0, 0), (0, 0), (0, 0), (0, Hp - hidden_size)))

    h_finals = []
    for l in range(num_layers):
        wih, bias, whh_t, bhh = _prep_layer_weights(params["gru"][l], Hp)

        # Hoisted input projection: one big matmul over the whole sequence and
        # all directions, outside the serial recurrence.
        gi = jnp.einsum("tbi,dio->dtbo", layer_in, wih,
                        preferred_element_type=jnp.float32)
        gi = gi + bias[:, None, None, :]                         # (D,T,B,3Hp)
        if Tp > T:
            gi = jnp.pad(gi, ((0, 0), (0, Tp - T), (0, 0), (0, 0)))
        gi = gi.astype(jnp.bfloat16)
        gi_list = [gi[d] for d in range(D)]

        outs, h_last = gru_layer_pallas(gi_list, h[l], whh_t, bhh,
                                        chunk=chunk, t_total=T)
        h_finals.append(h_last[:, :, :hidden_size])              # (D,B,H)

        # Next-layer input: fwd/bwd features concatenated, padding sliced off.
        layer_in = jnp.concatenate([o[:T, :, :hidden_size] for o in outs],
                                   axis=-1)                      # (T,B,D*H)

    output = jnp.transpose(layer_in, (1, 0, 2))                  # batch_first
    hidden_next = jnp.concatenate(h_finals, axis=0)              # (L*D,B,H)
    return output, hidden_next


# -----------------------------------------------------------------------------
# Pure-JAX reference (same math, lax.scan) used only to sanity-check the kernel.
# -----------------------------------------------------------------------------
def _gru_layer_ref(x_seq, h0, w_ih, w_hh, b_ih, b_hh):
    H = h0.shape[-1]

    def step(h_prev, x_t):
        gi = x_t @ w_ih.T + b_ih
        gh = h_prev @ w_hh.T + b_hh
        i_r, i_z, i_n = gi[:, :H], gi[:, H:2 * H], gi[:, 2 * H:]
        h_r, h_z, h_n = gh[:, :H], gh[:, H:2 * H], gh[:, 2 * H:]
        r = jax.nn.sigmoid(i_r + h_r)
        z = jax.nn.sigmoid(i_z + h_z)
        m = jnp.tanh(i_n + r * h_n)
        h_new = (1.0 - z) * m + z * h_prev
        return h_new, h_new

    h_last, out = jax.lax.scan(step, h0, x_seq)
    return out, h_last


def graph_encoder_forward_ref(params, x, h, *, num_layers, hidden_size,
                              is_bidirectional):
    D = 2 if is_bidirectional else 1
    B, T, _ = x.shape
    emb = jnp.take(params["embedding"], x, axis=0)
    layer_in = jnp.transpose(emb.reshape(B, T, -1), (1, 0, 2))
    h_finals = []
    for l in range(num_layers):
        dir_outs = []
        for d in range(D):
            p = params["gru"][l][d]
            x_dir = layer_in if d == 0 else layer_in[::-1]
            out_seq, h_last = _gru_layer_ref(
                x_dir, h[l * D + d], p["w_ih"], p["w_hh"], p["b_ih"], p["b_hh"])
            if d == 1:
                out_seq = out_seq[::-1]
            dir_outs.append(out_seq)
            h_finals.append(h_last)
        layer_in = jnp.concatenate(dir_outs, axis=-1)
    return jnp.transpose(layer_in, (1, 0, 2)), jnp.stack(h_finals, axis=0)


def _check(params, x, h0, *, num_layers, hidden_size, is_bidirectional,
           time_chunk=64):
    out, hid = graph_encoder_forward(
        params, x, h0, num_layers=num_layers, hidden_size=hidden_size,
        is_bidirectional=is_bidirectional, time_chunk=time_chunk)
    out = jax.block_until_ready(out)
    hid = jax.block_until_ready(hid)
    out_ref, hid_ref = graph_encoder_forward_ref(
        params, x, h0, num_layers=num_layers, hidden_size=hidden_size,
        is_bidirectional=is_bidirectional)
    D = 2 if is_bidirectional else 1
    assert out.shape == (x.shape[0], x.shape[1], hidden_size * D)
    assert hid.shape == (num_layers * D, x.shape[0], hidden_size)
    # Tolerance loosened because gi / W_hh are bf16 on the MXU path.
    assert jnp.allclose(out, out_ref, atol=5e-2, rtol=5e-2), (
        float(jnp.max(jnp.abs(out - out_ref))))
    assert jnp.allclose(hid, hid_ref, atol=5e-2, rtol=5e-2), (
        float(jnp.max(jnp.abs(hid - hid_ref))))
    return out, hid


# -----------------------------------------------------------------------------
if __name__ == "__main__":
    n_dimensions = 3
    n_classes = 10
    hidden_size = 32
    num_layers = 2
    embedding_size = 8

    key = jax.random.PRNGKey(0)
    key, kp_bi, kp_uni, kx1, kx2, kx3 = jax.random.split(key, 6)

    # --- Config 1: bidirectional, single time chunk (main demo) -------------
    params_bi = init_params(
        kp_bi, n_dimensions=n_dimensions, n_classes=n_classes,
        hidden_size=hidden_size, num_layers=num_layers,
        embedding_size=embedding_size, is_bidirectional=True)
    batch, seq_len = 2, 8
    x1 = jax.random.randint(kx1, (batch, seq_len, n_dimensions), 0, n_classes,
                            dtype=jnp.int32)
    h1 = jnp.zeros((num_layers * 2, batch, hidden_size), jnp.float32)
    _check(params_bi, x1, h1, num_layers=num_layers, hidden_size=hidden_size,
           is_bidirectional=True)

    # --- Config 2: bidirectional, multi-chunk + padded time (T=11, chunk=4) -
    seq_len2 = 11
    x2 = jax.random.randint(kx2, (batch, seq_len2, n_dimensions), 0, n_classes,
                            dtype=jnp.int32)
    h2 = jnp.zeros((num_layers * 2, batch, hidden_size), jnp.float32)
    _check(params_bi, x2, h2, num_layers=num_layers, hidden_size=hidden_size,
           is_bidirectional=True, time_chunk=4)

    # --- Config 3: unidirectional ------------------------------------------
    params_uni = init_params(
        kp_uni, n_dimensions=n_dimensions, n_classes=n_classes,
        hidden_size=hidden_size, num_layers=num_layers,
        embedding_size=embedding_size, is_bidirectional=False)
    x3 = jax.random.randint(kx3, (batch, seq_len, n_dimensions), 0, n_classes,
                            dtype=jnp.int32)
    h3 = jnp.zeros((num_layers, batch, hidden_size), jnp.float32)
    _check(params_uni, x3, h3, num_layers=num_layers, hidden_size=hidden_size,
           is_bidirectional=False)

    print("KERNEL_OK")
</pallas_src>

<mosaic_0001>
module attributes {stable_mosaic.version = 11 : i64} {
  func.func @_gru_chunk_kernel(%arg0: i32, %arg1: memref<8x2x384xbf16, #tpu.memory_space<vmem>>, %arg2: memref<8x2x384xbf16, #tpu.memory_space<vmem>>, %arg3: memref<2x2x128xf32, #tpu.memory_space<vmem>>, %arg4: memref<2x128x384xbf16, #tpu.memory_space<vmem>>, %arg5: memref<2x1x384xf32, #tpu.memory_space<vmem>>, %arg6: memref<8x2x128xf32, #tpu.memory_space<vmem>>, %arg7: memref<8x2x128xf32, #tpu.memory_space<vmem>>, %arg8: memref<2x2x128xf32, #tpu.memory_space<vmem>>, %arg9: memref<2x128xf32, #tpu.memory_space<vmem>>, %arg10: memref<2x128xf32, #tpu.memory_space<vmem>>) attributes {dimension_semantics = [#tpu.dimension_semantics<arbitrary>], iteration_bounds = array<i64: 1>, scalar_prefetch = 0 : i64, scratch_operands = 2 : i64, tpu.core_type = #tpu.core_type<tc>, window_params = [{transform_indices = @transform_0, window_bounds = array<i64: 8, 2, 384>}, {transform_indices = @transform_1, window_bounds = array<i64: 8, 2, 384>}, {pipeline_mode = #tpu.pipeline_mode<synchronous>, transform_indices = @transform_2, window_bounds = array<i64: 2, 2, 128>}, {pipeline_mode = #tpu.pipeline_mode<synchronous>, transform_indices = @transform_3, window_bounds = array<i64: 2, 128, 384>}, {pipeline_mode = #tpu.pipeline_mode<synchronous>, transform_indices = @transform_4, window_bounds = array<i64: 2, 1, 384>}, {transform_indices = @transform_5, window_bounds = array<i64: 8, 2, 128>}, {transform_indices = @transform_6, window_bounds = array<i64: 8, 2, 128>}, {pipeline_mode = #tpu.pipeline_mode<synchronous>, transform_indices = @transform_7, window_bounds = array<i64: 2, 2, 128>}]} {
    %c0_i32 = arith.constant 0 : i32
    %0 = arith.cmpi eq, %arg0, %c0_i32 : i32
    %1 = arith.extui %0 : i1 to i32
    %c0_i32_0 = arith.constant 0 : i32
    %2 = arith.cmpi ne, %1, %c0_i32_0 : i32
    scf.if %2 {
      %c0_161 = arith.constant 0 : index
      %c0_162 = arith.constant 0 : index
      %c0_163 = arith.constant 0 : index
      %637 = vector.load %arg3[%c0_161, %c0_162, %c0_163] : memref<2x2x128xf32, #tpu.memory_space<vmem>>, vector<1x2x128xf32>
      %638 = vector.shape_cast %637 : vector<1x2x128xf32> to vector<2x128xf32>
      %c0_164 = arith.constant 0 : index
      %c0_165 = arith.constant 0 : index
      %639 = vector.load %arg9[%c0_164, %c0_165] : memref<2x128xf32, #tpu.memory_space<vmem>>, vector<2x128xf32>
      tpu.vector_store %arg9[%c0_164, %c0_165], %638 {strides = array<i32>} : memref<2x128xf32, #tpu.memory_space<vmem>>, vector<2x128xf32>,
      %c1_166 = arith.constant 1 : index
      %c0_167 = arith.constant 0 : index
      %c0_168 = arith.constant 0 : index
      %640 = vector.load %arg3[%c1_166, %c0_167, %c0_168] : memref<2x2x128xf32, #tpu.memory_space<vmem>>, vector<1x2x128xf32>
      %641 = vector.shape_cast %640 : vector<1x2x128xf32> to vector<2x128xf32>
      %c0_169 = arith.constant 0 : index
      %c0_170 = arith.constant 0 : index
      %642 = vector.load %arg10[%c0_169, %c0_170] : memref<2x128xf32, #tpu.memory_space<vmem>>, vector<2x128xf32>
      tpu.vector_store %arg10[%c0_169, %c0_170], %641 {strides = array<i32>} : memref<2x128xf32, #tpu.memory_space<vmem>>, vector<2x128xf32>,
    } else {
    }
    %c0 = arith.constant 0 : index
    %c0_1 = arith.constant 0 : index
    %c0_2 = arith.constant 0 : index
    %3 = vector.load %arg4[%c0, %c0_1, %c0_2] : memref<2x128x384xbf16, #tpu.memory_space<vmem>>, vector<1x128x384xbf16>
    %4 = vector.shape_cast %3 : vector<1x128x384xbf16> to vector<128x384xbf16>
    %c1 = arith.constant 1 : index
    %c0_3 = arith.constant 0 : index
    %c0_4 = arith.constant 0 : index
    %5 = vector.load %arg4[%c1, %c0_3, %c0_4] : memref<2x128x384xbf16, #tpu.memory_space<vmem>>, vector<1x128x384xbf16>
    %6 = vector.shape_cast %5 : vector<1x128x384xbf16> to vector<128x384xbf16>
    %c0_5 = arith.constant 0 : index
    %c0_6 = arith.constant 0 : index
    %c0_7 = arith.constant 0 : index
    %7 = vector.load %arg5[%c0_5, %c0_6, %c0_7] : memref<2x1x384xf32, #tpu.memory_space<vmem>>, vector<1x1x384xf32>
    %8 = vector.shape_cast %7 : vector<1x1x384xf32> to vector<1x384xf32>
    %c1_8 = arith.constant 1 : index
    %c0_9 = arith.constant 0 : index
    %c0_10 = arith.constant 0 : index
    %9 = vector.load %arg5[%c1_8, %c0_9, %c0_10] : memref<2x1x384xf32, #tpu.memory_space<vmem>>, vector<1x1x384xf32>
    %10 = vector.shape_cast %9 : vector<1x1x384xf32> to vector<1x384xf32>
    %c0_11 = arith.constant 0 : index
    %c0_12 = arith.constant 0 : index
    %11 = vector.load %arg9[%c0_11, %c0_12] : memref<2x128xf32, #tpu.memory_space<vmem>>, vector<2x128xf32>
    %c0_13 = arith.constant 0 : index
    %c0_14 = arith.constant 0 : index
    %12 = vector.load %arg10[%c0_13, %c0_14] : memref<2x128xf32, #tpu.memory_space<vmem>>, vector<2x128xf32>
    %c0_i32_15 = arith.constant 0 : i32
    %13 = arith.index_cast %c0_i32_15 : i32 to index
    %c0_16 = arith.constant 0 : index
    %c0_17 = arith.constant 0 : index
    %14 = vector.load %arg1[%13, %c0_16, %c0_17] : memref<8x2x384xbf16, #tpu.memory_space<vmem>>, vector<1x2x384xbf16>
    %15 = vector.shape_cast %14 : vector<1x2x384xbf16> to vector<2x384xbf16>
    %16 = arith.extf %15 : vector<2x384xbf16> to vector<2x384xf32>
    %17 = arith.truncf %11 : vector<2x128xf32> to vector<2x128xbf16>
    %cst = arith.constant dense<0.000000e+00> : vector<2x384xf32>
    %18 = tpu.matmul %17, %4, %cst {dimension_numbers = #tpu.dot_dimension_numbers<[1], [0], [0], [1], [0, 0, 1, 1], [], []>} : vector<2x128xbf16>, vector<128x384xbf16>, vector<2x384xf32> -> vector<2x384xf32>
    %19 = vector.broadcast %8 : vector<1x384xf32> to vector<2x384xf32>
    %20 = arith.addf %18, %19 : vector<2x384xf32>
    %21 = vector.extract_strided_slice %16 {offsets = [0, 0], sizes = [2, 128], strides = [1, 1]} : vector<2x384xf32> to vector<2x128xf32>
    %22 = vector.extract_strided_slice %20 {offsets = [0, 0], sizes = [2, 128], strides = [1, 1]} : vector<2x384xf32> to vector<2x128xf32>
    %23 = arith.addf %21, %22 : vector<2x128xf32>
    %24 = arith.negf %23 : vector<2x128xf32>
    %25 = math.exp %24 : vector<2x128xf32>
    %cst_18 = arith.constant 1.000000e+00 : f32
    %26 = vector.broadcast %cst_18 : f32 to vector<2x128xf32>
    %27 = arith.addf %26, %25 : vector<2x128xf32>
    %28 = arith.divf %26, %27 : vector<2x128xf32>
    %29 = vector.extract_strided_slice %16 {offsets = [0, 128], sizes = [2, 128], strides = [1, 1]} : vector<2x384xf32> to vector<2x128xf32>
    %30 = vector.extract_strided_slice %20 {offsets = [0, 128], sizes = [2, 128], strides = [1, 1]} : vector<2x384xf32> to vector<2x128xf32>
    %31 = arith.addf %29, %30 : vector<2x128xf32>
    %32 = arith.negf %31 : vector<2x128xf32>
    %33 = math.exp %32 : vector<2x128xf32>
    %cst_19 = arith.constant 1.000000e+00 : f32
    %34 = vector.broadcast %cst_19 : f32 to vector<2x128xf32>
    %35 = arith.addf %34, %33 : vector<2x128xf32>
    %36 = arith.divf %34, %35 : vector<2x128xf32>
    %37 = vector.extract_strided_slice %16 {offsets = [0, 256], sizes = [2, 128], strides = [1, 1]} : vector<2x384xf32> to vector<2x128xf32>
    %38 = vector.extract_strided_slice %20 {offsets = [0, 256], sizes = [2, 128], strides = [1, 1]} : vector<2x384xf32> to vector<2x128xf32>
    %39 = arith.mulf %28, %38 : vector<2x128xf32>
    %40 = arith.addf %37, %39 : vector<2x128xf32>
    %41 = math.tanh %40 : vector<2x128xf32>
    %cst_20 = arith.constant 1.000000e+00 : f32
    %42 = vector.broadcast %cst_20 : f32 to vector<2x128xf32>
    %43 = arith.subf %42, %36 : vector<2x128xf32>
    %44 = arith.mulf %43, %41 : vector<2x128xf32>
    %45 = arith.mulf %36, %11 : vector<2x128xf32>
    %46 = arith.addf %44, %45 : vector<2x128xf32>
    %47 = arith.index_cast %c0_i32_15 : i32 to index
    %c0_21 = arith.constant 0 : index
    %c0_22 = arith.constant 0 : index
    %48 = vector.load %arg6[%47, %c0_21, %c0_22] : memref<8x2x128xf32, #tpu.memory_space<vmem>>, vector<1x2x128xf32>
    %49 = vector.shape_cast %48 : vector<1x2x128xf32> to vector<2x128xf32>
    %50 = vector.shape_cast %46 : vector<2x128xf32> to vector<1x2x128xf32>
    tpu.vector_store %arg6[%47, %c0_21, %c0_22], %50 {strides = array<i32>} : memref<8x2x128xf32, #tpu.memory_space<vmem>>, vector<1x2x128xf32>,
    %c7_i32 = arith.constant 7 : i32
    %51 = arith.subi %c7_i32, %c0_i32_15 : i32
    %52 = arith.index_cast %51 : i32 to index
    %c0_23 = arith.constant 0 : index
    %c0_24 = arith.constant 0 : index
    %53 = vector.load %arg2[%52, %c0_23, %c0_24] : memref<8x2x384xbf16, #tpu.memory_space<vmem>>, vector<1x2x384xbf16>
    %54 = vector.shape_cast %53 : vector<1x2x384xbf16> to vector<2x384xbf16>
    %55 = arith.extf %54 : vector<2x384xbf16> to vector<2x384xf32>
    %56 = arith.truncf %12 : vector<2x128xf32> to vector<2x128xbf16>
    %cst_25 = arith.constant dense<0.000000e+00> : vector<2x384xf32>
    %57 = tpu.matmul %56, %6, %cst_25 {dimension_numbers = #tpu.dot_dimension_numbers<[1], [0], [0], [1], [0, 0, 1, 1], [], []>} : vector<2x128xbf16>, vector<128x384xbf16>, vector<2x384xf32> -> vector<2x384xf32>
    %58 = vector.broadcast %10 : vector<1x384xf32> to vector<2x384xf32>
    %59 = arith.addf %57, %58 : vector<2x384xf32>
    %60 = vector.extract_strided_slice %55 {offsets = [0, 0], sizes = [2, 128], strides = [1, 1]} : vector<2x384xf32> to vector<2x128xf32>
    %61 = vector.extract_strided_slice %59 {offsets = [0, 0], sizes = [2, 128], strides = [1, 1]} : vector<2x384xf32> to vector<2x128xf32>
    %62 = arith.addf %60, %61 : vector<2x128xf32>
    %63 = arith.negf %62 : vector<2x128xf32>
    %64 = math.exp %63 : vector<2x128xf32>
    %cst_26 = arith.constant 1.000000e+00 : f32
    %65 = vector.broadcast %cst_26 : f32 to vector<2x128xf32>
    %66 = arith.addf %65, %64 : vector<2x128xf32>
    %67 = arith.divf %65, %66 : vector<2x128xf32>
    %68 = vector.extract_strided_slice %55 {offsets = [0, 128], sizes = [2, 128], strides = [1, 1]} : vector<2x384xf32> to vector<2x128xf32>
    %69 = vector.extract_strided_slice %59 {offsets = [0, 128], sizes = [2, 128], strides = [1, 1]} : vector<2x384xf32> to vector<2x128xf32>
    %70 = arith.addf %68, %69 : vector<2x128xf32>
    %71 = arith.negf %70 : vector<2x128xf32>
    %72 = math.exp %71 : vector<2x128xf32>
    %cst_27 = arith.constant 1.000000e+00 : f32
    %73 = vector.broadcast %cst_27 : f32 to vector<2x128xf32>
    %74 = arith.addf %73, %72 : vector<2x128xf32>
    %75 = arith.divf %73, %74 : vector<2x128xf32>
    %76 = vector.extract_strided_slice %55 {offsets = [0, 256], sizes = [2, 128], strides = [1, 1]} : vector<2x384xf32> to vector<2x128xf32>
    %77 = vector.extract_strided_slice %59 {offsets = [0, 256], sizes = [2, 128], strides = [1, 1]} : vector<2x384xf32> to vector<2x128xf32>
    %78 = arith.mulf %67, %77 : vector<2x128xf32>
    %79 = arith.addf %76, %78 : vector<2x128xf32>
    %80 = math.tanh %79 : vector<2x128xf32>
    %cst_28 = arith.constant 1.000000e+00 : f32
    %81 = vector.broadcast %cst_28 : f32 to vector<2x128xf32>
    %82 = arith.subf %81, %75 : vector<2x128xf32>
    %83 = arith.mulf %82, %80 : vector<2x128xf32>
    %84 = arith.mulf %75, %12 : vector<2x128xf32>
    %85 = arith.addf %83, %84 : vector<2x128xf32>
    %86 = arith.index_cast %51 : i32 to index
    %c0_29 = arith.constant 0 : index
    %c0_30 = arith.constant 0 : index
    %87 = vector.load %arg7[%86, %c0_29, %c0_30] : memref<8x2x128xf32, #tpu.memory_space<vmem>>, vector<1x2x128xf32>
    %88 = vector.shape_cast %87 : vector<1x2x128xf32> to vector<2x128xf32>
    %89 = vector.shape_cast %85 : vector<2x128xf32> to vector<1x2x128xf32>
    tpu.vector_store %arg7[%86, %c0_29, %c0_30], %89 {strides = array<i32>} : memref<8x2x128xf32, #tpu.memory_space<vmem>>, vector<1x2x128xf32>,
    %c1_i32 = arith.constant 1 : i32
    %90 = arith.index_cast %c1_i32 : i32 to index
    %c0_31 = arith.constant 0 : index
    %c0_32 = arith.constant 0 : index
    %91 = vector.load %arg1[%90, %c0_31, %c0_32] : memref<8x2x384xbf16, #tpu.memory_space<vmem>>, vector<1x2x384xbf16>
    %92 = vector.shape_cast %91 : vector<1x2x384xbf16> to vector<2x384xbf16>
    %93 = arith.extf %92 : vector<2x384xbf16> to vector<2x384xf32>
    %94 = arith.truncf %46 : vector<2x128xf32> to vector<2x128xbf16>
    %cst_33 = arith.constant dense<0.000000e+00> : vector<2x384xf32>
    %95 = tpu.matmul %94, %4, %cst_33 {dimension_numbers = #tpu.dot_dimension_numbers<[1], [0], [0], [1], [0, 0, 1, 1], [], []>} : vector<2x128xbf16>, vector<128x384xbf16>, vector<2x384xf32> -> vector<2x384xf32>
    %96 = vector.broadcast %8 : vector<1x384xf32> to vector<2x384xf32>
    %97 = arith.addf %95, %96 : vector<2x384xf32>
    %98 = vector.extract_strided_slice %93 {offsets = [0, 0], sizes = [2, 128], strides = [1, 1]} : vector<2x384xf32> to vector<2x128xf32>
    %99 = vector.extract_strided_slice %97 {offsets = [0, 0], sizes = [2, 128], strides = [1, 1]} : vector<2x384xf32> to vector<2x128xf32>
    %100 = arith.addf %98, %99 : vector<2x128xf32>
    %101 = arith.negf %100 : vector<2x128xf32>
    %102 = math.exp %101 : vector<2x128xf32>
    %cst_34 = arith.constant 1.000000e+00 : f32
    %103 = vector.broadcast %cst_34 : f32 to vector<2x128xf32>
    %104 = arith.addf %103, %102 : vector<2x128xf32>
    %105 = arith.divf %103, %104 : vector<2x128xf32>
    %106 = vector.extract_strided_slice %93 {offsets = [0, 128], sizes = [2, 128], strides = [1, 1]} : vector<2x384xf32> to vector<2x128xf32>
    %107 = vector.extract_strided_slice %97 {offsets = [0, 128], sizes = [2, 128], strides = [1, 1]} : vector<2x384xf32> to vector<2x128xf32>
    %108 = arith.addf %106, %107 : vector<2x128xf32>
    %109 = arith.negf %108 : vector<2x128xf32>
    %110 = math.exp %109 : vector<2x128xf32>
    %cst_35 = arith.constant 1.000000e+00 : f32
    %111 = vector.broadcast %cst_35 : f32 to vector<2x128xf32>
    %112 = arith.addf %111, %110 : vector<2x128xf32>
    %113 = arith.divf %111, %112 : vector<2x128xf32>
    %114 = vector.extract_strided_slice %93 {offsets = [0, 256], sizes = [2, 128], strides = [1, 1]} : vector<2x384xf32> to vector<2x128xf32>
    %115 = vector.extract_strided_slice %97 {offsets = [0, 256], sizes = [2, 128], strides = [1, 1]} : vector<2x384xf32> to vector<2x128xf32>
    %116 = arith.mulf %105, %115 : vector<2x128xf32>
    %117 = arith.addf %114, %116 : vector<2x128xf32>
    %118 = math.tanh %117 : vector<2x128xf32>
    %cst_36 = arith.constant 1.000000e+00 : f32
    %119 = vector.broadcast %cst_36 : f32 to vector<2x128xf32>
    %120 = arith.subf %119, %113 : vector<2x128xf32>
    %121 = arith.mulf %120, %118 : vector<2x128xf32>
    %122 = arith.mulf %113, %46 : vector<2x128xf32>
    %123 = arith.addf %121, %122 : vector<2x128xf32>
    %124 = arith.index_cast %c1_i32 : i32 to index
    %c0_37 = arith.constant 0 : index
    %c0_38 = arith.constant 0 : index
    %125 = vector.load %arg6[%124, %c0_37, %c0_38] : memref<8x2x128xf32, #tpu.memory_space<vmem>>, vector<1x2x128xf32>
    %126 = vector.shape_cast %125 : vector<1x2x128xf32> to vector<2x128xf32>
    %127 = vector.shape_cast %123 : vector<2x128xf32> to vector<1x2x128xf32>
    tpu.vector_store %arg6[%124, %c0_37, %c0_38], %127 {strides = array<i32>} : memref<8x2x128xf32, #tpu.memory_space<vmem>>, vector<1x2x128xf32>,
    %c7_i32_39 = arith.constant 7 : i32
    %128 = arith.subi %c7_i32_39, %c1_i32 : i32
    %129 = arith.index_cast %128 : i32 to index
    %c0_40 = arith.constant 0 : index
    %c0_41 = arith.constant 0 : index
    %130 = vector.load %arg2[%129, %c0_40, %c0_41] : memref<8x2x384xbf16, #tpu.memory_space<vmem>>, vector<1x2x384xbf16>
    %131 = vector.shape_cast %130 : vector<1x2x384xbf16> to vector<2x384xbf16>
    %132 = arith.extf %131 : vector<2x384xbf16> to vector<2x384xf32>
    %133 = arith.truncf %85 : vector<2x128xf32> to vector<2x128xbf16>
    %cst_42 = arith.constant dense<0.000000e+00> : vector<2x384xf32>
    %134 = tpu.matmul %133, %6, %cst_42 {dimension_numbers = #tpu.dot_dimension_numbers<[1], [0], [0], [1], [0, 0, 1, 1], [], []>} : vector<2x128xbf16>, vector<128x384xbf16>, vector<2x384xf32> -> vector<2x384xf32>
    %135 = vector.broadcast %10 : vector<1x384xf32> to vector<2x384xf32>
    %136 = arith.addf %134, %135 : vector<2x384xf32>
    %137 = vector.extract_strided_slice %132 {offsets = [0, 0], sizes = [2, 128], strides = [1, 1]} : vector<2x384xf32> to vector<2x128xf32>
    %138 = vector.extract_strided_slice %136 {offsets = [0, 0], sizes = [2, 128], strides = [1, 1]} : vector<2x384xf32> to vector<2x128xf32>
    %139 = arith.addf %137, %138 : vector<2x128xf32>
    %140 = arith.negf %139 : vector<2x128xf32>
    %141 = math.exp %140 : vector<2x128xf32>
    %cst_43 = arith.constant 1.000000e+00 : f32
    %142 = vector.broadcast %cst_43 : f32 to vector<2x128xf32>
    %143 = arith.addf %142, %141 : vector<2x128xf32>
    %144 = arith.divf %142, %143 : vector<2x128xf32>
    %145 = vector.extract_strided_slice %132 {offsets = [0, 128], sizes = [2, 128], strides = [1, 1]} : vector<2x384xf32> to vector<2x128xf32>
    %146 = vector.extract_strided_slice %136 {offsets = [0, 128], sizes = [2, 128], strides = [1, 1]} : vector<2x384xf32> to vector<2x128xf32>
    %147 = arith.addf %145, %146 : vector<2x128xf32>
    %148 = arith.negf %147 : vector<2x128xf32>
    %149 = math.exp %148 : vector<2x128xf32>
    %cst_44 = arith.constant 1.000000e+00 : f32
    %150 = vector.broadcast %cst_44 : f32 to vector<2x128xf32>
    %151 = arith.addf %150, %149 : vector<2x128xf32>
    %152 = arith.divf %150, %151 : vector<2x128xf32>
    %153 = vector.extract_strided_slice %132 {offsets = [0, 256], sizes = [2, 128], strides = [1, 1]} : vector<2x384xf32> to vector<2x128xf32>
    %154 = vector.extract_strided_slice %136 {offsets = [0, 256], sizes = [2, 128], strides = [1, 1]} : vector<2x384xf32> to vector<2x128xf32>
    %155 = arith.mulf %144, %154 : vector<2x128xf32>
    %156 = arith.addf %153, %155 : vector<2x128xf32>
    %157 = math.tanh %156 : vector<2x128xf32>
    %cst_45 = arith.constant 1.000000e+00 : f32
    %158 = vector.broadcast %cst_45 : f32 to vector<2x128xf32>
    %159 = arith.subf %158, %152 : vector<2x128xf32>
    %160 = arith.mulf %159, %157 : vector<2x128xf32>
    %161 = arith.mulf %152, %85 : vector<2x128xf32>
    %162 = arith.addf %160, %161 : vector<2x128xf32>
    %163 = arith.index_cast %128 : i32 to index
    %c0_46 = arith.constant 0 : index
    %c0_47 = arith.constant 0 : index
    %164 = vector.load %arg7[%163, %c0_46, %c0_47] : memref<8x2x128xf32, #tpu.memory_space<vmem>>, vector<1x2x128xf32>
    %165 = vector.shape_cast %164 : vector<1x2x128xf32> to vector<2x128xf32>
    %166 = vector.shape_cast %162 : vector<2x128xf32> to vector<1x2x128xf32>
    tpu.vector_store %arg7[%163, %c0_46, %c0_47], %166 {strides = array<i32>} : memref<8x2x128xf32, #tpu.memory_space<vmem>>, vector<1x2x128xf32>,
    %c2_i32 = arith.constant 2 : i32
    %167 = arith.index_cast %c2_i32 : i32 to index
    %c0_48 = arith.constant 0 : index
    %c0_49 = arith.constant 0 : index
    %168 = vector.load %arg1[%167, %c0_48, %c0_49] : memref<8x2x384xbf16, #tpu.memory_space<vmem>>, vector<1x2x384xbf16>
    %169 = vector.shape_cast %168 : vector<1x2x384xbf16> to vector<2x384xbf16>
    %170 = arith.extf %169 : vector<2x384xbf16> to vector<2x384xf32>
    %171 = arith.truncf %123 : vector<2x128xf32> to vector<2x128xbf16>
    %cst_50 = arith.constant dense<0.000000e+00> : vector<2x384xf32>
    %172 = tpu.matmul %171, %4, %cst_50 {dimension_numbers = #tpu.dot_dimension_numbers<[1], [0], [0], [1], [0, 0, 1, 1], [], []>} : vector<2x128xbf16>, vector<128x384xbf16>, vector<2x384xf32> -> vector<2x384xf32>
    %173 = vector.broadcast %8 : vector<1x384xf32> to vector<2x384xf32>
    %174 = arith.addf %172, %173 : vector<2x384xf32>
    %175 = vector.extract_strided_slice %170 {offsets = [0, 0], sizes = [2, 128], strides = [1, 1]} : vector<2x384xf32> to vector<2x128xf32>
    %176 = vector.extract_strided_slice %174 {offsets = [0, 0], sizes = [2, 128], strides = [1, 1]} : vector<2x384xf32> to vector<2x128xf32>
    %177 = arith.addf %175, %176 : vector<2x128xf32>
    %178 = arith.negf %177 : vector<2x128xf32>
    %179 = math.exp %178 : vector<2x128xf32>
    %cst_51 = arith.constant 1.000000e+00 : f32
    %180 = vector.broadcast %cst_51 : f32 to vector<2x128xf32>
    %181 = arith.addf %180, %179 : vector<2x128xf32>
    %182 = arith.divf %180, %181 : vector<2x128xf32>
    %183 = vector.extract_strided_slice %170 {offsets = [0, 128], sizes = [2, 128], strides = [1, 1]} : vector<2x384xf32> to vector<2x128xf32>
    %184 = vector.extract_strided_slice %174 {offsets = [0, 128], sizes = [2, 128], strides = [1, 1]} : vector<2x384xf32> to vector<2x128xf32>
    %185 = arith.addf %183, %184 : vector<2x128xf32>
    %186 = arith.negf %185 : vector<2x128xf32>
    %187 = math.exp %186 : vector<2x128xf32>
    %cst_52 = arith.constant 1.000000e+00 : f32
    %188 = vector.broadcast %cst_52 : f32 to vector<2x128xf32>
    %189 = arith.addf %188, %187 : vector<2x128xf32>
    %190 = arith.divf %188, %189 : vector<2x128xf32>
    %191 = vector.extract_strided_slice %170 {offsets = [0, 256], sizes = [2, 128], strides = [1, 1]} : vector<2x384xf32> to vector<2x128xf32>
    %192 = vector.extract_strided_slice %174 {offsets = [0, 256], sizes = [2, 128], strides = [1, 1]} : vector<2x384xf32> to vector<2x128xf32>
    %193 = arith.mulf %182, %192 : vector<2x128xf32>
    %194 = arith.addf %191, %193 : vector<2x128xf32>
    %195 = math.tanh %194 : vector<2x128xf32>
    %cst_53 = arith.constant 1.000000e+00 : f32
    %196 = vector.broadcast %cst_53 : f32 to vector<2x128xf32>
    %197 = arith.subf %196, %190 : vector<2x128xf32>
    %198 = arith.mulf %197, %195 : vector<2x128xf32>
    %199 = arith.mulf %190, %123 : vector<2x128xf32>
    %200 = arith.addf %198, %199 : vector<2x128xf32>
    %201 = arith.index_cast %c2_i32 : i32 to index
    %c0_54 = arith.constant 0 : index
    %c0_55 = arith.constant 0 : index
    %202 = vector.load %arg6[%201, %c0_54, %c0_55] : memref<8x2x128xf32, #tpu.memory_space<vmem>>, vector<1x2x128xf32>
    %203 = vector.shape_cast %202 : vector<1x2x128xf32> to vector<2x128xf32>
    %204 = vector.shape_cast %200 : vector<2x128xf32> to vector<1x2x128xf32>
    tpu.vector_store %arg6[%201, %c0_54, %c0_55], %204 {strides = array<i32>} : memref<8x2x128xf32, #tpu.memory_space<vmem>>, vector<1x2x128xf32>,
    %c7_i32_56 = arith.constant 7 : i32
    %205 = arith.subi %c7_i32_56, %c2_i32 : i32
    %206 = arith.index_cast %205 : i32 to index
    %c0_57 = arith.constant 0 : index
    %c0_58 = arith.constant 0 : index
    %207 = vector.load %arg2[%206, %c0_57, %c0_58] : memref<8x2x384xbf16, #tpu.memory_space<vmem>>, vector<1x2x384xbf16>
    %208 = vector.shape_cast %207 : vector<1x2x384xbf16> to vector<2x384xbf16>
    %209 = arith.extf %208 : vector<2x384xbf16> to vector<2x384xf32>
    %210 = arith.truncf %162 : vector<2x128xf32> to vector<2x128xbf16>
    %cst_59 = arith.constant dense<0.000000e+00> : vector<2x384xf32>
    %211 = tpu.matmul %210, %6, %cst_59 {dimension_numbers = #tpu.dot_dimension_numbers<[1], [0], [0], [1], [0, 0, 1, 1], [], []>} : vector<2x128xbf16>, vector<128x384xbf16>, vector<2x384xf32> -> vector<2x384xf32>
    %212 = vector.broadcast %10 : vector<1x384xf32> to vector<2x384xf32>
    %213 = arith.addf %211, %212 : vector<2x384xf32>
    %214 = vector.extract_strided_slice %209 {offsets = [0, 0], sizes = [2, 128], strides = [1, 1]} : vector<2x384xf32> to vector<2x128xf32>
    %215 = vector.extract_strided_slice %213 {offsets = [0, 0], sizes = [2, 128], strides = [1, 1]} : vector<2x384xf32> to vector<2x128xf32>
    %216 = arith.addf %214, %215 : vector<2x128xf32>
    %217 = arith.negf %216 : vector<2x128xf32>
    %218 = math.exp %217 : vector<2x128xf32>
    %cst_60 = arith.constant 1.000000e+00 : f32
    %219 = vector.broadcast %cst_60 : f32 to vector<2x128xf32>
    %220 = arith.addf %219, %218 : vector<2x128xf32>
    %221 = arith.divf %219, %220 : vector<2x128xf32>
    %222 = vector.extract_strided_slice %209 {offsets = [0, 128], sizes = [2, 128], strides = [1, 1]} : vector<2x384xf32> to vector<2x128xf32>
    %223 = vector.extract_strided_slice %213 {offsets = [0, 128], sizes = [2, 128], strides = [1, 1]} : vector<2x384xf32> to vector<2x128xf32>
    %224 = arith.addf %222, %223 : vector<2x128xf32>
    %225 = arith.negf %224 : vector<2x128xf32>
    %226 = math.exp %225 : vector<2x128xf32>
    %cst_61 = arith.constant 1.000000e+00 : f32
    %227 = vector.broadcast %cst_61 : f32 to vector<2x128xf32>
    %228 = arith.addf %227, %226 : vector<2x128xf32>
    %229 = arith.divf %227, %228 : vector<2x128xf32>
    %230 = vector.extract_strided_slice %209 {offsets = [0, 256], sizes = [2, 128], strides = [1, 1]} : vector<2x384xf32> to vector<2x128xf32>
    %231 = vector.extract_strided_slice %213 {offsets = [0, 256], sizes = [2, 128], strides = [1, 1]} : vector<2x384xf32> to vector<2x128xf32>
    %232 = arith.mulf %221, %231 : vector<2x128xf32>
    %233 = arith.addf %230, %232 : vector<2x128xf32>
    %234 = math.tanh %233 : vector<2x128xf32>
    %cst_62 = arith.constant 1.000000e+00 : f32
    %235 = vector.broadcast %cst_62 : f32 to vector<2x128xf32>
    %236 = arith.subf %235, %229 : vector<2x128xf32>
    %237 = arith.mulf %236, %234 : vector<2x128xf32>
    %238 = arith.mulf %229, %162 : vector<2x128xf32>
    %239 = arith.addf %237, %238 : vector<2x128xf32>
    %240 = arith.index_cast %205 : i32 to index
    %c0_63 = arith.constant 0 : index
    %c0_64 = arith.constant 0 : index
    %241 = vector.load %arg7[%240, %c0_63, %c0_64] : memref<8x2x128xf32, #tpu.memory_space<vmem>>, vector<1x2x128xf32>
    %242 = vector.shape_cast %241 : vector<1x2x128xf32> to vector<2x128xf32>
    %243 = vector.shape_cast %239 : vector<2x128xf32> to vector<1x2x128xf32>
    tpu.vector_store %arg7[%240, %c0_63, %c0_64], %243 {strides = array<i32>} : memref<8x2x128xf32, #tpu.memory_space<vmem>>, vector<1x2x128xf32>,
    %c3_i32 = arith.constant 3 : i32
    %244 = arith.index_cast %c3_i32 : i32 to index
    %c0_65 = arith.constant 0 : index
    %c0_66 = arith.constant 0 : index
    %245 = vector.load %arg1[%244, %c0_65, %c0_66] : memref<8x2x384xbf16, #tpu.memory_space<vmem>>, vector<1x2x384xbf16>
    %246 = vector.shape_cast %245 : vector<1x2x384xbf16> to vector<2x384xbf16>
    %247 = arith.extf %246 : vector<2x384xbf16> to vector<2x384xf32>
    %248 = arith.truncf %200 : vector<2x128xf32> to vector<2x128xbf16>
    %cst_67 = arith.constant dense<0.000000e+00> : vector<2x384xf32>
    %249 = tpu.matmul %248, %4, %cst_67 {dimension_numbers = #tpu.dot_dimension_numbers<[1], [0], [0], [1], [0, 0, 1, 1], [], []>} : vector<2x128xbf16>, vector<128x384xbf16>, vector<2x384xf32> -> vector<2x384xf32>
    %250 = vector.broadcast %8 : vector<1x384xf32> to vector<2x384xf32>
    %251 = arith.addf %249, %250 : vector<2x384xf32>
    %252 = vector.extract_strided_slice %247 {offsets = [0, 0], sizes = [2, 128], strides = [1, 1]} : vector<2x384xf32> to vector<2x128xf32>
    %253 = vector.extract_strided_slice %251 {offsets = [0, 0], sizes = [2, 128], strides = [1, 1]} : vector<2x384xf32> to vector<2x128xf32>
    %254 = arith.addf %252, %253 : vector<2x128xf32>
    %255 = arith.negf %254 : vector<2x128xf32>
    %256 = math.exp %255 : vector<2x128xf32>
    %cst_68 = arith.constant 1.000000e+00 : f32
    %257 = vector.broadcast %cst_68 : f32 to vector<2x128xf32>
    %258 = arith.addf %257, %256 : vector<2x128xf32>
    %259 = arith.divf %257, %258 : vector<2x128xf32>
    %260 = vector.extract_strided_slice %247 {offsets = [0, 128], sizes = [2, 128], strides = [1, 1]} : vector<2x384xf32> to vector<2x128xf32>
    %261 = vector.extract_strided_slice %251 {offsets = [0, 128], sizes = [2, 128], strides = [1, 1]} : vector<2x384xf32> to vector<2x128xf32>
    %262 = arith.addf %260, %261 : vector<2x128xf32>
    %263 = arith.negf %262 : vector<2x128xf32>
    %264 = math.exp %263 : vector<2x128xf32>
    %cst_69 = arith.constant 1.000000e+00 : f32
    %265 = vector.broadcast %cst_69 : f32 to vector<2x128xf32>
    %266 = arith.addf %265, %264 : vector<2x128xf32>
    %267 = arith.divf %265, %266 : vector<2x128xf32>
    %268 = vector.extract_strided_slice %247 {offsets = [0, 256], sizes = [2, 128], strides = [1, 1]} : vector<2x384xf32> to vector<2x128xf32>
    %269 = vector.extract_strided_slice %251 {offsets = [0, 256], sizes = [2, 128], strides = [1, 1]} : vector<2x384xf32> to vector<2x128xf32>
    %270 = arith.mulf %259, %269 : vector<2x128xf32>
    %271 = arith.addf %268, %270 : vector<2x128xf32>
    %272 = math.tanh %271 : vector<2x128xf32>
    %cst_70 = arith.constant 1.000000e+00 : f32
    %273 = vector.broadcast %cst_70 : f32 to vector<2x128xf32>
    %274 = arith.subf %273, %267 : vector<2x128xf32>
    %275 = arith.mulf %274, %272 : vector<2x128xf32>
    %276 = arith.mulf %267, %200 : vector<2x128xf32>
    %277 = arith.addf %275, %276 : vector<2x128xf32>
    %278 = arith.index_cast %c3_i32 : i32 to index
    %c0_71 = arith.constant 0 : index
    %c0_72 = arith.constant 0 : index
    %279 = vector.load %arg6[%278, %c0_71, %c0_72] : memref<8x2x128xf32, #tpu.memory_space<vmem>>, vector<1x2x128xf32>
    %280 = vector.shape_cast %279 : vector<1x2x128xf32> to vector<2x128xf32>
    %281 = vector.shape_cast %277 : vector<2x128xf32> to vector<1x2x128xf32>
    tpu.vector_store %arg6[%278, %c0_71, %c0_72], %281 {strides = array<i32>} : memref<8x2x128xf32, #tpu.memory_space<vmem>>, vector<1x2x128xf32>,
    %c7_i32_73 = arith.constant 7 : i32
    %282 = arith.subi %c7_i32_73, %c3_i32 : i32
    %283 = arith.index_cast %282 : i32 to index
    %c0_74 = arith.constant 0 : index
    %c0_75 = arith.constant 0 : index
    %284 = vector.load %arg2[%283, %c0_74, %c0_75] : memref<8x2x384xbf16, #tpu.memory_space<vmem>>, vector<1x2x384xbf16>
    %285 = vector.shape_cast %284 : vector<1x2x384xbf16> to vector<2x384xbf16>
    %286 = arith.extf %285 : vector<2x384xbf16> to vector<2x384xf32>
    %287 = arith.truncf %239 : vector<2x128xf32> to vector<2x128xbf16>
    %cst_76 = arith.constant dense<0.000000e+00> : vector<2x384xf32>
    %288 = tpu.matmul %287, %6, %cst_76 {dimension_numbers = #tpu.dot_dimension_numbers<[1], [0], [0], [1], [0, 0, 1, 1], [], []>} : vector<2x128xbf16>, vector<128x384xbf16>, vector<2x384xf32> -> vector<2x384xf32>
    %289 = vector.broadcast %10 : vector<1x384xf32> to vector<2x384xf32>
    %290 = arith.addf %288, %289 : vector<2x384xf32>
    %291 = vector.extract_strided_slice %286 {offsets = [0, 0], sizes = [2, 128], strides = [1, 1]} : vector<2x384xf32> to vector<2x128xf32>
    %292 = vector.extract_strided_slice %290 {offsets = [0, 0], sizes = [2, 128], strides = [1, 1]} : vector<2x384xf32> to vector<2x128xf32>
    %293 = arith.addf %291, %292 : vector<2x128xf32>
    %294 = arith.negf %293 : vector<2x128xf32>
    %295 = math.exp %294 : vector<2x128xf32>
    %cst_77 = arith.constant 1.000000e+00 : f32
    %296 = vector.broadcast %cst_77 : f32 to vector<2x128xf32>
    %297 = arith.addf %296, %295 : vector<2x128xf32>
    %298 = arith.divf %296, %297 : vector<2x128xf32>
    %299 = vector.extract_strided_slice %286 {offsets = [0, 128], sizes = [2, 128], strides = [1, 1]} : vector<2x384xf32> to vector<2x128xf32>
    %300 = vector.extract_strided_slice %290 {offsets = [0, 128], sizes = [2, 128], strides = [1, 1]} : vector<2x384xf32> to vector<2x128xf32>
    %301 = arith.addf %299, %300 : vector<2x128xf32>
    %302 = arith.negf %301 : vector<2x128xf32>
    %303 = math.exp %302 : vector<2x128xf32>
    %cst_78 = arith.constant 1.000000e+00 : f32
    %304 = vector.broadcast %cst_78 : f32 to vector<2x128xf32>
    %305 = arith.addf %304, %303 : vector<2x128xf32>
    %306 = arith.divf %304, %305 : vector<2x128xf32>
    %307 = vector.extract_strided_slice %286 {offsets = [0, 256], sizes = [2, 128], strides = [1, 1]} : vector<2x384xf32> to vector<2x128xf32>
    %308 = vector.extract_strided_slice %290 {offsets = [0, 256], sizes = [2, 128], strides = [1, 1]} : vector<2x384xf32> to vector<2x128xf32>
    %309 = arith.mulf %298, %308 : vector<2x128xf32>
    %310 = arith.addf %307, %309 : vector<2x128xf32>
    %311 = math.tanh %310 : vector<2x128xf32>
    %cst_79 = arith.constant 1.000000e+00 : f32
    %312 = vector.broadcast %cst_79 : f32 to vector<2x128xf32>
    %313 = arith.subf %312, %306 : vector<2x128xf32>
    %314 = arith.mulf %313, %311 : vector<2x128xf32>
    %315 = arith.mulf %306, %239 : vector<2x128xf32>
    %316 = arith.addf %314, %315 : vector<2x128xf32>
    %317 = arith.index_cast %282 : i32 to index
    %c0_80 = arith.constant 0 : index
    %c0_81 = arith.constant 0 : index
    %318 = vector.load %arg7[%317, %c0_80, %c0_81] : memref<8x2x128xf32, #tpu.memory_space<vmem>>, vector<1x2x128xf32>
    %319 = vector.shape_cast %318 : vector<1x2x128xf32> to vector<2x128xf32>
    %320 = vector.shape_cast %316 : vector<2x128xf32> to vector<1x2x128xf32>
    tpu.vector_store %arg7[%317, %c0_80, %c0_81], %320 {strides = array<i32>} : memref<8x2x128xf32, #tpu.memory_space<vmem>>, vector<1x2x128xf32>,
    %c4_i32 = arith.constant 4 : i32
    %321 = arith.index_cast %c4_i32 : i32 to index
    %c0_82 = arith.constant 0 : index
    %c0_83 = arith.constant 0 : index
    %322 = vector.load %arg1[%321, %c0_82, %c0_83] : memref<8x2x384xbf16, #tpu.memory_space<vmem>>, vector<1x2x384xbf16>
    %323 = vector.shape_cast %322 : vector<1x2x384xbf16> to vector<2x384xbf16>
    %324 = arith.extf %323 : vector<2x384xbf16> to vector<2x384xf32>
    %325 = arith.truncf %277 : vector<2x128xf32> to vector<2x128xbf16>
    %cst_84 = arith.constant dense<0.000000e+00> : vector<2x384xf32>
    %326 = tpu.matmul %325, %4, %cst_84 {dimension_numbers = #tpu.dot_dimension_numbers<[1], [0], [0], [1], [0, 0, 1, 1], [], []>} : vector<2x128xbf16>, vector<128x384xbf16>, vector<2x384xf32> -> vector<2x384xf32>
    %327 = vector.broadcast %8 : vector<1x384xf32> to vector<2x384xf32>
    %328 = arith.addf %326, %327 : vector<2x384xf32>
    %329 = vector.extract_strided_slice %324 {offsets = [0, 0], sizes = [2, 128], strides = [1, 1]} : vector<2x384xf32> to vector<2x128xf32>
    %330 = vector.extract_strided_slice %328 {offsets = [0, 0], sizes = [2, 128], strides = [1, 1]} : vector<2x384xf32> to vector<2x128xf32>
    %331 = arith.addf %329, %330 : vector<2x128xf32>
    %332 = arith.negf %331 : vector<2x128xf32>
    %333 = math.exp %332 : vector<2x128xf32>
    %cst_85 = arith.constant 1.000000e+00 : f32
    %334 = vector.broadcast %cst_85 : f32 to vector<2x128xf32>
    %335 = arith.addf %334, %333 : vector<2x128xf32>
    %336 = arith.divf %334, %335 : vector<2x128xf32>
    %337 = vector.extract_strided_slice %324 {offsets = [0, 128], sizes = [2, 128], strides = [1, 1]} : vector<2x384xf32> to vector<2x128xf32>
    %338 = vector.extract_strided_slice %328 {offsets = [0, 128], sizes = [2, 128], strides = [1, 1]} : vector<2x384xf32> to vector<2x128xf32>
    %339 = arith.addf %337, %338 : vector<2x128xf32>
    %340 = arith.negf %339 : vector<2x128xf32>
    %341 = math.exp %340 : vector<2x128xf32>
    %cst_86 = arith.constant 1.000000e+00 : f32
    %342 = vector.broadcast %cst_86 : f32 to vector<2x128xf32>
    %343 = arith.addf %342, %341 : vector<2x128xf32>
    %344 = arith.divf %342, %343 : vector<2x128xf32>
    %345 = vector.extract_strided_slice %324 {offsets = [0, 256], sizes = [2, 128], strides = [1, 1]} : vector<2x384xf32> to vector<2x128xf32>
    %346 = vector.extract_strided_slice %328 {offsets = [0, 256], sizes = [2, 128], strides = [1, 1]} : vector<2x384xf32> to vector<2x128xf32>
    %347 = arith.mulf %336, %346 : vector<2x128xf32>
    %348 = arith.addf %345, %347 : vector<2x128xf32>
    %349 = math.tanh %348 : vector<2x128xf32>
    %cst_87 = arith.constant 1.000000e+00 : f32
    %350 = vector.broadcast %cst_87 : f32 to vector<2x128xf32>
    %351 = arith.subf %350, %344 : vector<2x128xf32>
    %352 = arith.mulf %351, %349 : vector<2x128xf32>
    %353 = arith.mulf %344, %277 : vector<2x128xf32>
    %354 = arith.addf %352, %353 : vector<2x128xf32>
    %355 = arith.index_cast %c4_i32 : i32 to index
    %c0_88 = arith.constant 0 : index
    %c0_89 = arith.constant 0 : index
    %356 = vector.load %arg6[%355, %c0_88, %c0_89] : memref<8x2x128xf32, #tpu.memory_space<vmem>>, vector<1x2x128xf32>
    %357 = vector.shape_cast %356 : vector<1x2x128xf32> to vector<2x128xf32>
    %358 = vector.shape_cast %354 : vector<2x128xf32> to vector<1x2x128xf32>
    tpu.vector_store %arg6[%355, %c0_88, %c0_89], %358 {strides = array<i32>} : memref<8x2x128xf32, #tpu.memory_space<vmem>>, vector<1x2x128xf32>,
    %c7_i32_90 = arith.constant 7 : i32
    %359 = arith.subi %c7_i32_90, %c4_i32 : i32
    %360 = arith.index_cast %359 : i32 to index
    %c0_91 = arith.constant 0 : index
    %c0_92 = arith.constant 0 : index
    %361 = vector.load %arg2[%360, %c0_91, %c0_92] : memref<8x2x384xbf16, #tpu.memory_space<vmem>>, vector<1x2x384xbf16>
    %362 = vector.shape_cast %361 : vector<1x2x384xbf16> to vector<2x384xbf16>
    %363 = arith.extf %362 : vector<2x384xbf16> to vector<2x384xf32>
    %364 = arith.truncf %316 : vector<2x128xf32> to vector<2x128xbf16>
    %cst_93 = arith.constant dense<0.000000e+00> : vector<2x384xf32>
    %365 = tpu.matmul %364, %6, %cst_93 {dimension_numbers = #tpu.dot_dimension_numbers<[1], [0], [0], [1], [0, 0, 1, 1], [], []>} : vector<2x128xbf16>, vector<128x384xbf16>, vector<2x384xf32> -> vector<2x384xf32>
    %366 = vector.broadcast %10 : vector<1x384xf32> to vector<2x384xf32>
    %367 = arith.addf %365, %366 : vector<2x384xf32>
    %368 = vector.extract_strided_slice %363 {offsets = [0, 0], sizes = [2, 128], strides = [1, 1]} : vector<2x384xf32> to vector<2x128xf32>
    %369 = vector.extract_strided_slice %367 {offsets = [0, 0], sizes = [2, 128], strides = [1, 1]} : vector<2x384xf32> to vector<2x128xf32>
    %370 = arith.addf %368, %369 : vector<2x128xf32>
    %371 = arith.negf %370 : vector<2x128xf32>
    %372 = math.exp %371 : vector<2x128xf32>
    %cst_94 = arith.constant 1.000000e+00 : f32
    %373 = vector.broadcast %cst_94 : f32 to vector<2x128xf32>
    %374 = arith.addf %373, %372 : vector<2x128xf32>
    %375 = arith.divf %373, %374 : vector<2x128xf32>
    %376 = vector.extract_strided_slice %363 {offsets = [0, 128], sizes = [2, 128], strides = [1, 1]} : vector<2x384xf32> to vector<2x128xf32>
    %377 = vector.extract_strided_slice %367 {offsets = [0, 128], sizes = [2, 128], strides = [1, 1]} : vector<2x384xf32> to vector<2x128xf32>
    %378 = arith.addf %376, %377 : vector<2x128xf32>
    %379 = arith.negf %378 : vector<2x128xf32>
    %380 = math.exp %379 : vector<2x128xf32>
    %cst_95 = arith.constant 1.000000e+00 : f32
    %381 = vector.broadcast %cst_95 : f32 to vector<2x128xf32>
    %382 = arith.addf %381, %380 : vector<2x128xf32>
    %383 = arith.divf %381, %382 : vector<2x128xf32>
    %384 = vector.extract_strided_slice %363 {offsets = [0, 256], sizes = [2, 128], strides = [1, 1]} : vector<2x384xf32> to vector<2x128xf32>
    %385 = vector.extract_strided_slice %367 {offsets = [0, 256], sizes = [2, 128], strides = [1, 1]} : vector<2x384xf32> to vector<2x128xf32>
    %386 = arith.mulf %375, %385 : vector<2x128xf32>
    %387 = arith.addf %384, %386 : vector<2x128xf32>
    %388 = math.tanh %387 : vector<2x128xf32>
    %cst_96 = arith.constant 1.000000e+00 : f32
    %389 = vector.broadcast %cst_96 : f32 to vector<2x128xf32>
    %390 = arith.subf %389, %383 : vector<2x128xf32>
    %391 = arith.mulf %390, %388 : vector<2x128xf32>
    %392 = arith.mulf %383, %316 : vector<2x128xf32>
    %393 = arith.addf %391, %392 : vector<2x128xf32>
    %394 = arith.index_cast %359 : i32 to index
    %c0_97 = arith.constant 0 : index
    %c0_98 = arith.constant 0 : index
    %395 = vector.load %arg7[%394, %c0_97, %c0_98] : memref<8x2x128xf32, #tpu.memory_space<vmem>>, vector<1x2x128xf32>
    %396 = vector.shape_cast %395 : vector<1x2x128xf32> to vector<2x128xf32>
    %397 = vector.shape_cast %393 : vector<2x128xf32> to vector<1x2x128xf32>
    tpu.vector_store %arg7[%394, %c0_97, %c0_98], %397 {strides = array<i32>} : memref<8x2x128xf32, #tpu.memory_space<vmem>>, vector<1x2x128xf32>,
    %c5_i32 = arith.constant 5 : i32
    %398 = arith.index_cast %c5_i32 : i32 to index
    %c0_99 = arith.constant 0 : index
    %c0_100 = arith.constant 0 : index
    %399 = vector.load %arg1[%398, %c0_99, %c0_100] : memref<8x2x384xbf16, #tpu.memory_space<vmem>>, vector<1x2x384xbf16>
    %400 = vector.shape_cast %399 : vector<1x2x384xbf16> to vector<2x384xbf16>
    %401 = arith.extf %400 : vector<2x384xbf16> to vector<2x384xf32>
    %402 = arith.truncf %354 : vector<2x128xf32> to vector<2x128xbf16>
    %cst_101 = arith.constant dense<0.000000e+00> : vector<2x384xf32>
    %403 = tpu.matmul %402, %4, %cst_101 {dimension_numbers = #tpu.dot_dimension_numbers<[1], [0], [0], [1], [0, 0, 1, 1], [], []>} : vector<2x128xbf16>, vector<128x384xbf16>, vector<2x384xf32> -> vector<2x384xf32>
    %404 = vector.broadcast %8 : vector<1x384xf32> to vector<2x384xf32>
    %405 = arith.addf %403, %404 : vector<2x384xf32>
    %406 = vector.extract_strided_slice %401 {offsets = [0, 0], sizes = [2, 128], strides = [1, 1]} : vector<2x384xf32> to vector<2x128xf32>
    %407 = vector.extract_strided_slice %405 {offsets = [0, 0], sizes = [2, 128], strides = [1, 1]} : vector<2x384xf32> to vector<2x128xf32>
    %408 = arith.addf %406, %407 : vector<2x128xf32>
    %409 = arith.negf %408 : vector<2x128xf32>
    %410 = math.exp %409 : vector<2x128xf32>
    %cst_102 = arith.constant 1.000000e+00 : f32
    %411 = vector.broadcast %cst_102 : f32 to vector<2x128xf32>
    %412 = arith.addf %411, %410 : vector<2x128xf32>
    %413 = arith.divf %411, %412 : vector<2x128xf32>
    %414 = vector.extract_strided_slice %401 {offsets = [0, 128], sizes = [2, 128], strides = [1, 1]} : vector<2x384xf32> to vector<2x128xf32>
    %415 = vector.extract_strided_slice %405 {offsets = [0, 128], sizes = [2, 128], strides = [1, 1]} : vector<2x384xf32> to vector<2x128xf32>
    %416 = arith.addf %414, %415 : vector<2x128xf32>
    %417 = arith.negf %416 : vector<2x128xf32>
    %418 = math.exp %417 : vector<2x128xf32>
    %cst_103 = arith.constant 1.000000e+00 : f32
    %419 = vector.broadcast %cst_103 : f32 to vector<2x128xf32>
    %420 = arith.addf %419, %418 : vector<2x128xf32>
    %421 = arith.divf %419, %420 : vector<2x128xf32>
    %422 = vector.extract_strided_slice %401 {offsets = [0, 256], sizes = [2, 128], strides = [1, 1]} : vector<2x384xf32> to vector<2x128xf32>
    %423 = vector.extract_strided_slice %405 {offsets = [0, 256], sizes = [2, 128], strides = [1, 1]} : vector<2x384xf32> to vector<2x128xf32>
    %424 = arith.mulf %413, %423 : vector<2x128xf32>
    %425 = arith.addf %422, %424 : vector<2x128xf32>
    %426 = math.tanh %425 : vector<2x128xf32>
    %cst_104 = arith.constant 1.000000e+00 : f32
    %427 = vector.broadcast %cst_104 : f32 to vector<2x128xf32>
    %428 = arith.subf %427, %421 : vector<2x128xf32>
    %429 = arith.mulf %428, %426 : vector<2x128xf32>
    %430 = arith.mulf %421, %354 : vector<2x128xf32>
    %431 = arith.addf %429, %430 : vector<2x128xf32>
    %432 = arith.index_cast %c5_i32 : i32 to index
    %c0_105 = arith.constant 0 : index
    %c0_106 = arith.constant 0 : index
    %433 = vector.load %arg6[%432, %c0_105, %c0_106] : memref<8x2x128xf32, #tpu.memory_space<vmem>>, vector<1x2x128xf32>
    %434 = vector.shape_cast %433 : vector<1x2x128xf32> to vector<2x128xf32>
    %435 = vector.shape_cast %431 : vector<2x128xf32> to vector<1x2x128xf32>
    tpu.vector_store %arg6[%432, %c0_105, %c0_106], %435 {strides = array<i32>} : memref<8x2x128xf32, #tpu.memory_space<vmem>>, vector<1x2x128xf32>,
    %c7_i32_107 = arith.constant 7 : i32
    %436 = arith.subi %c7_i32_107, %c5_i32 : i32
    %437 = arith.index_cast %436 : i32 to index
    %c0_108 = arith.constant 0 : index
    %c0_109 = arith.constant 0 : index
    %438 = vector.load %arg2[%437, %c0_108, %c0_109] : memref<8x2x384xbf16, #tpu.memory_space<vmem>>, vector<1x2x384xbf16>
    %439 = vector.shape_cast %438 : vector<1x2x384xbf16> to vector<2x384xbf16>
    %440 = arith.extf %439 : vector<2x384xbf16> to vector<2x384xf32>
    %441 = arith.truncf %393 : vector<2x128xf32> to vector<2x128xbf16>
    %cst_110 = arith.constant dense<0.000000e+00> : vector<2x384xf32>
    %442 = tpu.matmul %441, %6, %cst_110 {dimension_numbers = #tpu.dot_dimension_numbers<[1], [0], [0], [1], [0, 0, 1, 1], [], []>} : vector<2x128xbf16>, vector<128x384xbf16>, vector<2x384xf32> -> vector<2x384xf32>
    %443 = vector.broadcast %10 : vector<1x384xf32> to vector<2x384xf32>
    %444 = arith.addf %442, %443 : vector<2x384xf32>
    %445 = vector.extract_strided_slice %440 {offsets = [0, 0], sizes = [2, 128], strides = [1, 1]} : vector<2x384xf32> to vector<2x128xf32>
    %446 = vector.extract_strided_slice %444 {offsets = [0, 0], sizes = [2, 128], strides = [1, 1]} : vector<2x384xf32> to vector<2x128xf32>
    %447 = arith.addf %445, %446 : vector<2x128xf32>
    %448 = arith.negf %447 : vector<2x128xf32>
    %449 = math.exp %448 : vector<2x128xf32>
    %cst_111 = arith.constant 1.000000e+00 : f32
    %450 = vector.broadcast %cst_111 : f32 to vector<2x128xf32>
    %451 = arith.addf %450, %449 : vector<2x128xf32>
    %452 = arith.divf %450, %451 : vector<2x128xf32>
    %453 = vector.extract_strided_slice %440 {offsets = [0, 128], sizes = [2, 128], strides = [1, 1]} : vector<2x384xf32> to vector<2x128xf32>
    %454 = vector.extract_strided_slice %444 {offsets = [0, 128], sizes = [2, 128], strides = [1, 1]} : vector<2x384xf32> to vector<2x128xf32>
    %455 = arith.addf %453, %454 : vector<2x128xf32>
    %456 = arith.negf %455 : vector<2x128xf32>
    %457 = math.exp %456 : vector<2x128xf32>
    %cst_112 = arith.constant 1.000000e+00 : f32
    %458 = vector.broadcast %cst_112 : f32 to vector<2x128xf32>
    %459 = arith.addf %458, %457 : vector<2x128xf32>
    %460 = arith.divf %458, %459 : vector<2x128xf32>
    %461 = vector.extract_strided_slice %440 {offsets = [0, 256], sizes = [2, 128], strides = [1, 1]} : vector<2x384xf32> to vector<2x128xf32>
    %462 = vector.extract_strided_slice %444 {offsets = [0, 256], sizes = [2, 128], strides = [1, 1]} : vector<2x384xf32> to vector<2x128xf32>
    %463 = arith.mulf %452, %462 : vector<2x128xf32>
    %464 = arith.addf %461, %463 : vector<2x128xf32>
    %465 = math.tanh %464 : vector<2x128xf32>
    %cst_113 = arith.constant 1.000000e+00 : f32
    %466 = vector.broadcast %cst_113 : f32 to vector<2x128xf32>
    %467 = arith.subf %466, %460 : vector<2x128xf32>
    %468 = arith.mulf %467, %465 : vector<2x128xf32>
    %469 = arith.mulf %460, %393 : vector<2x128xf32>
    %470 = arith.addf %468, %469 : vector<2x128xf32>
    %471 = arith.index_cast %436 : i32 to index
    %c0_114 = arith.constant 0 : index
    %c0_115 = arith.constant 0 : index
    %472 = vector.load %arg7[%471, %c0_114, %c0_115] : memref<8x2x128xf32, #tpu.memory_space<vmem>>, vector<1x2x128xf32>
    %473 = vector.shape_cast %472 : vector<1x2x128xf32> to vector<2x128xf32>
    %474 = vector.shape_cast %470 : vector<2x128xf32> to vector<1x2x128xf32>
    tpu.vector_store %arg7[%471, %c0_114, %c0_115], %474 {strides = array<i32>} : memref<8x2x128xf32, #tpu.memory_space<vmem>>, vector<1x2x128xf32>,
    %c6_i32 = arith.constant 6 : i32
    %475 = arith.index_cast %c6_i32 : i32 to index
    %c0_116 = arith.constant 0 : index
    %c0_117 = arith.constant 0 : index
    %476 = vector.load %arg1[%475, %c0_116, %c0_117] : memref<8x2x384xbf16, #tpu.memory_space<vmem>>, vector<1x2x384xbf16>
    %477 = vector.shape_cast %476 : vector<1x2x384xbf16> to vector<2x384xbf16>
    %478 = arith.extf %477 : vector<2x384xbf16> to vector<2x384xf32>
    %479 = arith.truncf %431 : vector<2x128xf32> to vector<2x128xbf16>
    %cst_118 = arith.constant dense<0.000000e+00> : vector<2x384xf32>
    %480 = tpu.matmul %479, %4, %cst_118 {dimension_numbers = #tpu.dot_dimension_numbers<[1], [0], [0], [1], [0, 0, 1, 1], [], []>} : vector<2x128xbf16>, vector<128x384xbf16>, vector<2x384xf32> -> vector<2x384xf32>
    %481 = vector.broadcast %8 : vector<1x384xf32> to vector<2x384xf32>
    %482 = arith.addf %480, %481 : vector<2x384xf32>
    %483 = vector.extract_strided_slice %478 {offsets = [0, 0], sizes = [2, 128], strides = [1, 1]} : vector<2x384xf32> to vector<2x128xf32>
    %484 = vector.extract_strided_slice %482 {offsets = [0, 0], sizes = [2, 128], strides = [1, 1]} : vector<2x384xf32> to vector<2x128xf32>
    %485 = arith.addf %483, %484 : vector<2x128xf32>
    %486 = arith.negf %485 : vector<2x128xf32>
    %487 = math.exp %486 : vector<2x128xf32>
    %cst_119 = arith.constant 1.000000e+00 : f32
    %488 = vector.broadcast %cst_119 : f32 to vector<2x128xf32>
    %489 = arith.addf %488, %487 : vector<2x128xf32>
    %490 = arith.divf %488, %489 : vector<2x128xf32>
    %491 = vector.extract_strided_slice %478 {offsets = [0, 128], sizes = [2, 128], strides = [1, 1]} : vector<2x384xf32> to vector<2x128xf32>
    %492 = vector.extract_strided_slice %482 {offsets = [0, 128], sizes = [2, 128], strides = [1, 1]} : vector<2x384xf32> to vector<2x128xf32>
    %493 = arith.addf %491, %492 : vector<2x128xf32>
    %494 = arith.negf %493 : vector<2x128xf32>
    %495 = math.exp %494 : vector<2x128xf32>
    %cst_120 = arith.constant 1.000000e+00 : f32
    %496 = vector.broadcast %cst_120 : f32 to vector<2x128xf32>
    %497 = arith.addf %496, %495 : vector<2x128xf32>
    %498 = arith.divf %496, %497 : vector<2x128xf32>
    %499 = vector.extract_strided_slice %478 {offsets = [0, 256], sizes = [2, 128], strides = [1, 1]} : vector<2x384xf32> to vector<2x128xf32>
    %500 = vector.extract_strided_slice %482 {offsets = [0, 256], sizes = [2, 128], strides = [1, 1]} : vector<2x384xf32> to vector<2x128xf32>
    %501 = arith.mulf %490, %500 : vector<2x128xf32>
    %502 = arith.addf %499, %501 : vector<2x128xf32>
    %503 = math.tanh %502 : vector<2x128xf32>
    %cst_121 = arith.constant 1.000000e+00 : f32
    %504 = vector.broadcast %cst_121 : f32 to vector<2x128xf32>
    %505 = arith.subf %504, %498 : vector<2x128xf32>
    %506 = arith.mulf %505, %503 : vector<2x128xf32>
    %507 = arith.mulf %498, %431 : vector<2x128xf32>
    %508 = arith.addf %506, %507 : vector<2x128xf32>
    %509 = arith.index_cast %c6_i32 : i32 to index
    %c0_122 = arith.constant 0 : index
    %c0_123 = arith.constant 0 : index
    %510 = vector.load %arg6[%509, %c0_122, %c0_123] : memref<8x2x128xf32, #tpu.memory_space<vmem>>, vector<1x2x128xf32>
    %511 = vector.shape_cast %510 : vector<1x2x128xf32> to vector<2x128xf32>
    %512 = vector.shape_cast %508 : vector<2x128xf32> to vector<1x2x128xf32>
    tpu.vector_store %arg6[%509, %c0_122, %c0_123], %512 {strides = array<i32>} : memref<8x2x128xf32, #tpu.memory_space<vmem>>, vector<1x2x128xf32>,
    %c7_i32_124 = arith.constant 7 : i32
    %513 = arith.subi %c7_i32_124, %c6_i32 : i32
    %514 = arith.index_cast %513 : i32 to index
    %c0_125 = arith.constant 0 : index
    %c0_126 = arith.constant 0 : index
    %515 = vector.load %arg2[%514, %c0_125, %c0_126] : memref<8x2x384xbf16, #tpu.memory_space<vmem>>, vector<1x2x384xbf16>
    %516 = vector.shape_cast %515 : vector<1x2x384xbf16> to vector<2x384xbf16>
    %517 = arith.extf %516 : vector<2x384xbf16> to vector<2x384xf32>
    %518 = arith.truncf %470 : vector<2x128xf32> to vector<2x128xbf16>
    %cst_127 = arith.constant dense<0.000000e+00> : vector<2x384xf32>
    %519 = tpu.matmul %518, %6, %cst_127 {dimension_numbers = #tpu.dot_dimension_numbers<[1], [0], [0], [1], [0, 0, 1, 1], [], []>} : vector<2x128xbf16>, vector<128x384xbf16>, vector<2x384xf32> -> vector<2x384xf32>
    %520 = vector.broadcast %10 : vector<1x384xf32> to vector<2x384xf32>
    %521 = arith.addf %519, %520 : vector<2x384xf32>
    %522 = vector.extract_strided_slice %517 {offsets = [0, 0], sizes = [2, 128], strides = [1, 1]} : vector<2x384xf32> to vector<2x128xf32>
    %523 = vector.extract_strided_slice %521 {offsets = [0, 0], sizes = [2, 128], strides = [1, 1]} : vector<2x384xf32> to vector<2x128xf32>
    %524 = arith.addf %522, %523 : vector<2x128xf32>
    %525 = arith.negf %524 : vector<2x128xf32>
    %526 = math.exp %525 : vector<2x128xf32>
    %cst_128 = arith.constant 1.000000e+00 : f32
    %527 = vector.broadcast %cst_128 : f32 to vector<2x128xf32>
    %528 = arith.addf %527, %526 : vector<2x128xf32>
    %529 = arith.divf %527, %528 : vector<2x128xf32>
    %530 = vector.extract_strided_slice %517 {offsets = [0, 128], sizes = [2, 128], strides = [1, 1]} : vector<2x384xf32> to vector<2x128xf32>
    %531 = vector.extract_strided_slice %521 {offsets = [0, 128], sizes = [2, 128], strides = [1, 1]} : vector<2x384xf32> to vector<2x128xf32>
    %532 = arith.addf %530, %531 : vector<2x128xf32>
    %533 = arith.negf %532 : vector<2x128xf32>
    %534 = math.exp %533 : vector<2x128xf32>
    %cst_129 = arith.constant 1.000000e+00 : f32
    %535 = vector.broadcast %cst_129 : f32 to vector<2x128xf32>
    %536 = arith.addf %535, %534 : vector<2x128xf32>
    %537 = arith.divf %535, %536 : vector<2x128xf32>
    %538 = vector.extract_strided_slice %517 {offsets = [0, 256], sizes = [2, 128], strides = [1, 1]} : vector<2x384xf32> to vector<2x128xf32>
    %539 = vector.extract_strided_slice %521 {offsets = [0, 256], sizes = [2, 128], strides = [1, 1]} : vector<2x384xf32> to vector<2x128xf32>
    %540 = arith.mulf %529, %539 : vector<2x128xf32>
    %541 = arith.addf %538, %540 : vector<2x128xf32>
    %542 = math.tanh %541 : vector<2x128xf32>
    %cst_130 = arith.constant 1.000000e+00 : f32
    %543 = vector.broadcast %cst_130 : f32 to vector<2x128xf32>
    %544 = arith.subf %543, %537 : vector<2x128xf32>
    %545 = arith.mulf %544, %542 : vector<2x128xf32>
    %546 = arith.mulf %537, %470 : vector<2x128xf32>
    %547 = arith.addf %545, %546 : vector<2x128xf32>
    %548 = arith.index_cast %513 : i32 to index
    %c0_131 = arith.constant 0 : index
    %c0_132 = arith.constant 0 : index
    %549 = vector.load %arg7[%548, %c0_131, %c0_132] : memref<8x2x128xf32, #tpu.memory_space<vmem>>, vector<1x2x128xf32>
    %550 = vector.shape_cast %549 : vector<1x2x128xf32> to vector<2x128xf32>
    %551 = vector.shape_cast %547 : vector<2x128xf32> to vector<1x2x128xf32>
    tpu.vector_store %arg7[%548, %c0_131, %c0_132], %551 {strides = array<i32>} : memref<8x2x128xf32, #tpu.memory_space<vmem>>, vector<1x2x128xf32>,
    %c7_i32_133 = arith.constant 7 : i32
    %552 = arith.index_cast %c7_i32_133 : i32 to index
    %c0_134 = arith.constant 0 : index
    %c0_135 = arith.constant 0 : index
    %553 = vector.load %arg1[%552, %c0_134, %c0_135] : memref<8x2x384xbf16, #tpu.memory_space<vmem>>, vector<1x2x384xbf16>
    %554 = vector.shape_cast %553 : vector<1x2x384xbf16> to vector<2x384xbf16>
    %555 = arith.extf %554 : vector<2x384xbf16> to vector<2x384xf32>
    %556 = arith.truncf %508 : vector<2x128xf32> to vector<2x128xbf16>
    %cst_136 = arith.constant dense<0.000000e+00> : vector<2x384xf32>
    %557 = tpu.matmul %556, %4, %cst_136 {dimension_numbers = #tpu.dot_dimension_numbers<[1], [0], [0], [1], [0, 0, 1, 1], [], []>} : vector<2x128xbf16>, vector<128x384xbf16>, vector<2x384xf32> -> vector<2x384xf32>
    %558 = vector.broadcast %8 : vector<1x384xf32> to vector<2x384xf32>
    %559 = arith.addf %557, %558 : vector<2x384xf32>
    %560 = vector.extract_strided_slice %555 {offsets = [0, 0], sizes = [2, 128], strides = [1, 1]} : vector<2x384xf32> to vector<2x128xf32>
    %561 = vector.extract_strided_slice %559 {offsets = [0, 0], sizes = [2, 128], strides = [1, 1]} : vector<2x384xf32> to vector<2x128xf32>
    %562 = arith.addf %560, %561 : vector<2x128xf32>
    %563 = arith.negf %562 : vector<2x128xf32>
    %564 = math.exp %563 : vector<2x128xf32>
    %cst_137 = arith.constant 1.000000e+00 : f32
    %565 = vector.broadcast %cst_137 : f32 to vector<2x128xf32>
    %566 = arith.addf %565, %564 : vector<2x128xf32>
    %567 = arith.divf %565, %566 : vector<2x128xf32>
    %568 = vector.extract_strided_slice %555 {offsets = [0, 128], sizes = [2, 128], strides = [1, 1]} : vector<2x384xf32> to vector<2x128xf32>
    %569 = vector.extract_strided_slice %559 {offsets = [0, 128], sizes = [2, 128], strides = [1, 1]} : vector<2x384xf32> to vector<2x128xf32>
    %570 = arith.addf %568, %569 : vector<2x128xf32>
    %571 = arith.negf %570 : vector<2x128xf32>
    %572 = math.exp %571 : vector<2x128xf32>
    %cst_138 = arith.constant 1.000000e+00 : f32
    %573 = vector.broadcast %cst_138 : f32 to vector<2x128xf32>
    %574 = arith.addf %573, %572 : vector<2x128xf32>
    %575 = arith.divf %573, %574 : vector<2x128xf32>
    %576 = vector.extract_strided_slice %555 {offsets = [0, 256], sizes = [2, 128], strides = [1, 1]} : vector<2x384xf32> to vector<2x128xf32>
    %577 = vector.extract_strided_slice %559 {offsets = [0, 256], sizes = [2, 128], strides = [1, 1]} : vector<2x384xf32> to vector<2x128xf32>
    %578 = arith.mulf %567, %577 : vector<2x128xf32>
    %579 = arith.addf %576, %578 : vector<2x128xf32>
    %580 = math.tanh %579 : vector<2x128xf32>
    %cst_139 = arith.constant 1.000000e+00 : f32
    %581 = vector.broadcast %cst_139 : f32 to vector<2x128xf32>
    %582 = arith.subf %581, %575 : vector<2x128xf32>
    %583 = arith.mulf %582, %580 : vector<2x128xf32>
    %584 = arith.mulf %575, %508 : vector<2x128xf32>
    %585 = arith.addf %583, %584 : vector<2x128xf32>
    %586 = arith.index_cast %c7_i32_133 : i32 to index
    %c0_140 = arith.constant 0 : index
    %c0_141 = arith.constant 0 : index
    %587 = vector.load %arg6[%586, %c0_140, %c0_141] : memref<8x2x128xf32, #tpu.memory_space<vmem>>, vector<1x2x128xf32>
    %588 = vector.shape_cast %587 : vector<1x2x128xf32> to vector<2x128xf32>
    %589 = vector.shape_cast %585 : vector<2x128xf32> to vector<1x2x128xf32>
    tpu.vector_store %arg6[%586, %c0_140, %c0_141], %589 {strides = array<i32>} : memref<8x2x128xf32, #tpu.memory_space<vmem>>, vector<1x2x128xf32>,
    %c7_i32_142 = arith.constant 7 : i32
    %590 = arith.subi %c7_i32_142, %c7_i32_133 : i32
    %591 = arith.index_cast %590 : i32 to index
    %c0_143 = arith.constant 0 : index
    %c0_144 = arith.constant 0 : index
    %592 = vector.load %arg2[%591, %c0_143, %c0_144] : memref<8x2x384xbf16, #tpu.memory_space<vmem>>, vector<1x2x384xbf16>
    %593 = vector.shape_cast %592 : vector<1x2x384xbf16> to vector<2x384xbf16>
    %594 = arith.extf %593 : vector<2x384xbf16> to vector<2x384xf32>
    %595 = arith.truncf %547 : vector<2x128xf32> to vector<2x128xbf16>
    %cst_145 = arith.constant dense<0.000000e+00> : vector<2x384xf32>
    %596 = tpu.matmul %595, %6, %cst_145 {dimension_numbers = #tpu.dot_dimension_numbers<[1], [0], [0], [1], [0, 0, 1, 1], [], []>} : vector<2x128xbf16>, vector<128x384xbf16>, vector<2x384xf32> -> vector<2x384xf32>
    %597 = vector.broadcast %10 : vector<1x384xf32> to vector<2x384xf32>
    %598 = arith.addf %596, %597 : vector<2x384xf32>
    %599 = vector.extract_strided_slice %594 {offsets = [0, 0], sizes = [2, 128], strides = [1, 1]} : vector<2x384xf32> to vector<2x128xf32>
    %600 = vector.extract_strided_slice %598 {offsets = [0, 0], sizes = [2, 128], strides = [1, 1]} : vector<2x384xf32> to vector<2x128xf32>
    %601 = arith.addf %599, %600 : vector<2x128xf32>
    %602 = arith.negf %601 : vector<2x128xf32>
    %603 = math.exp %602 : vector<2x128xf32>
    %cst_146 = arith.constant 1.000000e+00 : f32
    %604 = vector.broadcast %cst_146 : f32 to vector<2x128xf32>
    %605 = arith.addf %604, %603 : vector<2x128xf32>
    %606 = arith.divf %604, %605 : vector<2x128xf32>
    %607 = vector.extract_strided_slice %594 {offsets = [0, 128], sizes = [2, 128], strides = [1, 1]} : vector<2x384xf32> to vector<2x128xf32>
    %608 = vector.extract_strided_slice %598 {offsets = [0, 128], sizes = [2, 128], strides = [1, 1]} : vector<2x384xf32> to vector<2x128xf32>
    %609 = arith.addf %607, %608 : vector<2x128xf32>
    %610 = arith.negf %609 : vector<2x128xf32>
    %611 = math.exp %610 : vector<2x128xf32>
    %cst_147 = arith.constant 1.000000e+00 : f32
    %612 = vector.broadcast %cst_147 : f32 to vector<2x128xf32>
    %613 = arith.addf %612, %611 : vector<2x128xf32>
    %614 = arith.divf %612, %613 : vector<2x128xf32>
    %615 = vector.extract_strided_slice %594 {offsets = [0, 256], sizes = [2, 128], strides = [1, 1]} : vector<2x384xf32> to vector<2x128xf32>
    %616 = vector.extract_strided_slice %598 {offsets = [0, 256], sizes = [2, 128], strides = [1, 1]} : vector<2x384xf32> to vector<2x128xf32>
    %617 = arith.mulf %606, %616 : vector<2x128xf32>
    %618 = arith.addf %615, %617 : vector<2x128xf32>
    %619 = math.tanh %618 : vector<2x128xf32>
    %cst_148 = arith.constant 1.000000e+00 : f32
    %620 = vector.broadcast %cst_148 : f32 to vector<2x128xf32>
    %621 = arith.subf %620, %614 : vector<2x128xf32>
    %622 = arith.mulf %621, %619 : vector<2x128xf32>
    %623 = arith.mulf %614, %547 : vector<2x128xf32>
    %624 = arith.addf %622, %623 : vector<2x128xf32>
    %625 = arith.index_cast %590 : i32 to index
    %c0_149 = arith.constant 0 : index
    %c0_150 = arith.constant 0 : index
    %626 = vector.load %arg7[%625, %c0_149, %c0_150] : memref<8x2x128xf32, #tpu.memory_space<vmem>>, vector<1x2x128xf32>
    %627 = vector.shape_cast %626 : vector<1x2x128xf32> to vector<2x128xf32>
    %628 = vector.shape_cast %624 : vector<2x128xf32> to vector<1x2x128xf32>
    tpu.vector_store %arg7[%625, %c0_149, %c0_150], %628 {strides = array<i32>} : memref<8x2x128xf32, #tpu.memory_space<vmem>>, vector<1x2x128xf32>,
    %c8_i32 = arith.constant 8 : i32
    %c0_151 = arith.constant 0 : index
    %c0_152 = arith.constant 0 : index
    %629 = vector.load %arg9[%c0_151, %c0_152] : memref<2x128xf32, #tpu.memory_space<vmem>>, vector<2x128xf32>
    tpu.vector_store %arg9[%c0_151, %c0_152], %585 {strides = array<i32>} : memref<2x128xf32, #tpu.memory_space<vmem>>, vector<2x128xf32>,
    %c0_153 = arith.constant 0 : index
    %c0_154 = arith.constant 0 : index
    %c0_155 = arith.constant 0 : index
    %630 = vector.load %arg8[%c0_153, %c0_154, %c0_155] : memref<2x2x128xf32, #tpu.memory_space<vmem>>, vector<1x2x128xf32>
    %631 = vector.shape_cast %630 : vector<1x2x128xf32> to vector<2x128xf32>
    %632 = vector.shape_cast %585 : vector<2x128xf32> to vector<1x2x128xf32>
    tpu.vector_store %arg8[%c0_153, %c0_154, %c0_155], %632 {strides = array<i32>} : memref<2x2x128xf32, #tpu.memory_space<vmem>>, vector<1x2x128xf32>,
    %c0_156 = arith.constant 0 : index
    %c0_157 = arith.constant 0 : index
    %633 = vector.load %arg10[%c0_156, %c0_157] : memref<2x128xf32, #tpu.memory_space<vmem>>, vector<2x128xf32>
    tpu.vector_store %arg10[%c0_156, %c0_157], %624 {strides = array<i32>} : memref<2x128xf32, #tpu.memory_space<vmem>>, vector<2x128xf32>,
    %c1_158 = arith.constant 1 : index
    %c0_159 = arith.constant 0 : index
    %c0_160 = arith.constant 0 : index
    %634 = vector.load %arg8[%c1_158, %c0_159, %c0_160] : memref<2x2x128xf32, #tpu.memory_space<vmem>>, vector<1x2x128xf32>
    %635 = vector.shape_cast %634 : vector<1x2x128xf32> to vector<2x128xf32>
    %636 = vector.shape_cast %624 : vector<2x128xf32> to vector<1x2x128xf32>
    tpu.vector_store %arg8[%c1_158, %c0_159, %c0_160], %636 {strides = array<i32>} : memref<2x2x128xf32, #tpu.memory_space<vmem>>, vector<1x2x128xf32>,
    return
  }
  func.func @transform_0(%arg0: i32) -> (i32, i32, i32) {
    %c0_i32 = arith.constant 0 : i32
    %c0_i32_0 = arith.constant 0 : i32
    %c0_i32_1 = arith.constant 0 : i32
    return %arg0, %c0_i32, %c0_i32_0 : i32, i32, i32
  }
  func.func @transform_1(%arg0: i32) -> (i32, i32, i32) {
    %c0_i32 = arith.constant 0 : i32
    %0 = arith.subi %c0_i32, %arg0 : i32
    %c0_i32_0 = arith.constant 0 : i32
    %c0_i32_1 = arith.constant 0 : i32
    %c0_i32_2 = arith.constant 0 : i32
    return %0, %c0_i32_0, %c0_i32_1 : i32, i32, i32
  }
  func.func @transform_2(%arg0: i32) -> (i32, i32, i32) {
    %c0_i32 = arith.constant 0 : i32
    %c0_i32_0 = arith.constant 0 : i32
    %c0_i32_1 = arith.constant 0 : i32
    %c0_i32_2 = arith.constant 0 : i32
    return %c0_i32, %c0_i32_0, %c0_i32_1 : i32, i32, i32
  }
  func.func @transform_3(%arg0: i32) -> (i32, i32, i32) {
    %c0_i32 = arith.constant 0 : i32
    %c0_i32_0 = arith.constant 0 : i32
    %c0_i32_1 = arith.constant 0 : i32
    %c0_i32_2 = arith.constant 0 : i32
    return %c0_i32, %c0_i32_0, %c0_i32_1 : i32, i32, i32
  }
  func.func @transform_4(%arg0: i32) -> (i32, i32, i32) {
    %c0_i32 = arith.constant 0 : i32
    %c0_i32_0 = arith.constant 0 : i32
    %c0_i32_1 = arith.constant 0 : i32
    %c0_i32_2 = arith.constant 0 : i32
    return %c0_i32, %c0_i32_0, %c0_i32_1 : i32, i32, i32
  }
  func.func @transform_5(%arg0: i32) -> (i32, i32, i32) {
    %c0_i32 = arith.constant 0 : i32
    %c0_i32_0 = arith.constant 0 : i32
    %c0_i32_1 = arith.constant 0 : i32
    return %arg0, %c0_i32, %c0_i32_0 : i32, i32, i32
  }
  func.func @transform_6(%arg0: i32) -> (i32, i32, i32) {
    %c0_i32 = arith.constant 0 : i32
    %0 = arith.subi %c0_i32, %arg0 : i32
    %c0_i32_0 = arith.constant 0 : i32
    %c0_i32_1 = arith.constant 0 : i32
    %c0_i32_2 = arith.constant 0 : i32
    return %0, %c0_i32_0, %c0_i32_1 : i32, i32, i32
  }
  func.func @transform_7(%arg0: i32) -> (i32, i32, i32) {
    %c0_i32 = arith.constant 0 : i32
    %c0_i32_0 = arith.constant 0 : i32
    %c0_i32_1 = arith.constant 0 : i32
    %c0_i32_2 = arith.constant 0 : i32
    return %c0_i32, %c0_i32_0, %c0_i32_1 : i32, i32, i32
  }
}

</mosaic_0001>

<llo_original>
// kernel: graph_encoder_forward.2
$region0: #{graph_encoder_forward.2}
  #allocation0 [shape = 'u32[]', space=smem, size = 0x4, offset = 0x4, fixed_abs, tag = 'smem constant byte address 0x4 - core index']
  #allocation1 [shape = 'u32[144,128]{1,0:T(1,128)}', space=vmem, size = 0x12000, scoped, tag = 'internal scratch']
  #allocation2 [shape = 'f32[2,128]{1,0:T(2,128)}', space=vmem, size = 0x400, scoped, tag = 'scratch operand']
  #allocation3 [shape = 'f32[2,128]{1,0:T(2,128)}', space=vmem, size = 0x400, scoped, tag = 'scratch operand']
  %s0 = inlined_call_operand.vmem [shape: bf16[8,2,384], index: 0, kind: input, shape index: {}]
  %s1 = inlined_call_operand.vmem [shape: bf16[8,2,384], index: 1, kind: input, shape index: {}]
  %s2 = inlined_call_operand.vmem [shape: f32[2,2,128], index: 2, kind: input, shape index: {}]
  %s3 = inlined_call_operand.vmem [shape: bf16[2,128,384], index: 3, kind: input, shape index: {}]
  %s4 = inlined_call_operand.vmem [shape: f32[2,1,384], index: 4, kind: input, shape index: {}]
  %s5 = inlined_call_operand.vmem [shape: f32[8,2,128], index: 5, kind: output, shape index: {0}]
  %s6 = inlined_call_operand.vmem [shape: f32[8,2,128], index: 6, kind: output, shape index: {1}]
  %s7 = inlined_call_operand.vmem [shape: f32[2,2,128], index: 7, kind: output, shape index: {2}]
  %8 = xla_tuple %s5, %s6, %s7
  %s9 = sld [smem:[#allocation0]]
  $region50: #{graph_encoder_forward.2} parent=0
    _
  %s11 = ssub.s32 1, %s9
  %s12 = scalar_select 0, %s11, %s9
  // Predicated region
  $region2: #{graph_encoder_forward.2} parent=0 // pred_check
    _
  $region3: #{graph_encoder_forward.2} parent=0 // pred_check_branch
    %14 = sbr.rel (0) target = $region5
  $region4: #{graph_encoder_forward.2} parent=0 // pred_region
    _
  $region5: #{graph_encoder_forward.2} parent=0 // pred_fallthru
    _
  // Predicated region
  $region6: #{graph_encoder_forward.2} parent=0 // pred_check
    _
  $region7: #{graph_encoder_forward.2} parent=0 // pred_check_branch
    %16 = sbr.rel (0) target = $region9
  $region8: #{graph_encoder_forward.2} parent=0 // pred_region
    %s17 = ssub.s32 0, 0
    %s18 = smul.u32 8, %s17
    %p19 = scmp.lt.s32.totalorder %s18, 7
    %s20 = scalar_select %p19, %s18, 7
    %s21 = smul.addr %s20, 3
    %s22 = scalar_lea.vmem %s1, %s21
    %s23 = ssub.s32 0, 0
    %s24 = smul.u32 8, %s23
  $region9: #{graph_encoder_forward.2} parent=0 // pred_fallthru
    _
  // Predicated region
  $region10: #{graph_encoder_forward.2} parent=0 // pred_check
    _
  $region11: #{graph_encoder_forward.2} parent=0 // pred_check_branch
    %26 = sbr.rel (0) target = $region13
  $region12: #{graph_encoder_forward.2} parent=0 // pred_region
    _
  $region13: #{graph_encoder_forward.2} parent=0 // pred_fallthru
    _
  // Predicated region
  $region14: #{graph_encoder_forward.2} parent=0 // pred_check
    _
  $region15: #{graph_encoder_forward.2} parent=0 // pred_check_branch
    %28 = sbr.rel (0) target = $region17
  $region16: #{graph_encoder_forward.2} parent=0 // pred_region
    _
  $region17: #{graph_encoder_forward.2} parent=0 // pred_fallthru
    _
  // Predicated region
  $region18: #{graph_encoder_forward.2} parent=0 // pred_check
    _
  $region19: #{graph_encoder_forward.2} parent=0 // pred_check_branch
    %30 = sbr.rel (0) target = $region21
  $region20: #{graph_encoder_forward.2} parent=0 // pred_region
    _
  $region21: #{graph_encoder_forward.2} parent=0 // pred_fallthru
    _
  %s31 = ssub.s32 0, 0
  %s32 = smul.u32 8, %s31
  %p33 = scmp.lt.s32.totalorder %s32, 7
  %s34 = scalar_select %p33, %s32, 7
  %s35 = smul.addr %s34, 3
  %s36 = scalar_lea.vmem %s1, %s35
  %s37 = ssub.s32 0, 0
  %s38 = smul.u32 8, %s37
  %p39 = scmp.lt.s32.totalorder %s38, 7
  %s40 = scalar_select %p39, %s38, 7
  %s41 = smul.addr %s40, 2
  %s42 = scalar_lea.vmem %s6, %s41
  %s43 = ssub.s32 0, 0
  %s44 = smul.u32 8, %s43
  %p45 = scmp.lt.s32.totalorder %s44, 7
  %s46 = scalar_select %p45, %s44, 7
  %s47 = smul.addr %s46, 3
  %s48 = scalar_lea.vmem %s1, %s47
  %s49 = ssub.s32 0, 0
  %s50 = smul.u32 8, %s49
  %s51 = ssub.s32 0, 0
  %s52 = smul.u32 8, %s51
  %p53 = scmp.lt.s32.totalorder %s52, 7
  %s54 = scalar_select %p53, %s52, 7
  %s55 = smul.addr %s54, 2
  %s56 = scalar_lea.vmem %s6, %s55
  %s57 = ssub.s32 0, 0
  %s58 = smul.u32 8, %s57
  %p60 = scmp.eq.s32.totalorder 0, 0
  // Predicated region
  $region22: #{graph_encoder_forward.2} parent=0 // pred_check
    %p61 = pneg %p60
  $region23: #{graph_encoder_forward.2} parent=0 // pred_check_branch
    %63 = sbr.rel (%p61) target = $region25
  $region24: #{graph_encoder_forward.2} parent=0 // pred_region
    %v64 = vld [vmem:[%s2] sm:$0x3]
    %65 = vst [vmem:[#allocation2] sm:$0x3] %v64
    %s66 = scalar_lea.vmem %s2, 2
    %v67 = vld [vmem:[%s66] sm:$0x3]
    %68 = vst [vmem:[#allocation3] sm:$0x3] %v67
  $region25: #{graph_encoder_forward.2} parent=0 // pred_fallthru
    _
  %v69 = vld [vmem:[%s3] sm:$0xff]
  %v70 = vld [vmem:[%s3 + $0x8] sm:$0xf]
  %v71 = vld [vmem:[%s3 + $0xc] sm:$0xff]
  %v72 = vld [vmem:[%s3 + $0x14] sm:$0xf]
  %v73 = vld [vmem:[%s3 + $0x18] sm:$0xff]
  %v74 = vld [vmem:[%s3 + $0x20] sm:$0xf]
  %v75 = vld [vmem:[%s3 + $0x24] sm:$0xff]
  %v76 = vld [vmem:[%s3 + $0x2c] sm:$0xf]
  %v77 = vld [vmem:[%s3 + $0x30] sm:$0xff]
  %v78 = vld [vmem:[%s3 + $0x38] sm:$0xf]
  %v79 = vld [vmem:[%s3 + $0x3c] sm:$0xff]
  %v80 = vld [vmem:[%s3 + $0x44] sm:$0xf]
  %v81 = vld [vmem:[%s3 + $0x48] sm:$0xff]
  %v82 = vld [vmem:[%s3 + $0x50] sm:$0xf]
  %v83 = vld [vmem:[%s3 + $0x54] sm:$0xff]
  %v84 = vld [vmem:[%s3 + $0x5c] sm:$0xf]
  %v85 = vld [vmem:[%s3 + $0x60] sm:$0xff]
  %v86 = vld [vmem:[%s3 + $0x68] sm:$0xf]
  %v87 = vld [vmem:[%s3 + $0x6c] sm:$0xff]
  %v88 = vld [vmem:[%s3 + $0x74] sm:$0xf]
  %v89 = vld [vmem:[%s3 + $0x78] sm:$0xff]
  %v90 = vld [vmem:[%s3 + $0x80] sm:$0xf]
  %v91 = vld [vmem:[%s3 + $0x84] sm:$0xff]
  %v92 = vld [vmem:[%s3 + $0x8c] sm:$0xf]
  %v93 = vld [vmem:[%s3 + $0x90] sm:$0xff]
  %v94 = vld [vmem:[%s3 + $0x98] sm:$0xf]
  %v95 = vld [vmem:[%s3 + $0x9c] sm:$0xff]
  %v96 = vld [vmem:[%s3 + $0xa4] sm:$0xf]
  %v97 = vld [vmem:[%s3 + $0xa8] sm:$0xff]
  %v98 = vld [vmem:[%s3 + $0xb0] sm:$0xf]
  %v99 = vld [vmem:[%s3 + $0xb4] sm:$0xff]
  %v100 = vld [vmem:[%s3 + $0xbc] sm:$0xf]
  %s101 = scalar_lea.vmem %s3, 192
  %v102 = vld [vmem:[%s101] sm:$0xff]
  %v103 = vld [vmem:[%s101 + $0x8] sm:$0xf]
  %v104 = vld [vmem:[%s101 + $0xc] sm:$0xff]
  %v105 = vld [vmem:[%s101 + $0x14] sm:$0xf]
  %v106 = vld [vmem:[%s101 + $0x18] sm:$0xff]
  %v107 = vld [vmem:[%s101 + $0x20] sm:$0xf]
  %v108 = vld [vmem:[%s101 + $0x24] sm:$0xff]
  %v109 = vld [vmem:[%s101 + $0x2c] sm:$0xf]
  %v110 = vld [vmem:[%s101 + $0x30] sm:$0xff]
  %v111 = vld [vmem:[%s101 + $0x38] sm:$0xf]
  %v112 = vld [vmem:[%s101 + $0x3c] sm:$0xff]
  %v113 = vld [vmem:[%s101 + $0x44] sm:$0xf]
  %v114 = vld [vmem:[%s101 + $0x48] sm:$0xff]
  %v115 = vld [vmem:[%s101 + $0x50] sm:$0xf]
  %v116 = vld [vmem:[%s101 + $0x54] sm:$0xff]
  %v117 = vld [vmem:[%s101 + $0x5c] sm:$0xf]
  %v118 = vld [vmem:[%s101 + $0x60] sm:$0xff]
  %v119 = vld [vmem:[%s101 + $0x68] sm:$0xf]
  %v120 = vld [vmem:[%s101 + $0x6c] sm:$0xff]
  %v121 = vld [vmem:[%s101 + $0x74] sm:$0xf]
  %v122 = vld [vmem:[%s101 + $0x78] sm:$0xff]
  %v123 = vld [vmem:[%s101 + $0x80] sm:$0xf]
  %v124 = vld [vmem:[%s101 + $0x84] sm:$0xff]
  %v125 = vld [vmem:[%s101 + $0x8c] sm:$0xf]
  %v126 = vld [vmem:[%s101 + $0x90] sm:$0xff]
  %v127 = vld [vmem:[%s101 + $0x98] sm:$0xf]
  %v128 = vld [vmem:[%s101 + $0x9c] sm:$0xff]
  %v129 = vld [vmem:[%s101 + $0xa4] sm:$0xf]
  %v130 = vld [vmem:[%s101 + $0xa8] sm:$0xff]
  %v131 = vld [vmem:[%s101 + $0xb0] sm:$0xf]
  %v132 = vld [vmem:[%s101 + $0xb4] sm:$0xff]
  %v133 = vld [vmem:[%s101 + $0xbc] sm:$0xf]
  %v134 = vld [vmem:[%s4] sm:$0x7]
  %s135 = scalar_lea.vmem %s4, 3
  %v136 = vld [vmem:[%s135] sm:$0x7]
  %v137 = vld [vmem:[#allocation2] sm:$0x3]
  %v138 = vld [vmem:[#allocation3] sm:$0x3]
  %v139 = vld [vmem:[%s0] sm:$0x7]
  %v140 = vunpack.c.l.bf16 %v139
  %v141 = vpack.c.bf16 %v137, %v137
  %v143 = vlaneseq
  %v144 = vshrl.u32 %v143, 7
  %v145 = vsub.s32 0, %v144
  %v146 = vrot.slane %v134, %v145
  %v147 = vlaneseq
  %v148 = vshrl.u32 %v147, 7
  %v149 = vsub.s32 1, %v148
  %v150 = vrot.slane %v134, %v149
  %v151 = vlaneseq
  %v152 = vshrl.u32 %v151, 7
  %v153 = vsub.s32 2, %v152
  %v154 = vrot.slane %v134, %v153
  %v190 = vunpack.c.l.b16 %v69
  %v191 = vunpack.c.h.b16 %v69
  %v192 = vunpack.c.l.b16 %v70
  %v193 = vunpack.c.l.b16 %v71
  %v194 = vunpack.c.h.b16 %v71
  %v195 = vunpack.c.l.b16 %v72
  %v196 = vunpack.c.l.b16 %v73
  %v197 = vunpack.c.h.b16 %v73
  %v198 = vunpack.c.l.b16 %v74
  %v199 = vunpack.c.l.b16 %v75
  %v200 = vunpack.c.h.b16 %v75
  %v201 = vunpack.c.l.b16 %v76
  %v202 = vunpack.c.l.b16 %v77
  %v203 = vunpack.c.h.b16 %v77
  %v204 = vunpack.c.l.b16 %v78
  %v205 = vunpack.c.l.b16 %v79
  %v206 = vunpack.c.h.b16 %v79
  %v207 = vunpack.c.l.b16 %v80
  %v208 = vunpack.c.l.b16 %v81
  %v209 = vunpack.c.h.b16 %v81
  %v210 = vunpack.c.l.b16 %v82
  %v211 = vunpack.c.l.b16 %v83
  %v212 = vunpack.c.h.b16 %v83
  %v213 = vunpack.c.l.b16 %v84
  %v214 = vunpack.c.l.b16 %v85
  %v215 = vunpack.c.h.b16 %v85
  %v216 = vunpack.c.l.b16 %v86
  %v217 = vunpack.c.l.b16 %v87
  %v218 = vunpack.c.h.b16 %v87
  %v219 = vunpack.c.l.b16 %v88
  %v220 = vunpack.c.l.b16 %v89
  %v221 = vunpack.c.h.b16 %v89
  %v222 = vunpack.c.l.b16 %v90
  %v223 = vunpack.c.l.b16 %v91
  %v224 = vunpack.c.h.b16 %v91
  %v225 = vunpack.c.l.b16 %v92
  %v226 = vunpack.c.l.b16 %v93
  %v227 = vunpack.c.h.b16 %v93
  %v228 = vunpack.c.l.b16 %v94
  %v229 = vunpack.c.l.b16 %v95
  %v230 = vunpack.c.h.b16 %v95
  %v231 = vunpack.c.l.b16 %v96
  %v232 = vunpack.c.l.b16 %v97
  %v233 = vunpack.c.h.b16 %v97
  %v234 = vunpack.c.l.b16 %v98
  %v235 = vunpack.c.l.b16 %v99
  %v236 = vunpack.c.h.b16 %v99
  %v237 = vunpack.c.l.b16 %v100
  %v238 = vpack.c.b16 %v193, %v190
  %v239 = vpack.c.b16 %v194, %v191
  %v240 = vpack.c.b16 %v195, %v192
  %v241 = vpack.c.b16 %v199, %v196
  %v242 = vpack.c.b16 %v200, %v197
  %v243 = vpack.c.b16 %v201, %v198
  %v244 = vpack.c.b16 %v205, %v202
  %v245 = vpack.c.b16 %v206, %v203
  %v246 = vpack.c.b16 %v207, %v204
  %v247 = vpack.c.b16 %v211, %v208
  %v248 = vpack.c.b16 %v212, %v209
  %v249 = vpack.c.b16 %v213, %v210
  %v250 = vpack.c.b16 %v217, %v214
  %v251 = vpack.c.b16 %v218, %v215
  %v252 = vpack.c.b16 %v219, %v216
  %v253 = vpack.c.b16 %v223, %v220
  %v254 = vpack.c.b16 %v224, %v221
  %v255 = vpack.c.b16 %v225, %v222
  %v256 = vpack.c.b16 %v229, %v226
  %v257 = vpack.c.b16 %v230, %v227
  %v258 = vpack.c.b16 %v231, %v228
  %v259 = vpack.c.b16 %v235, %v232
  %v260 = vpack.c.b16 %v236, %v233
  %v261 = vpack.c.b16 %v237, %v234
  %286 = vmatprep.subr.bf16.mxu0 %v239
  %287 = vmatpush1.bf16.msra.mxu0 %v238
  %288 = vmatprep.subr.bf16.mxu0 %v242
  %289 = vmatpush1.bf16.msra.mxu0 %v241
  %290 = vmatprep.subr.bf16.mxu0 %v245
  %291 = vmatpush1.bf16.msra.mxu0 %v244
  %292 = vmatprep.subr.bf16.mxu0 %v248
  %293 = vmatpush1.bf16.msra.mxu0 %v247
  %294 = vmatprep.subr.bf16.mxu0 %v251
  %295 = vmatpush1.bf16.msra.mxu0 %v250
  %296 = vmatprep.subr.bf16.mxu0 %v254
  %297 = vmatpush1.bf16.msra.mxu0 %v253
  %298 = vmatprep.subr.bf16.mxu0 %v257
  %299 = vmatpush1.bf16.msra.mxu0 %v256
  %300 = vmatprep.subr.bf16.mxu0 %v260
  %301 = vmatpush1.bf16.msra.mxu0 %v259
  %302 = vmatprep.subr.bf16.mxu0 0
  %303 = vmatpush1.bf16.msra.mxu0 0
  %304 = vmatprep.subr.bf16.mxu0 0
  %305 = vmatpush1.bf16.msra.mxu0 0
  %306 = vmatprep.subr.bf16.mxu0 0
  %307 = vmatpush1.bf16.msra.mxu0 0
  %308 = vmatprep.subr.bf16.mxu0 0
  %309 = vmatpush1.bf16.msra.mxu0 0
  %310 = vmatprep.subr.bf16.mxu0 0
  %311 = vmatpush1.bf16.msra.mxu0 0
  %312 = vmatprep.subr.bf16.mxu0 0
  %313 = vmatpush1.bf16.msra.mxu0 0
  %314 = vmatprep.subr.bf16.mxu0 0
  %315 = vmatpush1.bf16.msra.mxu0 0
  %316 = vmatprep.subr.bf16.mxu0 0
  %317 = vmatpush1.bf16.msra.mxu0 0
  %318 = vmatprep.mubr.bf16.mxu0 0
  %319 = vmatmul.mubr.bf16.gmra.mrb[0].mxu0 %v141
  %v320 = vpop.f32.mrb[0].mxu0
  %v321 = vadd.f32 %v146, %v320
  %v322 = vpop.f32.mrb[0].mxu0
  %v323 = vadd.f32 %v150, %v322
  %v324 = vpop.f32.mrb[0].mxu0
  %v325 = vpop.f32.mrb[0].mxu0
  %326 = vdwg.mxu0
  %327 = vmatprep.subr.bf16.mxu0 0
  %328 = vmatpush1.bf16.msra.mxu0 %v240
  %329 = vmatprep.subr.bf16.mxu0 0
  %330 = vmatpush1.bf16.msra.mxu0 %v243
  %331 = vmatprep.subr.bf16.mxu0 0
  %332 = vmatpush1.bf16.msra.mxu0 %v246
  %333 = vmatprep.subr.bf16.mxu0 0
  %334 = vmatpush1.bf16.msra.mxu0 %v249
  %335 = vmatprep.subr.bf16.mxu0 0
  %336 = vmatpush1.bf16.msra.mxu0 %v252
  %337 = vmatprep.subr.bf16.mxu0 0
  %338 = vmatpush1.bf16.msra.mxu0 %v255
  %339 = vmatprep.subr.bf16.mxu0 0
  %340 = vmatpush1.bf16.msra.mxu0 %v258
  %341 = vmatprep.subr.bf16.mxu0 0
  %342 = vmatpush1.bf16.msra.mxu0 %v261
  %343 = vmatprep.subr.bf16.mxu0 0
  %344 = vmatpush1.bf16.msra.mxu0 0
  %345 = vmatprep.subr.bf16.mxu0 0
  %346 = vmatpush1.bf16.msra.mxu0 0
  %347 = vmatprep.subr.bf16.mxu0 0
  %348 = vmatpush1.bf16.msra.mxu0 0
  %349 = vmatprep.subr.bf16.mxu0 0
  %350 = vmatpush1.bf16.msra.mxu0 0
  %351 = vmatprep.subr.bf16.mxu0 0
  %352 = vmatpush1.bf16.msra.mxu0 0
  %353 = vmatprep.subr.bf16.mxu0 0
  %354 = vmatpush1.bf16.msra.mxu0 0
  %355 = vmatprep.subr.bf16.mxu0 0
  %356 = vmatpush1.bf16.msra.mxu0 0
  %357 = vmatprep.subr.bf16.mxu0 0
  %358 = vmatpush1.bf16.msra.mxu0 0
  %359 = vmatprep.mubr.bf16.mxu0 0
  %360 = vmatmul.mubr.bf16.gmra.mrb[0].mxu0 %v141
  %v361 = vpop.f32.mrb[0].mxu0
  %v362 = vadd.f32 %v154, %v361
  %v363 = vpop.f32.mrb[0].mxu0
  %v364 = vpop.f32.mrb[0].mxu0
  %v365 = vpop.f32.mrb[0].mxu0
  %366 = vdwg.mxu0
  %v367 = vadd.f32 %v140, %v321
  %v368 = vxor.u32 %v367, 2147483648
  %v369 = vmul.f32 %v368, 1.442695
  %v370 = vpow.pop %v369
  %v371 = vadd.f32 %v370, 1.0
  %v372 = vrcp.pop %v371
  %v373 = vmul.f32 1.0, %v372
  %v375 = vrot.slane %v140, 2
  %v377 = vadd.f32 %v375, %v323
  %v378 = vxor.u32 %v377, 2147483648
  %v379 = vmul.f32 %v378, 1.442695
  %v380 = vpow.pop %v379
  %v381 = vadd.f32 %v380, 1.0
  %v382 = vrcp.pop %v381
  %v383 = vmul.f32 1.0, %v382
  %v384 = vmul.f32 %v373, %v362
  %v385 = vrot.slane %v140, 4
  %v387 = vadd.f32 %v385, %v384
  %v388 = vtanh.pop %v387
  %v389 = vsub.f32 1.0, %v383
  %v390 = vmul.f32 %v389, %v388
  %v391 = vmul.f32 %v383, %v137
  %v392 = vadd.f32 %v390, %v391
  %393 = vst [vmem:[%s5] sm:$0x3] %v392
  %s394 = scalar_lea.vmem %s48, 21
  %v395 = vld [vmem:[%s394] sm:$0x7]
  %v396 = vunpack.c.l.bf16 %v395
  %v397 = vpack.c.bf16 %v138, %v138
  %v399 = vlaneseq
  %v400 = vshrl.u32 %v399, 7
  %v401 = vsub.s32 0, %v400
  %v402 = vrot.slane %v136, %v401
  %v403 = vlaneseq
  %v404 = vshrl.u32 %v403, 7
  %v405 = vsub.s32 1, %v404
  %v406 = vrot.slane %v136, %v405
  %v407 = vlaneseq
  %v408 = vshrl.u32 %v407, 7
  %v409 = vsub.s32 2, %v408
  %v410 = vrot.slane %v136, %v409
  %v446 = vunpack.c.l.b16 %v102
  %v447 = vunpack.c.h.b16 %v102
  %v448 = vunpack.c.l.b16 %v103
  %v449 = vunpack.c.l.b16 %v104
  %v450 = vunpack.c.h.b16 %v104
  %v451 = vunpack.c.l.b16 %v105
  %v452 = vunpack.c.l.b16 %v106
  %v453 = vunpack.c.h.b16 %v106
  %v454 = vunpack.c.l.b16 %v107
  %v455 = vunpack.c.l.b16 %v108
  %v456 = vunpack.c.h.b16 %v108
  %v457 = vunpack.c.l.b16 %v109
  %v458 = vunpack.c.l.b16 %v110
  %v459 = vunpack.c.h.b16 %v110
  %v460 = vunpack.c.l.b16 %v111
  %v461 = vunpack.c.l.b16 %v112
  %v462 = vunpack.c.h.b16 %v112
  %v463 = vunpack.c.l.b16 %v113
  %v464 = vunpack.c.l.b16 %v114
  %v465 = vunpack.c.h.b16 %v114
  %v466 = vunpack.c.l.b16 %v115
  %v467 = vunpack.c.l.b16 %v116
  %v468 = vunpack.c.h.b16 %v116
  %v469 = vunpack.c.l.b16 %v117
  %v470 = vunpack.c.l.b16 %v118
  %v471 = vunpack.c.h.b16 %v118
  %v472 = vunpack.c.l.b16 %v119
  %v473 = vunpack.c.l.b16 %v120
  %v474 = vunpack.c.h.b16 %v120
  %v475 = vunpack.c.l.b16 %v121
  %v476 = vunpack.c.l.b16 %v122
  %v477 = vunpack.c.h.b16 %v122
  %v478 = vunpack.c.l.b16 %v123
  %v479 = vunpack.c.l.b16 %v124
  %v480 = vunpack.c.h.b16 %v124
  %v481 = vunpack.c.l.b16 %v125
  %v482 = vunpack.c.l.b16 %v126
  %v483 = vunpack.c.h.b16 %v126
  %v484 = vunpack.c.l.b16 %v127
  %v485 = vunpack.c.l.b16 %v128
  %v486 = vunpack.c.h.b16 %v128
  %v487 = vunpack.c.l.b16 %v129
  %v488 = vunpack.c.l.b16 %v130
  %v489 = vunpack.c.h.b16 %v130
  %v490 = vunpack.c.l.b16 %v131
  %v491 = vunpack.c.l.b16 %v132
  %v492 = vunpack.c.h.b16 %v132
  %v493 = vunpack.c.l.b16 %v133
  %v494 = vpack.c.b16 %v449, %v446
  %v495 = vpack.c.b16 %v450, %v447
  %v496 = vpack.c.b16 %v451, %v448
  %v497 = vpack.c.b16 %v455, %v452
  %v498 = vpack.c.b16 %v456, %v453
  %v499 = vpack.c.b16 %v457, %v454
  %v500 = vpack.c.b16 %v461, %v458
  %v501 = vpack.c.b16 %v462, %v459
  %v502 = vpack.c.b16 %v463, %v460
  %v503 = vpack.c.b16 %v467, %v464
  %v504 = vpack.c.b16 %v468, %v465
  %v505 = vpack.c.b16 %v469, %v466
  %v506 = vpack.c.b16 %v473, %v470
  %v507 = vpack.c.b16 %v474, %v471
  %v508 = vpack.c.b16 %v475, %v472
  %v509 = vpack.c.b16 %v479, %v476
  %v510 = vpack.c.b16 %v480, %v477
  %v511 = vpack.c.b16 %v481, %v478
  %v512 = vpack.c.b16 %v485, %v482
  %v513 = vpack.c.b16 %v486, %v483
  %v514 = vpack.c.b16 %v487, %v484
  %v515 = vpack.c.b16 %v491, %v488
  %v516 = vpack.c.b16 %v492, %v489
  %v517 = vpack.c.b16 %v493, %v490
  %542 = vmatprep.subr.bf16.mxu0 %v495
  %543 = vmatpush1.bf16.msra.mxu0 %v494
  %544 = vmatprep.subr.bf16.mxu0 %v498
  %545 = vmatpush1.bf16.msra.mxu0 %v497
  %546 = vmatprep.subr.bf16.mxu0 %v501
  %547 = vmatpush1.bf16.msra.mxu0 %v500
  %548 = vmatprep.subr.bf16.mxu0 %v504
  %549 = vmatpush1.bf16.msra.mxu0 %v503
  %550 = vmatprep.subr.bf16.mxu0 %v507
  %551 = vmatpush1.bf16.msra.mxu0 %v506
  %552 = vmatprep.subr.bf16.mxu0 %v510
  %553 = vmatpush1.bf16.msra.mxu0 %v509
  %554 = vmatprep.subr.bf16.mxu0 %v513
  %555 = vmatpush1.bf16.msra.mxu0 %v512
  %556 = vmatprep.subr.bf16.mxu0 %v516
  %557 = vmatpush1.bf16.msra.mxu0 %v515
  %558 = vmatprep.subr.bf16.mxu0 0
  %559 = vmatpush1.bf16.msra.mxu0 0
  %560 = vmatprep.subr.bf16.mxu0 0
  %561 = vmatpush1.bf16.msra.mxu0 0
  %562 = vmatprep.subr.bf16.mxu0 0
  %563 = vmatpush1.bf16.msra.mxu0 0
  %564 = vmatprep.subr.bf16.mxu0 0
  %565 = vmatpush1.bf16.msra.mxu0 0
  %566 = vmatprep.subr.bf16.mxu0 0
  %567 = vmatpush1.bf16.msra.mxu0 0
  %568 = vmatprep.subr.bf16.mxu0 0
  %569 = vmatpush1.bf16.msra.mxu0 0
  %570 = vmatprep.subr.bf16.mxu0 0
  %571 = vmatpush1.bf16.msra.mxu0 0
  %572 = vmatprep.subr.bf16.mxu0 0
  %573 = vmatpush1.bf16.msra.mxu0 0
  %574 = vmatprep.mubr.bf16.mxu0 0
  %575 = vmatmul.mubr.bf16.gmra.mrb[0].mxu0 %v397
  %v576 = vpop.f32.mrb[0].mxu0
  %v577 = vadd.f32 %v402, %v576
  %v578 = vpop.f32.mrb[0].mxu0
  %v579 = vadd.f32 %v406, %v578
  %v580 = vpop.f32.mrb[0].mxu0
  %v581 = vpop.f32.mrb[0].mxu0
  %582 = vdwg.mxu0
  %583 = vmatprep.subr.bf16.mxu0 0
  %584 = vmatpush1.bf16.msra.mxu0 %v496
  %585 = vmatprep.subr.bf16.mxu0 0
  %586 = vmatpush1.bf16.msra.mxu0 %v499
  %587 = vmatprep.subr.bf16.mxu0 0
  %588 = vmatpush1.bf16.msra.mxu0 %v502
  %589 = vmatprep.subr.bf16.mxu0 0
  %590 = vmatpush1.bf16.msra.mxu0 %v505
  %591 = vmatprep.subr.bf16.mxu0 0
  %592 = vmatpush1.bf16.msra.mxu0 %v508
  %593 = vmatprep.subr.bf16.mxu0 0
  %594 = vmatpush1.bf16.msra.mxu0 %v511
  %595 = vmatprep.subr.bf16.mxu0 0
  %596 = vmatpush1.bf16.msra.mxu0 %v514
  %597 = vmatprep.subr.bf16.mxu0 0
  %598 = vmatpush1.bf16.msra.mxu0 %v517
  %599 = vmatprep.subr.bf16.mxu0 0
  %600 = vmatpush1.bf16.msra.mxu0 0
  %601 = vmatprep.subr.bf16.mxu0 0
  %602 = vmatpush1.bf16.msra.mxu0 0
  %603 = vmatprep.subr.bf16.mxu0 0
  %604 = vmatpush1.bf16.msra.mxu0 0
  %605 = vmatprep.subr.bf16.mxu0 0
  %606 = vmatpush1.bf16.msra.mxu0 0
  %607 = vmatprep.subr.bf16.mxu0 0
  %608 = vmatpush1.bf16.msra.mxu0 0
  %609 = vmatprep.subr.bf16.mxu0 0
  %610 = vmatpush1.bf16.msra.mxu0 0
  %611 = vmatprep.subr.bf16.mxu0 0
  %612 = vmatpush1.bf16.msra.mxu0 0
  %613 = vmatprep.subr.bf16.mxu0 0
  %614 = vmatpush1.bf16.msra.mxu0 0
  %615 = vmatprep.mubr.bf16.mxu0 0
  %616 = vmatmul.mubr.bf16.gmra.mrb[0].mxu0 %v397
  %v617 = vpop.f32.mrb[0].mxu0
  %v618 = vadd.f32 %v410, %v617
  %v619 = vpop.f32.mrb[0].mxu0
  %v620 = vpop.f32.mrb[0].mxu0
  %v621 = vpop.f32.mrb[0].mxu0
  %622 = vdwg.mxu0
  %v623 = vadd.f32 %v396, %v577
  %v624 = vxor.u32 %v623, 2147483648
  %v625 = vmul.f32 %v624, 1.442695
  %v626 = vpow.pop %v625
  %v627 = vadd.f32 %v626, 1.0
  %v628 = vrcp.pop %v627
  %v629 = vmul.f32 1.0, %v628
  %v631 = vrot.slane %v396, 2
  %v633 = vadd.f32 %v631, %v579
  %v634 = vxor.u32 %v633, 2147483648
  %v635 = vmul.f32 %v634, 1.442695
  %v636 = vpow.pop %v635
  %v637 = vadd.f32 %v636, 1.0
  %v638 = vrcp.pop %v637
  %v639 = vmul.f32 1.0, %v638
  %v640 = vmul.f32 %v629, %v618
  %v641 = vrot.slane %v396, 4
  %v643 = vadd.f32 %v641, %v640
  %v644 = vtanh.pop %v643
  %v645 = vsub.f32 1.0, %v639
  %v646 = vmul.f32 %v645, %v644
  %v647 = vmul.f32 %v639, %v138
  %v648 = vadd.f32 %v646, %v647
  %s649 = scalar_lea.vmem %s56, 14
  %650 = vst [vmem:[%s649] sm:$0x3] %v648
  %s651 = scalar_lea.vmem %s0, 3
  %v652 = vld [vmem:[%s651] sm:$0x7]
  %v653 = vunpack.c.l.bf16 %v652
  %v654 = vpack.c.bf16 %v392, %v392
  %655 = vmatprep.subr.bf16.mxu0 %v239
  %656 = vmatpush1.bf16.msra.mxu0 %v238
  %657 = vmatprep.subr.bf16.mxu0 %v242
  %658 = vmatpush1.bf16.msra.mxu0 %v241
  %659 = vmatprep.subr.bf16.mxu0 %v245
  %660 = vmatpush1.bf16.msra.mxu0 %v244
  %661 = vmatprep.subr.bf16.mxu0 %v248
  %662 = vmatpush1.bf16.msra.mxu0 %v247
  %663 = vmatprep.subr.bf16.mxu0 %v251
  %664 = vmatpush1.bf16.msra.mxu0 %v250
  %665 = vmatprep.subr.bf16.mxu0 %v254
  %666 = vmatpush1.bf16.msra.mxu0 %v253
  %667 = vmatprep.subr.bf16.mxu0 %v257
  %668 = vmatpush1.bf16.msra.mxu0 %v256
  %669 = vmatprep.subr.bf16.mxu0 %v260
  %670 = vmatpush1.bf16.msra.mxu0 %v259
  %671 = vmatprep.subr.bf16.mxu0 0
  %672 = vmatpush1.bf16.msra.mxu0 0
  %673 = vmatprep.subr.bf16.mxu0 0
  %674 = vmatpush1.bf16.msra.mxu0 0
  %675 = vmatprep.subr.bf16.mxu0 0
  %676 = vmatpush1.bf16.msra.mxu0 0
  %677 = vmatprep.subr.bf16.mxu0 0
  %678 = vmatpush1.bf16.msra.mxu0 0
  %679 = vmatprep.subr.bf16.mxu0 0
  %680 = vmatpush1.bf16.msra.mxu0 0
  %681 = vmatprep.subr.bf16.mxu0 0
  %682 = vmatpush1.bf16.msra.mxu0 0
  %683 = vmatprep.subr.bf16.mxu0 0
  %684 = vmatpush1.bf16.msra.mxu0 0
  %685 = vmatprep.subr.bf16.mxu0 0
  %686 = vmatpush1.bf16.msra.mxu0 0
  %687 = vmatprep.mubr.bf16.mxu0 0
  %688 = vmatmul.mubr.bf16.gmra.mrb[0].mxu0 %v654
  %v689 = vpop.f32.mrb[0].mxu0
  %v690 = vadd.f32 %v146, %v689
  %v691 = vpop.f32.mrb[0].mxu0
  %v692 = vadd.f32 %v150, %v691
  %v693 = vpop.f32.mrb[0].mxu0
  %v694 = vpop.f32.mrb[0].mxu0
  %695 = vdwg.mxu0
  %696 = vmatprep.subr.bf16.mxu0 0
  %697 = vmatpush1.bf16.msra.mxu0 %v240
  %698 = vmatprep.subr.bf16.mxu0 0
  %699 = vmatpush1.bf16.msra.mxu0 %v243
  %700 = vmatprep.subr.bf16.mxu0 0
  %701 = vmatpush1.bf16.msra.mxu0 %v246
  %702 = vmatprep.subr.bf16.mxu0 0
  %703 = vmatpush1.bf16.msra.mxu0 %v249
  %704 = vmatprep.subr.bf16.mxu0 0
  %705 = vmatpush1.bf16.msra.mxu0 %v252
  %706 = vmatprep.subr.bf16.mxu0 0
  %707 = vmatpush1.bf16.msra.mxu0 %v255
  %708 = vmatprep.subr.bf16.mxu0 0
  %709 = vmatpush1.bf16.msra.mxu0 %v258
  %710 = vmatprep.subr.bf16.mxu0 0
  %711 = vmatpush1.bf16.msra.mxu0 %v261
  %712 = vmatprep.subr.bf16.mxu0 0
  %713 = vmatpush1.bf16.msra.mxu0 0
  %714 = vmatprep.subr.bf16.mxu0 0
  %715 = vmatpush1.bf16.msra.mxu0 0
  %716 = vmatprep.subr.bf16.mxu0 0
  %717 = vmatpush1.bf16.msra.mxu0 0
  %718 = vmatprep.subr.bf16.mxu0 0
  %719 = vmatpush1.bf16.msra.mxu0 0
  %720 = vmatprep.subr.bf16.mxu0 0
  %721 = vmatpush1.bf16.msra.mxu0 0
  %722 = vmatprep.subr.bf16.mxu0 0
  %723 = vmatpush1.bf16.msra.mxu0 0
  %724 = vmatprep.subr.bf16.mxu0 0
  %725 = vmatpush1.bf16.msra.mxu0 0
  %726 = vmatprep.subr.bf16.mxu0 0
  %727 = vmatpush1.bf16.msra.mxu0 0
  %728 = vmatprep.mubr.bf16.mxu0 0
  %729 = vmatmul.mubr.bf16.gmra.mrb[0].mxu0 %v654
  %v730 = vpop.f32.mrb[0].mxu0
  %v731 = vadd.f32 %v154, %v730
  %v732 = vpop.f32.mrb[0].mxu0
  %v733 = vpop.f32.mrb[0].mxu0
  %v734 = vpop.f32.mrb[0].mxu0
  %735 = vdwg.mxu0
  %v736 = vadd.f32 %v653, %v690
  %v737 = vxor.u32 %v736, 2147483648
  %v738 = vmul.f32 %v737, 1.442695
  %v739 = vpow.pop %v738
  %v740 = vadd.f32 %v739, 1.0
  %v741 = vrcp.pop %v740
  %v742 = vmul.f32 1.0, %v741
  %v744 = vrot.slane %v653, 2
  %v746 = vadd.f32 %v744, %v692
  %v747 = vxor.u32 %v746, 2147483648
  %v748 = vmul.f32 %v747, 1.442695
  %v749 = vpow.pop %v748
  %v750 = vadd.f32 %v749, 1.0
  %v751 = vrcp.pop %v750
  %v752 = vmul.f32 1.0, %v751
  %v753 = vmul.f32 %v742, %v731
  %v754 = vrot.slane %v653, 4
  %v756 = vadd.f32 %v754, %v753
  %v757 = vtanh.pop %v756
  %v758 = vsub.f32 1.0, %v752
  %v759 = vmul.f32 %v758, %v757
  %v760 = vmul.f32 %v752, %v392
  %v761 = vadd.f32 %v759, %v760
  %s762 = scalar_lea.vmem %s5, 2
  %763 = vst [vmem:[%s762] sm:$0x3] %v761
  %s764 = scalar_lea.vmem %s48, 18
  %v765 = vld [vmem:[%s764] sm:$0x7]
  %v766 = vunpack.c.l.bf16 %v765
  %v767 = vpack.c.bf16 %v648, %v648
  %768 = vmatprep.subr.bf16.mxu0 %v495
  %769 = vmatpush1.bf16.msra.mxu0 %v494
  %770 = vmatprep.subr.bf16.mxu0 %v498
  %771 = vmatpush1.bf16.msra.mxu0 %v497
  %772 = vmatprep.subr.bf16.mxu0 %v501
  %773 = vmatpush1.bf16.msra.mxu0 %v500
  %774 = vmatprep.subr.bf16.mxu0 %v504
  %775 = vmatpush1.bf16.msra.mxu0 %v503
  %776 = vmatprep.subr.bf16.mxu0 %v507
  %777 = vmatpush1.bf16.msra.mxu0 %v506
  %778 = vmatprep.subr.bf16.mxu0 %v510
  %779 = vmatpush1.bf16.msra.mxu0 %v509
  %780 = vmatprep.subr.bf16.mxu0 %v513
  %781 = vmatpush1.bf16.msra.mxu0 %v512
  %782 = vmatprep.subr.bf16.mxu0 %v516
  %783 = vmatpush1.bf16.msra.mxu0 %v515
  %784 = vmatprep.subr.bf16.mxu0 0
  %785 = vmatpush1.bf16.msra.mxu0 0
  %786 = vmatprep.subr.bf16.mxu0 0
  %787 = vmatpush1.bf16.msra.mxu0 0
  %788 = vmatprep.subr.bf16.mxu0 0
  %789 = vmatpush1.bf16.msra.mxu0 0
  %790 = vmatprep.subr.bf16.mxu0 0
  %791 = vmatpush1.bf16.msra.mxu0 0
  %792 = vmatprep.subr.bf16.mxu0 0
  %793 = vmatpush1.bf16.msra.mxu0 0
  %794 = vmatprep.subr.bf16.mxu0 0
  %795 = vmatpush1.bf16.msra.mxu0 0
  %796 = vmatprep.subr.bf16.mxu0 0
  %797 = vmatpush1.bf16.msra.mxu0 0
  %798 = vmatprep.subr.bf16.mxu0 0
  %799 = vmatpush1.bf16.msra.mxu0 0
  %800 = vmatprep.mubr.bf16.mxu0 0
  %801 = vmatmul.mubr.bf16.gmra.mrb[0].mxu0 %v767
  %v802 = vpop.f32.mrb[0].mxu0
  %v803 = vadd.f32 %v402, %v802
  %v804 = vpop.f32.mrb[0].mxu0
  %v805 = vadd.f32 %v406, %v804
  %v806 = vpop.f32.mrb[0].mxu0
  %v807 = vpop.f32.mrb[0].mxu0
  %808 = vdwg.mxu0
  %809 = vmatprep.subr.bf16.mxu0 0
  %810 = vmatpush1.bf16.msra.mxu0 %v496
  %811 = vmatprep.subr.bf16.mxu0 0
  %812 = vmatpush1.bf16.msra.mxu0 %v499
  %813 = vmatprep.subr.bf16.mxu0 0
  %814 = vmatpush1.bf16.msra.mxu0 %v502
  %815 = vmatprep.subr.bf16.mxu0 0
  %816 = vmatpush1.bf16.msra.mxu0 %v505
  %817 = vmatprep.subr.bf16.mxu0 0
  %818 = vmatpush1.bf16.msra.mxu0 %v508
  %819 = vmatprep.subr.bf16.mxu0 0
  %820 = vmatpush1.bf16.msra.mxu0 %v511
  %821 = vmatprep.subr.bf16.mxu0 0
  %822 = vmatpush1.bf16.msra.mxu0 %v514
  %823 = vmatprep.subr.bf16.mxu0 0
  %824 = vmatpush1.bf16.msra.mxu0 %v517
  %825 = vmatprep.subr.bf16.mxu0 0
  %826 = vmatpush1.bf16.msra.mxu0 0
  %827 = vmatprep.subr.bf16.mxu0 0
  %828 = vmatpush1.bf16.msra.mxu0 0
  %829 = vmatprep.subr.bf16.mxu0 0
  %830 = vmatpush1.bf16.msra.mxu0 0
  %831 = vmatprep.subr.bf16.mxu0 0
  %832 = vmatpush1.bf16.msra.mxu0 0
  %833 = vmatprep.subr.bf16.mxu0 0
  %834 = vmatpush1.bf16.msra.mxu0 0
  %835 = vmatprep.subr.bf16.mxu0 0
  %836 = vmatpush1.bf16.msra.mxu0 0
  %837 = vmatprep.subr.bf16.mxu0 0
  %838 = vmatpush1.bf16.msra.mxu0 0
  %839 = vmatprep.subr.bf16.mxu0 0
  %840 = vmatpush1.bf16.msra.mxu0 0
  %841 = vmatprep.mubr.bf16.mxu0 0
  %842 = vmatmul.mubr.bf16.gmra.mrb[0].mxu0 %v767
  %v843 = vpop.f32.mrb[0].mxu0
  %v844 = vadd.f32 %v410, %v843
  %v845 = vpop.f32.mrb[0].mxu0
  %v846 = vpop.f32.mrb[0].mxu0
  %v847 = vpop.f32.mrb[0].mxu0
  %848 = vdwg.mxu0
  %v849 = vadd.f32 %v766, %v803
  %v850 = vxor.u32 %v849, 2147483648
  %v851 = vmul.f32 %v850, 1.442695
  %v852 = vpow.pop %v851
  %v853 = vadd.f32 %v852, 1.0
  %v854 = vrcp.pop %v853
  %v855 = vmul.f32 1.0, %v854
  %v857 = vrot.slane %v766, 2
  %v859 = vadd.f32 %v857, %v805
  %v860 = vxor.u32 %v859, 2147483648
  %v861 = vmul.f32 %v860, 1.442695
  %v862 = vpow.pop %v861
  %v863 = vadd.f32 %v862, 1.0
  %v864 = vrcp.pop %v863
  %v865 = vmul.f32 1.0, %v864
  %v866 = vmul.f32 %v855, %v844
  %v867 = vrot.slane %v766, 4
  %v869 = vadd.f32 %v867, %v866
  %v870 = vtanh.pop %v869
  %v871 = vsub.f32 1.0, %v865
  %v872 = vmul.f32 %v871, %v870
  %v873 = vmul.f32 %v865, %v648
  %v874 = vadd.f32 %v872, %v873
  %s875 = scalar_lea.vmem %s56, 12
  %876 = vst [vmem:[%s875] sm:$0x3] %v874
  %s877 = scalar_lea.vmem %s0, 6
  %v878 = vld [vmem:[%s877] sm:$0x7]
  %v879 = vunpack.c.l.bf16 %v878
  %v880 = vpack.c.bf16 %v761, %v761
  %881 = vmatprep.subr.bf16.mxu0 %v239
  %882 = vmatpush1.bf16.msra.mxu0 %v238
  %883 = vmatprep.subr.bf16.mxu0 %v242
  %884 = vmatpush1.bf16.msra.mxu0 %v241
  %885 = vmatprep.subr.bf16.mxu0 %v245
  %886 = vmatpush1.bf16.msra.mxu0 %v244
  %887 = vmatprep.subr.bf16.mxu0 %v248
  %888 = vmatpush1.bf16.msra.mxu0 %v247
  %889 = vmatprep.subr.bf16.mxu0 %v251
  %890 = vmatpush1.bf16.msra.mxu0 %v250
  %891 = vmatprep.subr.bf16.mxu0 %v254
  %892 = vmatpush1.bf16.msra.mxu0 %v253
  %893 = vmatprep.subr.bf16.mxu0 %v257
  %894 = vmatpush1.bf16.msra.mxu0 %v256
  %895 = vmatprep.subr.bf16.mxu0 %v260
  %896 = vmatpush1.bf16.msra.mxu0 %v259
  %897 = vmatprep.subr.bf16.mxu0 0
  %898 = vmatpush1.bf16.msra.mxu0 0
  %899 = vmatprep.subr.bf16.mxu0 0
  %900 = vmatpush1.bf16.msra.mxu0 0
  %901 = vmatprep.subr.bf16.mxu0 0
  %902 = vmatpush1.bf16.msra.mxu0 0
  %903 = vmatprep.subr.bf16.mxu0 0
  %904 = vmatpush1.bf16.msra.mxu0 0
  %905 = vmatprep.subr.bf16.mxu0 0
  %906 = vmatpush1.bf16.msra.mxu0 0
  %907 = vmatprep.subr.bf16.mxu0 0
  %908 = vmatpush1.bf16.msra.mxu0 0
  %909 = vmatprep.subr.bf16.mxu0 0
  %910 = vmatpush1.bf16.msra.mxu0 0
  %911 = vmatprep.subr.bf16.mxu0 0
  %912 = vmatpush1.bf16.msra.mxu0 0
  %913 = vmatprep.mubr.bf16.mxu0 0
  %914 = vmatmul.mubr.bf16.gmra.mrb[0].mxu0 %v880
  %v915 = vpop.f32.mrb[0].mxu0
  %v916 = vadd.f32 %v146, %v915
  %v917 = vpop.f32.mrb[0].mxu0
  %v918 = vadd.f32 %v150, %v917
  %v919 = vpop.f32.mrb[0].mxu0
  %v920 = vpop.f32.mrb[0].mxu0
  %921 = vdwg.mxu0
  %922 = vmatprep.subr.bf16.mxu0 0
  %923 = vmatpush1.bf16.msra.mxu0 %v240
  %924 = vmatprep.subr.bf16.mxu0 0
  %925 = vmatpush1.bf16.msra.mxu0 %v243
  %926 = vmatprep.subr.bf16.mxu0 0
  %927 = vmatpush1.bf16.msra.mxu0 %v246
  %928 = vmatprep.subr.bf16.mxu0 0
  %929 = vmatpush1.bf16.msra.mxu0 %v249
  %930 = vmatprep.subr.bf16.mxu0 0
  %931 = vmatpush1.bf16.msra.mxu0 %v252
  %932 = vmatprep.subr.bf16.mxu0 0
  %933 = vmatpush1.bf16.msra.mxu0 %v255
  %934 = vmatprep.subr.bf16.mxu0 0
  %935 = vmatpush1.bf16.msra.mxu0 %v258
  %936 = vmatprep.subr.bf16.mxu0 0
  %937 = vmatpush1.bf16.msra.mxu0 %v261
  %938 = vmatprep.subr.bf16.mxu0 0
  %939 = vmatpush1.bf16.msra.mxu0 0
  %940 = vmatprep.subr.bf16.mxu0 0
  %941 = vmatpush1.bf16.msra.mxu0 0
  %942 = vmatprep.subr.bf16.mxu0 0
  %943 = vmatpush1.bf16.msra.mxu0 0
  %944 = vmatprep.subr.bf16.mxu0 0
  %945 = vmatpush1.bf16.msra.mxu0 0
  %946 = vmatprep.subr.bf16.mxu0 0
  %947 = vmatpush1.bf16.msra.mxu0 0
  %948 = vmatprep.subr.bf16.mxu0 0
  %949 = vmatpush1.bf16.msra.mxu0 0
  %950 = vmatprep.subr.bf16.mxu0 0
  %951 = vmatpush1.bf16.msra.mxu0 0
  %952 = vmatprep.subr.bf16.mxu0 0
  %953 = vmatpush1.bf16.msra.mxu0 0
  %954 = vmatprep.mubr.bf16.mxu0 0
  %955 = vmatmul.mubr.bf16.gmra.mrb[0].mxu0 %v880
  %v956 = vpop.f32.mrb[0].mxu0
  %v957 = vadd.f32 %v154, %v956
  %v958 = vpop.f32.mrb[0].mxu0
  %v959 = vpop.f32.mrb[0].mxu0
  %v960 = vpop.f32.mrb[0].mxu0
  %961 = vdwg.mxu0
  %v962 = vadd.f32 %v879, %v916
  %v963 = vxor.u32 %v962, 2147483648
  %v964 = vmul.f32 %v963, 1.442695
  %v965 = vpow.pop %v964
  %v966 = vadd.f32 %v965, 1.0
  %v967 = vrcp.pop %v966
  %v968 = vmul.f32 1.0, %v967
  %v970 = vrot.slane %v879, 2
  %v972 = vadd.f32 %v970, %v918
  %v973 = vxor.u32 %v972, 2147483648
  %v974 = vmul.f32 %v973, 1.442695
  %v975 = vpow.pop %v974
  %v976 = vadd.f32 %v975, 1.0
  %v977 = vrcp.pop %v976
  %v978 = vmul.f32 1.0, %v977
  %v979 = vmul.f32 %v968, %v957
  %v980 = vrot.slane %v879, 4
  %v982 = vadd.f32 %v980, %v979
  %v983 = vtanh.pop %v982
  %v984 = vsub.f32 1.0, %v978
  %v985 = vmul.f32 %v984, %v983
  %v986 = vmul.f32 %v978, %v761
  %v987 = vadd.f32 %v985, %v986
  %s988 = scalar_lea.vmem %s5, 4
  %989 = vst [vmem:[%s988] sm:$0x3] %v987
  %s990 = scalar_lea.vmem %s48, 15
  %v991 = vld [vmem:[%s990] sm:$0x7]
  %v992 = vunpack.c.l.bf16 %v991
  %v993 = vpack.c.bf16 %v874, %v874
  %994 = vmatprep.subr.bf16.mxu0 %v495
  %995 = vmatpush1.bf16.msra.mxu0 %v494
  %996 = vmatprep.subr.bf16.mxu0 %v498
  %997 = vmatpush1.bf16.msra.mxu0 %v497
  %998 = vmatprep.subr.bf16.mxu0 %v501
  %999 = vmatpush1.bf16.msra.mxu0 %v500
  %1000 = vmatprep.subr.bf16.mxu0 %v504
  %1001 = vmatpush1.bf16.msra.mxu0 %v503
  %1002 = vmatprep.subr.bf16.mxu0 %v507
  %1003 = vmatpush1.bf16.msra.mxu0 %v506
  %1004 = vmatprep.subr.bf16.mxu0 %v510
  %1005 = vmatpush1.bf16.msra.mxu0 %v509
  %1006 = vmatprep.subr.bf16.mxu0 %v513
  %1007 = vmatpush1.bf16.msra.mxu0 %v512
  %1008 = vmatprep.subr.bf16.mxu0 %v516
  %1009 = vmatpush1.bf16.msra.mxu0 %v515
  %1010 = vmatprep.subr.bf16.mxu0 0
  %1011 = vmatpush1.bf16.msra.mxu0 0
  %1012 = vmatprep.subr.bf16.mxu0 0
  %1013 = vmatpush1.bf16.msra.mxu0 0
  %1014 = vmatprep.subr.bf16.mxu0 0
  %1015 = vmatpush1.bf16.msra.mxu0 0
  %1016 = vmatprep.subr.bf16.mxu0 0
  %1017 = vmatpush1.bf16.msra.mxu0 0
  %1018 = vmatprep.subr.bf16.mxu0 0
  %1019 = vmatpush1.bf16.msra.mxu0 0
  %1020 = vmatprep.subr.bf16.mxu0 0
  %1021 = vmatpush1.bf16.msra.mxu0 0
  %1022 = vmatprep.subr.bf16.mxu0 0
  %1023 = vmatpush1.bf16.msra.mxu0 0
  %1024 = vmatprep.subr.bf16.mxu0 0
  %1025 = vmatpush1.bf16.msra.mxu0 0
  %1026 = vmatprep.mubr.bf16.mxu0 0
  %1027 = vmatmul.mubr.bf16.gmra.mrb[0].mxu0 %v993
  %v1028 = vpop.f32.mrb[0].mxu0
  %v1029 = vadd.f32 %v402, %v1028
  %v1030 = vpop.f32.mrb[0].mxu0
  %v1031 = vadd.f32 %v406, %v1030
  %v1032 = vpop.f32.mrb[0].mxu0
  %v1033 = vpop.f32.mrb[0].mxu0
  %1034 = vdwg.mxu0
  %1035 = vmatprep.subr.bf16.mxu0 0
  %1036 = vmatpush1.bf16.msra.mxu0 %v496
  %1037 = vmatprep.subr.bf16.mxu0 0
  %1038 = vmatpush1.bf16.msra.mxu0 %v499
  %1039 = vmatprep.subr.bf16.mxu0 0
  %1040 = vmatpush1.bf16.msra.mxu0 %v502
  %1041 = vmatprep.subr.bf16.mxu0 0
  %1042 = vmatpush1.bf16.msra.mxu0 %v505
  %1043 = vmatprep.subr.bf16.mxu0 0
  %1044 = vmatpush1.bf16.msra.mxu0 %v508
  %1045 = vmatprep.subr.bf16.mxu0 0
  %1046 = vmatpush1.bf16.msra.mxu0 %v511
  %1047 = vmatprep.subr.bf16.mxu0 0
  %1048 = vmatpush1.bf16.msra.mxu0 %v514
  %1049 = vmatprep.subr.bf16.mxu0 0
  %1050 = vmatpush1.bf16.msra.mxu0 %v517
  %1051 = vmatprep.subr.bf16.mxu0 0
  %1052 = vmatpush1.bf16.msra.mxu0 0
  %1053 = vmatprep.subr.bf16.mxu0 0
  %1054 = vmatpush1.bf16.msra.mxu0 0
  %1055 = vmatprep.subr.bf16.mxu0 0
  %1056 = vmatpush1.bf16.msra.mxu0 0
  %1057 = vmatprep.subr.bf16.mxu0 0
  %1058 = vmatpush1.bf16.msra.mxu0 0
  %1059 = vmatprep.subr.bf16.mxu0 0
  %1060 = vmatpush1.bf16.msra.mxu0 0
  %1061 = vmatprep.subr.bf16.mxu0 0
  %1062 = vmatpush1.bf16.msra.mxu0 0
  %1063 = vmatprep.subr.bf16.mxu0 0
  %1064 = vmatpush1.bf16.msra.mxu0 0
  %1065 = vmatprep.subr.bf16.mxu0 0
  %1066 = vmatpush1.bf16.msra.mxu0 0
  %1067 = vmatprep.mubr.bf16.mxu0 0
  %1068 = vmatmul.mubr.bf16.gmra.mrb[0].mxu0 %v993
  %v1069 = vpop.f32.mrb[0].mxu0
  %v1070 = vadd.f32 %v410, %v1069
  %v1071 = vpop.f32.mrb[0].mxu0
  %v1072 = vpop.f32.mrb[0].mxu0
  %v1073 = vpop.f32.mrb[0].mxu0
  %1074 = vdwg.mxu0
  %v1075 = vadd.f32 %v992, %v1029
  %v1076 = vxor.u32 %v1075, 2147483648
  %v1077 = vmul.f32 %v1076, 1.442695
  %v1078 = vpow.pop %v1077
  %v1079 = vadd.f32 %v1078, 1.0
  %v1080 = vrcp.pop %v1079
  %v1081 = vmul.f32 1.0, %v1080
  %v1083 = vrot.slane %v992, 2
  %v1085 = vadd.f32 %v1083, %v1031
  %v1086 = vxor.u32 %v1085, 2147483648
  %v1087 = vmul.f32 %v1086, 1.442695
  %v1088 = vpow.pop %v1087
  %v1089 = vadd.f32 %v1088, 1.0
  %v1090 = vrcp.pop %v1089
  %v1091 = vmul.f32 1.0, %v1090
  %v1092 = vmul.f32 %v1081, %v1070
  %v1093 = vrot.slane %v992, 4
  %v1095 = vadd.f32 %v1093, %v1092
  %v1096 = vtanh.pop %v1095
  %v1097 = vsub.f32 1.0, %v1091
  %v1098 = vmul.f32 %v1097, %v1096
  %v1099 = vmul.f32 %v1091, %v874
  %v1100 = vadd.f32 %v1098, %v1099
  %s1101 = scalar_lea.vmem %s56, 10
  %1102 = vst [vmem:[%s1101] sm:$0x3] %v1100
  %s1103 = scalar_lea.vmem %s0, 9
  %v1104 = vld [vmem:[%s1103] sm:$0x7]
  %v1105 = vunpack.c.l.bf16 %v1104
  %v1106 = vpack.c.bf16 %v987, %v987
  %1107 = vmatprep.subr.bf16.mxu0 %v239
  %1108 = vmatpush1.bf16.msra.mxu0 %v238
  %1109 = vmatprep.subr.bf16.mxu0 %v242
  %1110 = vmatpush1.bf16.msra.mxu0 %v241
  %1111 = vmatprep.subr.bf16.mxu0 %v245
  %1112 = vmatpush1.bf16.msra.mxu0 %v244
  %1113 = vmatprep.subr.bf16.mxu0 %v248
  %1114 = vmatpush1.bf16.msra.mxu0 %v247
  %1115 = vmatprep.subr.bf16.mxu0 %v251
  %1116 = vmatpush1.bf16.msra.mxu0 %v250
  %1117 = vmatprep.subr.bf16.mxu0 %v254
  %1118 = vmatpush1.bf16.msra.mxu0 %v253
  %1119 = vmatprep.subr.bf16.mxu0 %v257
  %1120 = vmatpush1.bf16.msra.mxu0 %v256
  %1121 = vmatprep.subr.bf16.mxu0 %v260
  %1122 = vmatpush1.bf16.msra.mxu0 %v259
  %1123 = vmatprep.subr.bf16.mxu0 0
  %1124 = vmatpush1.bf16.msra.mxu0 0
  %1125 = vmatprep.subr.bf16.mxu0 0
  %1126 = vmatpush1.bf16.msra.mxu0 0
  %1127 = vmatprep.subr.bf16.mxu0 0
  %1128 = vmatpush1.bf16.msra.mxu0 0
  %1129 = vmatprep.subr.bf16.mxu0 0
  %1130 = vmatpush1.bf16.msra.mxu0 0
  %1131 = vmatprep.subr.bf16.mxu0 0
  %1132 = vmatpush1.bf16.msra.mxu0 0
  %1133 = vmatprep.subr.bf16.mxu0 0
  %1134 = vmatpush1.bf16.msra.mxu0 0
  %1135 = vmatprep.subr.bf16.mxu0 0
  %1136 = vmatpush1.bf16.msra.mxu0 0
  %1137 = vmatprep.subr.bf16.mxu0 0
  %1138 = vmatpush1.bf16.msra.mxu0 0
  %1139 = vmatprep.mubr.bf16.mxu0 0
  %1140 = vmatmul.mubr.bf16.gmra.mrb[0].mxu0 %v1106
  %v1141 = vpop.f32.mrb[0].mxu0
  %v1142 = vadd.f32 %v146, %v1141
  %v1143 = vpop.f32.mrb[0].mxu0
  %v1144 = vadd.f32 %v150, %v1143
  %v1145 = vpop.f32.mrb[0].mxu0
  %v1146 = vpop.f32.mrb[0].mxu0
  %1147 = vdwg.mxu0
  %1148 = vmatprep.subr.bf16.mxu0 0
  %1149 = vmatpush1.bf16.msra.mxu0 %v240
  %1150 = vmatprep.subr.bf16.mxu0 0
  %1151 = vmatpush1.bf16.msra.mxu0 %v243
  %1152 = vmatprep.subr.bf16.mxu0 0
  %1153 = vmatpush1.bf16.msra.mxu0 %v246
  %1154 = vmatprep.subr.bf16.mxu0 0
  %1155 = vmatpush1.bf16.msra.mxu0 %v249
  %1156 = vmatprep.subr.bf16.mxu0 0
  %1157 = vmatpush1.bf16.msra.mxu0 %v252
  %1158 = vmatprep.subr.bf16.mxu0 0
  %1159 = vmatpush1.bf16.msra.mxu0 %v255
  %1160 = vmatprep.subr.bf16.mxu0 0
  %1161 = vmatpush1.bf16.msra.mxu0 %v258
  %1162 = vmatprep.subr.bf16.mxu0 0
  %1163 = vmatpush1.bf16.msra.mxu0 %v261
  %1164 = vmatprep.subr.bf16.mxu0 0
  %1165 = vmatpush1.bf16.msra.mxu0 0
  %1166 = vmatprep.subr.bf16.mxu0 0
  %1167 = vmatpush1.bf16.msra.mxu0 0
  %1168 = vmatprep.subr.bf16.mxu0 0
  %1169 = vmatpush1.bf16.msra.mxu0 0
  %1170 = vmatprep.subr.bf16.mxu0 0
  %1171 = vmatpush1.bf16.msra.mxu0 0
  %1172 = vmatprep.subr.bf16.mxu0 0
  %1173 = vmatpush1.bf16.msra.mxu0 0
  %1174 = vmatprep.subr.bf16.mxu0 0
  %1175 = vmatpush1.bf16.msra.mxu0 0
  %1176 = vmatprep.subr.bf16.mxu0 0
  %1177 = vmatpush1.bf16.msra.mxu0 0
  %1178 = vmatprep.subr.bf16.mxu0 0
  %1179 = vmatpush1.bf16.msra.mxu0 0
  %1180 = vmatprep.mubr.bf16.mxu0 0
  %1181 = vmatmul.mubr.bf16.gmra.mrb[0].mxu0 %v1106
  %v1182 = vpop.f32.mrb[0].mxu0
  %v1183 = vadd.f32 %v154, %v1182
  %v1184 = vpop.f32.mrb[0].mxu0
  %v1185 = vpop.f32.mrb[0].mxu0
  %v1186 = vpop.f32.mrb[0].mxu0
  %1187 = vdwg.mxu0
  %v1188 = vadd.f32 %v1105, %v1142
  %v1189 = vxor.u32 %v1188, 2147483648
  %v1190 = vmul.f32 %v1189, 1.442695
  %v1191 = vpow.pop %v1190
  %v1192 = vadd.f32 %v1191, 1.0
  %v1193 = vrcp.pop %v1192
  %v1194 = vmul.f32 1.0, %v1193
  %v1196 = vrot.slane %v1105, 2
  %v1198 = vadd.f32 %v1196, %v1144
  %v1199 = vxor.u32 %v1198, 2147483648
  %v1200 = vmul.f32 %v1199, 1.442695
  %v1201 = vpow.pop %v1200
  %v1202 = vadd.f32 %v1201, 1.0
  %v1203 = vrcp.pop %v1202
  %v1204 = vmul.f32 1.0, %v1203
  %v1205 = vmul.f32 %v1194, %v1183
  %v1206 = vrot.slane %v1105, 4
  %v1208 = vadd.f32 %v1206, %v1205
  %v1209 = vtanh.pop %v1208
  %v1210 = vsub.f32 1.0, %v1204
  %v1211 = vmul.f32 %v1210, %v1209
  %v1212 = vmul.f32 %v1204, %v987
  %v1213 = vadd.f32 %v1211, %v1212
  %s1214 = scalar_lea.vmem %s5, 6
  %1215 = vst [vmem:[%s1214] sm:$0x3] %v1213
  %s1216 = scalar_lea.vmem %s48, 12
  %v1217 = vld [vmem:[%s1216] sm:$0x7]
  %v1218 = vunpack.c.l.bf16 %v1217
  %v1219 = vpack.c.bf16 %v1100, %v1100
  %1220 = vmatprep.subr.bf16.mxu0 %v495
  %1221 = vmatpush1.bf16.msra.mxu0 %v494
  %1222 = vmatprep.subr.bf16.mxu0 %v498
  %1223 = vmatpush1.bf16.msra.mxu0 %v497
  %1224 = vmatprep.subr.bf16.mxu0 %v501
  %1225 = vmatpush1.bf16.msra.mxu0 %v500
  %1226 = vmatprep.subr.bf16.mxu0 %v504
  %1227 = vmatpush1.bf16.msra.mxu0 %v503
  %1228 = vmatprep.subr.bf16.mxu0 %v507
  %1229 = vmatpush1.bf16.msra.mxu0 %v506
  %1230 = vmatprep.subr.bf16.mxu0 %v510
  %1231 = vmatpush1.bf16.msra.mxu0 %v509
  %1232 = vmatprep.subr.bf16.mxu0 %v513
  %1233 = vmatpush1.bf16.msra.mxu0 %v512
  %1234 = vmatprep.subr.bf16.mxu0 %v516
  %1235 = vmatpush1.bf16.msra.mxu0 %v515
  %1236 = vmatprep.subr.bf16.mxu0 0
  %1237 = vmatpush1.bf16.msra.mxu0 0
  %1238 = vmatprep.subr.bf16.mxu0 0
  %1239 = vmatpush1.bf16.msra.mxu0 0
  %1240 = vmatprep.subr.bf16.mxu0 0
  %1241 = vmatpush1.bf16.msra.mxu0 0
  %1242 = vmatprep.subr.bf16.mxu0 0
  %1243 = vmatpush1.bf16.msra.mxu0 0
  %1244 = vmatprep.subr.bf16.mxu0 0
  %1245 = vmatpush1.bf16.msra.mxu0 0
  %1246 = vmatprep.subr.bf16.mxu0 0
  %1247 = vmatpush1.bf16.msra.mxu0 0
  %1248 = vmatprep.subr.bf16.mxu0 0
  %1249 = vmatpush1.bf16.msra.mxu0 0
  %1250 = vmatprep.subr.bf16.mxu0 0
  %1251 = vmatpush1.bf16.msra.mxu0 0
  %1252 = vmatprep.mubr.bf16.mxu0 0
  %1253 = vmatmul.mubr.bf16.gmra.mrb[0].mxu0 %v1219
  %v1254 = vpop.f32.mrb[0].mxu0
  %v1255 = vadd.f32 %v402, %v1254
  %v1256 = vpop.f32.mrb[0].mxu0
  %v1257 = vadd.f32 %v406, %v1256
  %v1258 = vpop.f32.mrb[0].mxu0
  %v1259 = vpop.f32.mrb[0].mxu0
  %1260 = vdwg.mxu0
  %1261 = vmatprep.subr.bf16.mxu0 0
  %1262 = vmatpush1.bf16.msra.mxu0 %v496
  %1263 = vmatprep.subr.bf16.mxu0 0
  %1264 = vmatpush1.bf16.msra.mxu0 %v499
  %1265 = vmatprep.subr.bf16.mxu0 0
  %1266 = vmatpush1.bf16.msra.mxu0 %v502
  %1267 = vmatprep.subr.bf16.mxu0 0
  %1268 = vmatpush1.bf16.msra.mxu0 %v505
  %1269 = vmatprep.subr.bf16.mxu0 0
  %1270 = vmatpush1.bf16.msra.mxu0 %v508
  %1271 = vmatprep.subr.bf16.mxu0 0
  %1272 = vmatpush1.bf16.msra.mxu0 %v511
  %1273 = vmatprep.subr.bf16.mxu0 0
  %1274 = vmatpush1.bf16.msra.mxu0 %v514
  %1275 = vmatprep.subr.bf16.mxu0 0
  %1276 = vmatpush1.bf16.msra.mxu0 %v517
  %1277 = vmatprep.subr.bf16.mxu0 0
  %1278 = vmatpush1.bf16.msra.mxu0 0
  %1279 = vmatprep.subr.bf16.mxu0 0
  %1280 = vmatpush1.bf16.msra.mxu0 0
  %1281 = vmatprep.subr.bf16.mxu0 0
  %1282 = vmatpush1.bf16.msra.mxu0 0
  %1283 = vmatprep.subr.bf16.mxu0 0
  %1284 = vmatpush1.bf16.msra.mxu0 0
  %1285 = vmatprep.subr.bf16.mxu0 0
  %1286 = vmatpush1.bf16.msra.mxu0 0
  %1287 = vmatprep.subr.bf16.mxu0 0
  %1288 = vmatpush1.bf16.msra.mxu0 0
  %1289 = vmatprep.subr.bf16.mxu0 0
  %1290 = vmatpush1.bf16.msra.mxu0 0
  %1291 = vmatprep.subr.bf16.mxu0 0
  %1292 = vmatpush1.bf16.msra.mxu0 0
  %1293 = vmatprep.mubr.bf16.mxu0 0
  %1294 = vmatmul.mubr.bf16.gmra.mrb[0].mxu0 %v1219
  %v1295 = vpop.f32.mrb[0].mxu0
  %v1296 = vadd.f32 %v410, %v1295
  %v1297 = vpop.f32.mrb[0].mxu0
  %v1298 = vpop.f32.mrb[0].mxu0
  %v1299 = vpop.f32.mrb[0].mxu0
  %1300 = vdwg.mxu0
  %v1301 = vadd.f32 %v1218, %v1255
  %v1302 = vxor.u32 %v1301, 2147483648
  %v1303 = vmul.f32 %v1302, 1.442695
  %v1304 = vpow.pop %v1303
  %v1305 = vadd.f32 %v1304, 1.0
  %v1306 = vrcp.pop %v1305
  %v1307 = vmul.f32 1.0, %v1306
  %v1309 = vrot.slane %v1218, 2
  %v1311 = vadd.f32 %v1309, %v1257
  %v1312 = vxor.u32 %v1311, 2147483648
  %v1313 = vmul.f32 %v1312, 1.442695
  %v1314 = vpow.pop %v1313
  %v1315 = vadd.f32 %v1314, 1.0
  %v1316 = vrcp.pop %v1315
  %v1317 = vmul.f32 1.0, %v1316
  %v1318 = vmul.f32 %v1307, %v1296
  %v1319 = vrot.slane %v1218, 4
  %v1321 = vadd.f32 %v1319, %v1318
  %v1322 = vtanh.pop %v1321
  %v1323 = vsub.f32 1.0, %v1317
  %v1324 = vmul.f32 %v1323, %v1322
  %v1325 = vmul.f32 %v1317, %v1100
  %v1326 = vadd.f32 %v1324, %v1325
  %s1327 = scalar_lea.vmem %s56, 8
  %1328 = vst [vmem:[%s1327] sm:$0x3] %v1326
  %s1329 = scalar_lea.vmem %s0, 12
  %v1330 = vld [vmem:[%s1329] sm:$0x7]
  %v1331 = vunpack.c.l.bf16 %v1330
  %v1332 = vpack.c.bf16 %v1213, %v1213
  %1333 = vmatprep.subr.bf16.mxu0 %v239
  %1334 = vmatpush1.bf16.msra.mxu0 %v238
  %1335 = vmatprep.subr.bf16.mxu0 %v242
  %1336 = vmatpush1.bf16.msra.mxu0 %v241
  %1337 = vmatprep.subr.bf16.mxu0 %v245
  %1338 = vmatpush1.bf16.msra.mxu0 %v244
  %1339 = vmatprep.subr.bf16.mxu0 %v248
  %1340 = vmatpush1.bf16.msra.mxu0 %v247
  %1341 = vmatprep.subr.bf16.mxu0 %v251
  %1342 = vmatpush1.bf16.msra.mxu0 %v250
  %1343 = vmatprep.subr.bf16.mxu0 %v254
  %1344 = vmatpush1.bf16.msra.mxu0 %v253
  %1345 = vmatprep.subr.bf16.mxu0 %v257
  %1346 = vmatpush1.bf16.msra.mxu0 %v256
  %1347 = vmatprep.subr.bf16.mxu0 %v260
  %1348 = vmatpush1.bf16.msra.mxu0 %v259
  %1349 = vmatprep.subr.bf16.mxu0 0
  %1350 = vmatpush1.bf16.msra.mxu0 0
  %1351 = vmatprep.subr.bf16.mxu0 0
  %1352 = vmatpush1.bf16.msra.mxu0 0
  %1353 = vmatprep.subr.bf16.mxu0 0
  %1354 = vmatpush1.bf16.msra.mxu0 0
  %1355 = vmatprep.subr.bf16.mxu0 0
  %1356 = vmatpush1.bf16.msra.mxu0 0
  %1357 = vmatprep.subr.bf16.mxu0 0
  %1358 = vmatpush1.bf16.msra.mxu0 0
  %1359 = vmatprep.subr.bf16.mxu0 0
  %1360 = vmatpush1.bf16.msra.mxu0 0
  %1361 = vmatprep.subr.bf16.mxu0 0
  %1362 = vmatpush1.bf16.msra.mxu0 0
  %1363 = vmatprep.subr.bf16.mxu0 0
  %1364 = vmatpush1.bf16.msra.mxu0 0
  %1365 = vmatprep.mubr.bf16.mxu0 0
  %1366 = vmatmul.mubr.bf16.gmra.mrb[0].mxu0 %v1332
  %v1367 = vpop.f32.mrb[0].mxu0
  %v1368 = vadd.f32 %v146, %v1367
  %v1369 = vpop.f32.mrb[0].mxu0
  %v1370 = vadd.f32 %v150, %v1369
  %v1371 = vpop.f32.mrb[0].mxu0
  %v1372 = vpop.f32.mrb[0].mxu0
  %1373 = vdwg.mxu0
  %1374 = vmatprep.subr.bf16.mxu0 0
  %1375 = vmatpush1.bf16.msra.mxu0 %v240
  %1376 = vmatprep.subr.bf16.mxu0 0
  %1377 = vmatpush1.bf16.msra.mxu0 %v243
  %1378 = vmatprep.subr.bf16.mxu0 0
  %1379 = vmatpush1.bf16.msra.mxu0 %v246
  %1380 = vmatprep.subr.bf16.mxu0 0
  %1381 = vmatpush1.bf16.msra.mxu0 %v249
  %1382 = vmatprep.subr.bf16.mxu0 0
  %1383 = vmatpush1.bf16.msra.mxu0 %v252
  %1384 = vmatprep.subr.bf16.mxu0 0
  %1385 = vmatpush1.bf16.msra.mxu0 %v255
  %1386 = vmatprep.subr.bf16.mxu0 0
  %1387 = vmatpush1.bf16.msra.mxu0 %v258
  %1388 = vmatprep.subr.bf16.mxu0 0
  %1389 = vmatpush1.bf16.msra.mxu0 %v261
  %1390 = vmatprep.subr.bf16.mxu0 0
  %1391 = vmatpush1.bf16.msra.mxu0 0
  %1392 = vmatprep.subr.bf16.mxu0 0
  %1393 = vmatpush1.bf16.msra.mxu0 0
  %1394 = vmatprep.subr.bf16.mxu0 0
  %1395 = vmatpush1.bf16.msra.mxu0 0
  %1396 = vmatprep.subr.bf16.mxu0 0
  %1397 = vmatpush1.bf16.msra.mxu0 0
  %1398 = vmatprep.subr.bf16.mxu0 0
  %1399 = vmatpush1.bf16.msra.mxu0 0
  %1400 = vmatprep.subr.bf16.mxu0 0
  %1401 = vmatpush1.bf16.msra.mxu0 0
  %1402 = vmatprep.subr.bf16.mxu0 0
  %1403 = vmatpush1.bf16.msra.mxu0 0
  %1404 = vmatprep.subr.bf16.mxu0 0
  %1405 = vmatpush1.bf16.msra.mxu0 0
  %1406 = vmatprep.mubr.bf16.mxu0 0
  %1407 = vmatmul.mubr.bf16.gmra.mrb[0].mxu0 %v1332
  %v1408 = vpop.f32.mrb[0].mxu0
  %v1409 = vadd.f32 %v154, %v1408
  %v1410 = vpop.f32.mrb[0].mxu0
  %v1411 = vpop.f32.mrb[0].mxu0
  %v1412 = vpop.f32.mrb[0].mxu0
  %1413 = vdwg.mxu0
  %v1414 = vadd.f32 %v1331, %v1368
  %v1415 = vxor.u32 %v1414, 2147483648
  %v1416 = vmul.f32 %v1415, 1.442695
  %v1417 = vpow.pop %v1416
  %v1418 = vadd.f32 %v1417, 1.0
  %v1419 = vrcp.pop %v1418
  %v1420 = vmul.f32 1.0, %v1419
  %v1422 = vrot.slane %v1331, 2
  %v1424 = vadd.f32 %v1422, %v1370
  %v1425 = vxor.u32 %v1424, 2147483648
  %v1426 = vmul.f32 %v1425, 1.442695
  %v1427 = vpow.pop %v1426
  %v1428 = vadd.f32 %v1427, 1.0
  %v1429 = vrcp.pop %v1428
  %v1430 = vmul.f32 1.0, %v1429
  %v1431 = vmul.f32 %v1420, %v1409
  %v1432 = vrot.slane %v1331, 4
  %v1434 = vadd.f32 %v1432, %v1431
  %v1435 = vtanh.pop %v1434
  %v1436 = vsub.f32 1.0, %v1430
  %v1437 = vmul.f32 %v1436, %v1435
  %v1438 = vmul.f32 %v1430, %v1213
  %v1439 = vadd.f32 %v1437, %v1438
  %s1440 = scalar_lea.vmem %s5, 8
  %1441 = vst [vmem:[%s1440] sm:$0x3] %v1439
  %s1442 = scalar_lea.vmem %s48, 9
  %v1443 = vld [vmem:[%s1442] sm:$0x7]
  %v1444 = vunpack.c.l.bf16 %v1443
  %v1445 = vpack.c.bf16 %v1326, %v1326
  %1446 = vmatprep.subr.bf16.mxu0 %v495
  %1447 = vmatpush1.bf16.msra.mxu0 %v494
  %1448 = vmatprep.subr.bf16.mxu0 %v498
  %1449 = vmatpush1.bf16.msra.mxu0 %v497
  %1450 = vmatprep.subr.bf16.mxu0 %v501
  %1451 = vmatpush1.bf16.msra.mxu0 %v500
  %1452 = vmatprep.subr.bf16.mxu0 %v504
  %1453 = vmatpush1.bf16.msra.mxu0 %v503
  %1454 = vmatprep.subr.bf16.mxu0 %v507
  %1455 = vmatpush1.bf16.msra.mxu0 %v506
  %1456 = vmatprep.subr.bf16.mxu0 %v510
  %1457 = vmatpush1.bf16.msra.mxu0 %v509
  %1458 = vmatprep.subr.bf16.mxu0 %v513
  %1459 = vmatpush1.bf16.msra.mxu0 %v512
  %1460 = vmatprep.subr.bf16.mxu0 %v516
  %1461 = vmatpush1.bf16.msra.mxu0 %v515
  %1462 = vmatprep.subr.bf16.mxu0 0
  %1463 = vmatpush1.bf16.msra.mxu0 0
  %1464 = vmatprep.subr.bf16.mxu0 0
  %1465 = vmatpush1.bf16.msra.mxu0 0
  %1466 = vmatprep.subr.bf16.mxu0 0
  %1467 = vmatpush1.bf16.msra.mxu0 0
  %1468 = vmatprep.subr.bf16.mxu0 0
  %1469 = vmatpush1.bf16.msra.mxu0 0
  %1470 = vmatprep.subr.bf16.mxu0 0
  %1471 = vmatpush1.bf16.msra.mxu0 0
  %1472 = vmatprep.subr.bf16.mxu0 0
  %1473 = vmatpush1.bf16.msra.mxu0 0
  %1474 = vmatprep.subr.bf16.mxu0 0
  %1475 = vmatpush1.bf16.msra.mxu0 0
  %1476 = vmatprep.subr.bf16.mxu0 0
  %1477 = vmatpush1.bf16.msra.mxu0 0
  %1478 = vmatprep.mubr.bf16.mxu0 0
  %1479 = vmatmul.mubr.bf16.gmra.mrb[0].mxu0 %v1445
  %v1480 = vpop.f32.mrb[0].mxu0
  %v1481 = vadd.f32 %v402, %v1480
  %v1482 = vpop.f32.mrb[0].mxu0
  %v1483 = vadd.f32 %v406, %v1482
  %v1484 = vpop.f32.mrb[0].mxu0
  %v1485 = vpop.f32.mrb[0].mxu0
  %1486 = vdwg.mxu0
  %1487 = vmatprep.subr.bf16.mxu0 0
  %1488 = vmatpush1.bf16.msra.mxu0 %v496
  %1489 = vmatprep.subr.bf16.mxu0 0
  %1490 = vmatpush1.bf16.msra.mxu0 %v499
  %1491 = vmatprep.subr.bf16.mxu0 0
  %1492 = vmatpush1.bf16.msra.mxu0 %v502
  %1493 = vmatprep.subr.bf16.mxu0 0
  %1494 = vmatpush1.bf16.msra.mxu0 %v505
  %1495 = vmatprep.subr.bf16.mxu0 0
  %1496 = vmatpush1.bf16.msra.mxu0 %v508
  %1497 = vmatprep.subr.bf16.mxu0 0
  %1498 = vmatpush1.bf16.msra.mxu0 %v511
  %1499 = vmatprep.subr.bf16.mxu0 0
  %1500 = vmatpush1.bf16.msra.mxu0 %v514
  %1501 = vmatprep.subr.bf16.mxu0 0
  %1502 = vmatpush1.bf16.msra.mxu0 %v517
  %1503 = vmatprep.subr.bf16.mxu0 0
  %1504 = vmatpush1.bf16.msra.mxu0 0
  %1505 = vmatprep.subr.bf16.mxu0 0
  %1506 = vmatpush1.bf16.msra.mxu0 0
  %1507 = vmatprep.subr.bf16.mxu0 0
  %1508 = vmatpush1.bf16.msra.mxu0 0
  %1509 = vmatprep.subr.bf16.mxu0 0
  %1510 = vmatpush1.bf16.msra.mxu0 0
  %1511 = vmatprep.subr.bf16.mxu0 0
  %1512 = vmatpush1.bf16.msra.mxu0 0
  %1513 = vmatprep.subr.bf16.mxu0 0
  %1514 = vmatpush1.bf16.msra.mxu0 0
  %1515 = vmatprep.subr.bf16.mxu0 0
  %1516 = vmatpush1.bf16.msra.mxu0 0
  %1517 = vmatprep.subr.bf16.mxu0 0
  %1518 = vmatpush1.bf16.msra.mxu0 0
  %1519 = vmatprep.mubr.bf16.mxu0 0
  %1520 = vmatmul.mubr.bf16.gmra.mrb[0].mxu0 %v1445
  %v1521 = vpop.f32.mrb[0].mxu0
  %v1522 = vadd.f32 %v410, %v1521
  %v1523 = vpop.f32.mrb[0].mxu0
  %v1524 = vpop.f32.mrb[0].mxu0
  %v1525 = vpop.f32.mrb[0].mxu0
  %1526 = vdwg.mxu0
  %v1527 = vadd.f32 %v1444, %v1481
  %v1528 = vxor.u32 %v1527, 2147483648
  %v1529 = vmul.f32 %v1528, 1.442695
  %v1530 = vpow.pop %v1529
  %v1531 = vadd.f32 %v1530, 1.0
  %v1532 = vrcp.pop %v1531
  %v1533 = vmul.f32 1.0, %v1532
  %v1535 = vrot.slane %v1444, 2
  %v1537 = vadd.f32 %v1535, %v1483
  %v1538 = vxor.u32 %v1537, 2147483648
  %v1539 = vmul.f32 %v1538, 1.442695
  %v1540 = vpow.pop %v1539
  %v1541 = vadd.f32 %v1540, 1.0
  %v1542 = vrcp.pop %v1541
  %v1543 = vmul.f32 1.0, %v1542
  %v1544 = vmul.f32 %v1533, %v1522
  %v1545 = vrot.slane %v1444, 4
  %v1547 = vadd.f32 %v1545, %v1544
  %v1548 = vtanh.pop %v1547
  %v1549 = vsub.f32 1.0, %v1543
  %v1550 = vmul.f32 %v1549, %v1548
  %v1551 = vmul.f32 %v1543, %v1326
  %v1552 = vadd.f32 %v1550, %v1551
  %s1553 = scalar_lea.vmem %s56, 6
  %1554 = vst [vmem:[%s1553] sm:$0x3] %v1552
  %s1555 = scalar_lea.vmem %s0, 15
  %v1556 = vld [vmem:[%s1555] sm:$0x7]
  %v1557 = vunpack.c.l.bf16 %v1556
  %v1558 = vpack.c.bf16 %v1439, %v1439
  %1559 = vmatprep.subr.bf16.mxu0 %v239
  %1560 = vmatpush1.bf16.msra.mxu0 %v238
  %1561 = vmatprep.subr.bf16.mxu0 %v242
  %1562 = vmatpush1.bf16.msra.mxu0 %v241
  %1563 = vmatprep.subr.bf16.mxu0 %v245
  %1564 = vmatpush1.bf16.msra.mxu0 %v244
  %1565 = vmatprep.subr.bf16.mxu0 %v248
  %1566 = vmatpush1.bf16.msra.mxu0 %v247
  %1567 = vmatprep.subr.bf16.mxu0 %v251
  %1568 = vmatpush1.bf16.msra.mxu0 %v250
  %1569 = vmatprep.subr.bf16.mxu0 %v254
  %1570 = vmatpush1.bf16.msra.mxu0 %v253
  %1571 = vmatprep.subr.bf16.mxu0 %v257
  %1572 = vmatpush1.bf16.msra.mxu0 %v256
  %1573 = vmatprep.subr.bf16.mxu0 %v260
  %1574 = vmatpush1.bf16.msra.mxu0 %v259
  %1575 = vmatprep.subr.bf16.mxu0 0
  %1576 = vmatpush1.bf16.msra.mxu0 0
  %1577 = vmatprep.subr.bf16.mxu0 0
  %1578 = vmatpush1.bf16.msra.mxu0 0
  %1579 = vmatprep.subr.bf16.mxu0 0
  %1580 = vmatpush1.bf16.msra.mxu0 0
  %1581 = vmatprep.subr.bf16.mxu0 0
  %1582 = vmatpush1.bf16.msra.mxu0 0
  %1583 = vmatprep.subr.bf16.mxu0 0
  %1584 = vmatpush1.bf16.msra.mxu0 0
  %1585 = vmatprep.subr.bf16.mxu0 0
  %1586 = vmatpush1.bf16.msra.mxu0 0
  %1587 = vmatprep.subr.bf16.mxu0 0
  %1588 = vmatpush1.bf16.msra.mxu0 0
  %1589 = vmatprep.subr.bf16.mxu0 0
  %1590 = vmatpush1.bf16.msra.mxu0 0
  %1591 = vmatprep.mubr.bf16.mxu0 0
  %1592 = vmatmul.mubr.bf16.gmra.mrb[0].mxu0 %v1558
  %v1593 = vpop.f32.mrb[0].mxu0
  %v1594 = vadd.f32 %v146, %v1593
  %v1595 = vpop.f32.mrb[0].mxu0
  %v1596 = vadd.f32 %v150, %v1595
  %v1597 = vpop.f32.mrb[0].mxu0
  %v1598 = vpop.f32.mrb[0].mxu0
  %1599 = vdwg.mxu0
  %1600 = vmatprep.subr.bf16.mxu0 0
  %1601 = vmatpush1.bf16.msra.mxu0 %v240
  %1602 = vmatprep.subr.bf16.mxu0 0
  %1603 = vmatpush1.bf16.msra.mxu0 %v243
  %1604 = vmatprep.subr.bf16.mxu0 0
  %1605 = vmatpush1.bf16.msra.mxu0 %v246
  %1606 = vmatprep.subr.bf16.mxu0 0
  %1607 = vmatpush1.bf16.msra.mxu0 %v249
  %1608 = vmatprep.subr.bf16.mxu0 0
  %1609 = vmatpush1.bf16.msra.mxu0 %v252
  %1610 = vmatprep.subr.bf16.mxu0 0
  %1611 = vmatpush1.bf16.msra.mxu0 %v255
  %1612 = vmatprep.subr.bf16.mxu0 0
  %1613 = vmatpush1.bf16.msra.mxu0 %v258
  %1614 = vmatprep.subr.bf16.mxu0 0
  %1615 = vmatpush1.bf16.msra.mxu0 %v261
  %1616 = vmatprep.subr.bf16.mxu0 0
  %1617 = vmatpush1.bf16.msra.mxu0 0
  %1618 = vmatprep.subr.bf16.mxu0 0
  %1619 = vmatpush1.bf16.msra.mxu0 0
  %1620 = vmatprep.subr.bf16.mxu0 0
  %1621 = vmatpush1.bf16.msra.mxu0 0
  %1622 = vmatprep.subr.bf16.mxu0 0
  %1623 = vmatpush1.bf16.msra.mxu0 0
  %1624 = vmatprep.subr.bf16.mxu0 0
  %1625 = vmatpush1.bf16.msra.mxu0 0
  %1626 = vmatprep.subr.bf16.mxu0 0
  %1627 = vmatpush1.bf16.msra.mxu0 0
  %1628 = vmatprep.subr.bf16.mxu0 0
  %1629 = vmatpush1.bf16.msra.mxu0 0
  %1630 = vmatprep.subr.bf16.mxu0 0
  %1631 = vmatpush1.bf16.msra.mxu0 0
  %1632 = vmatprep.mubr.bf16.mxu0 0
  %1633 = vmatmul.mubr.bf16.gmra.mrb[0].mxu0 %v1558
  %v1634 = vpop.f32.mrb[0].mxu0
  %v1635 = vadd.f32 %v154, %v1634
  %v1636 = vpop.f32.mrb[0].mxu0
  %v1637 = vpop.f32.mrb[0].mxu0
  %v1638 = vpop.f32.mrb[0].mxu0
  %1639 = vdwg.mxu0
  %v1640 = vadd.f32 %v1557, %v1594
  %v1641 = vxor.u32 %v1640, 2147483648
  %v1642 = vmul.f32 %v1641, 1.442695
  %v1643 = vpow.pop %v1642
  %v1644 = vadd.f32 %v1643, 1.0
  %v1645 = vrcp.pop %v1644
  %v1646 = vmul.f32 1.0, %v1645
  %v1648 = vrot.slane %v1557, 2
  %v1650 = vadd.f32 %v1648, %v1596
  %v1651 = vxor.u32 %v1650, 2147483648
  %v1652 = vmul.f32 %v1651, 1.442695
  %v1653 = vpow.pop %v1652
  %v1654 = vadd.f32 %v1653, 1.0
  %v1655 = vrcp.pop %v1654
  %v1656 = vmul.f32 1.0, %v1655
  %v1657 = vmul.f32 %v1646, %v1635
  %v1658 = vrot.slane %v1557, 4
  %v1660 = vadd.f32 %v1658, %v1657
  %v1661 = vtanh.pop %v1660
  %v1662 = vsub.f32 1.0, %v1656
  %v1663 = vmul.f32 %v1662, %v1661
  %v1664 = vmul.f32 %v1656, %v1439
  %v1665 = vadd.f32 %v1663, %v1664
  %s1666 = scalar_lea.vmem %s5, 10
  %1667 = vst [vmem:[%s1666] sm:$0x3] %v1665
  %s1668 = scalar_lea.vmem %s48, 6
  %v1669 = vld [vmem:[%s1668] sm:$0x7]
  %v1670 = vunpack.c.l.bf16 %v1669
  %v1671 = vpack.c.bf16 %v1552, %v1552
  %1672 = vmatprep.subr.bf16.mxu0 %v495
  %1673 = vmatpush1.bf16.msra.mxu0 %v494
  %1674 = vmatprep.subr.bf16.mxu0 %v498
  %1675 = vmatpush1.bf16.msra.mxu0 %v497
  %1676 = vmatprep.subr.bf16.mxu0 %v501
  %1677 = vmatpush1.bf16.msra.mxu0 %v500
  %1678 = vmatprep.subr.bf16.mxu0 %v504
  %1679 = vmatpush1.bf16.msra.mxu0 %v503
  %1680 = vmatprep.subr.bf16.mxu0 %v507
  %1681 = vmatpush1.bf16.msra.mxu0 %v506
  %1682 = vmatprep.subr.bf16.mxu0 %v510
  %1683 = vmatpush1.bf16.msra.mxu0 %v509
  %1684 = vmatprep.subr.bf16.mxu0 %v513
  %1685 = vmatpush1.bf16.msra.mxu0 %v512
  %1686 = vmatprep.subr.bf16.mxu0 %v516
  %1687 = vmatpush1.bf16.msra.mxu0 %v515
  %1688 = vmatprep.subr.bf16.mxu0 0
  %1689 = vmatpush1.bf16.msra.mxu0 0
  %1690 = vmatprep.subr.bf16.mxu0 0
  %1691 = vmatpush1.bf16.msra.mxu0 0
  %1692 = vmatprep.subr.bf16.mxu0 0
  %1693 = vmatpush1.bf16.msra.mxu0 0
  %1694 = vmatprep.subr.bf16.mxu0 0
  %1695 = vmatpush1.bf16.msra.mxu0 0
  %1696 = vmatprep.subr.bf16.mxu0 0
  %1697 = vmatpush1.bf16.msra.mxu0 0
  %1698 = vmatprep.subr.bf16.mxu0 0
  %1699 = vmatpush1.bf16.msra.mxu0 0
  %1700 = vmatprep.subr.bf16.mxu0 0
  %1701 = vmatpush1.bf16.msra.mxu0 0
  %1702 = vmatprep.subr.bf16.mxu0 0
  %1703 = vmatpush1.bf16.msra.mxu0 0
  %1704 = vmatprep.mubr.bf16.mxu0 0
  %1705 = vmatmul.mubr.bf16.gmra.mrb[0].mxu0 %v1671
  %v1706 = vpop.f32.mrb[0].mxu0
  %v1707 = vadd.f32 %v402, %v1706
  %v1708 = vpop.f32.mrb[0].mxu0
  %v1709 = vadd.f32 %v406, %v1708
  %v1710 = vpop.f32.mrb[0].mxu0
  %v1711 = vpop.f32.mrb[0].mxu0
  %1712 = vdwg.mxu0
  %1713 = vmatprep.subr.bf16.mxu0 0
  %1714 = vmatpush1.bf16.msra.mxu0 %v496
  %1715 = vmatprep.subr.bf16.mxu0 0
  %1716 = vmatpush1.bf16.msra.mxu0 %v499
  %1717 = vmatprep.subr.bf16.mxu0 0
  %1718 = vmatpush1.bf16.msra.mxu0 %v502
  %1719 = vmatprep.subr.bf16.mxu0 0
  %1720 = vmatpush1.bf16.msra.mxu0 %v505
  %1721 = vmatprep.subr.bf16.mxu0 0
  %1722 = vmatpush1.bf16.msra.mxu0 %v508
  %1723 = vmatprep.subr.bf16.mxu0 0
  %1724 = vmatpush1.bf16.msra.mxu0 %v511
  %1725 = vmatprep.subr.bf16.mxu0 0
  %1726 = vmatpush1.bf16.msra.mxu0 %v514
  %1727 = vmatprep.subr.bf16.mxu0 0
  %1728 = vmatpush1.bf16.msra.mxu0 %v517
  %1729 = vmatprep.subr.bf16.mxu0 0
  %1730 = vmatpush1.bf16.msra.mxu0 0
  %1731 = vmatprep.subr.bf16.mxu0 0
  %1732 = vmatpush1.bf16.msra.mxu0 0
  %1733 = vmatprep.subr.bf16.mxu0 0
  %1734 = vmatpush1.bf16.msra.mxu0 0
  %1735 = vmatprep.subr.bf16.mxu0 0
  %1736 = vmatpush1.bf16.msra.mxu0 0
  %1737 = vmatprep.subr.bf16.mxu0 0
  %1738 = vmatpush1.bf16.msra.mxu0 0
  %1739 = vmatprep.subr.bf16.mxu0 0
  %1740 = vmatpush1.bf16.msra.mxu0 0
  %1741 = vmatprep.subr.bf16.mxu0 0
  %1742 = vmatpush1.bf16.msra.mxu0 0
  %1743 = vmatprep.subr.bf16.mxu0 0
  %1744 = vmatpush1.bf16.msra.mxu0 0
  %1745 = vmatprep.mubr.bf16.mxu0 0
  %1746 = vmatmul.mubr.bf16.gmra.mrb[0].mxu0 %v1671
  %v1747 = vpop.f32.mrb[0].mxu0
  %v1748 = vadd.f32 %v410, %v1747
  %v1749 = vpop.f32.mrb[0].mxu0
  %v1750 = vpop.f32.mrb[0].mxu0
  %v1751 = vpop.f32.mrb[0].mxu0
  %1752 = vdwg.mxu0
  %v1753 = vadd.f32 %v1670, %v1707
  %v1754 = vxor.u32 %v1753, 2147483648
  %v1755 = vmul.f32 %v1754, 1.442695
  %v1756 = vpow.pop %v1755
  %v1757 = vadd.f32 %v1756, 1.0
  %v1758 = vrcp.pop %v1757
  %v1759 = vmul.f32 1.0, %v1758
  %v1761 = vrot.slane %v1670, 2
  %v1763 = vadd.f32 %v1761, %v1709
  %v1764 = vxor.u32 %v1763, 2147483648
  %v1765 = vmul.f32 %v1764, 1.442695
  %v1766 = vpow.pop %v1765
  %v1767 = vadd.f32 %v1766, 1.0
  %v1768 = vrcp.pop %v1767
  %v1769 = vmul.f32 1.0, %v1768
  %v1770 = vmul.f32 %v1759, %v1748
  %v1771 = vrot.slane %v1670, 4
  %v1773 = vadd.f32 %v1771, %v1770
  %v1774 = vtanh.pop %v1773
  %v1775 = vsub.f32 1.0, %v1769
  %v1776 = vmul.f32 %v1775, %v1774
  %v1777 = vmul.f32 %v1769, %v1552
  %v1778 = vadd.f32 %v1776, %v1777
  %s1779 = scalar_lea.vmem %s56, 4
  %1780 = vst [vmem:[%s1779] sm:$0x3] %v1778
  %s1781 = scalar_lea.vmem %s0, 18
  %v1782 = vld [vmem:[%s1781] sm:$0x7]
  %v1783 = vunpack.c.l.bf16 %v1782
  %v1784 = vpack.c.bf16 %v1665, %v1665
  %1785 = vmatprep.subr.bf16.mxu0 %v239
  %1786 = vmatpush1.bf16.msra.mxu0 %v238
  %1787 = vmatprep.subr.bf16.mxu0 %v242
  %1788 = vmatpush1.bf16.msra.mxu0 %v241
  %1789 = vmatprep.subr.bf16.mxu0 %v245
  %1790 = vmatpush1.bf16.msra.mxu0 %v244
  %1791 = vmatprep.subr.bf16.mxu0 %v248
  %1792 = vmatpush1.bf16.msra.mxu0 %v247
  %1793 = vmatprep.subr.bf16.mxu0 %v251
  %1794 = vmatpush1.bf16.msra.mxu0 %v250
  %1795 = vmatprep.subr.bf16.mxu0 %v254
  %1796 = vmatpush1.bf16.msra.mxu0 %v253
  %1797 = vmatprep.subr.bf16.mxu0 %v257
  %1798 = vmatpush1.bf16.msra.mxu0 %v256
  %1799 = vmatprep.subr.bf16.mxu0 %v260
  %1800 = vmatpush1.bf16.msra.mxu0 %v259
  %1801 = vmatprep.subr.bf16.mxu0 0
  %1802 = vmatpush1.bf16.msra.mxu0 0
  %1803 = vmatprep.subr.bf16.mxu0 0
  %1804 = vmatpush1.bf16.msra.mxu0 0
  %1805 = vmatprep.subr.bf16.mxu0 0
  %1806 = vmatpush1.bf16.msra.mxu0 0
  %1807 = vmatprep.subr.bf16.mxu0 0
  %1808 = vmatpush1.bf16.msra.mxu0 0
  %1809 = vmatprep.subr.bf16.mxu0 0
  %1810 = vmatpush1.bf16.msra.mxu0 0
  %1811 = vmatprep.subr.bf16.mxu0 0
  %1812 = vmatpush1.bf16.msra.mxu0 0
  %1813 = vmatprep.subr.bf16.mxu0 0
  %1814 = vmatpush1.bf16.msra.mxu0 0
  %1815 = vmatprep.subr.bf16.mxu0 0
  %1816 = vmatpush1.bf16.msra.mxu0 0
  %1817 = vmatprep.mubr.bf16.mxu0 0
  %1818 = vmatmul.mubr.bf16.gmra.mrb[0].mxu0 %v1784
  %v1819 = vpop.f32.mrb[0].mxu0
  %v1820 = vadd.f32 %v146, %v1819
  %v1821 = vpop.f32.mrb[0].mxu0
  %v1822 = vadd.f32 %v150, %v1821
  %v1823 = vpop.f32.mrb[0].mxu0
  %v1824 = vpop.f32.mrb[0].mxu0
  %1825 = vdwg.mxu0
  %1826 = vmatprep.subr.bf16.mxu0 0
  %1827 = vmatpush1.bf16.msra.mxu0 %v240
  %1828 = vmatprep.subr.bf16.mxu0 0
  %1829 = vmatpush1.bf16.msra.mxu0 %v243
  %1830 = vmatprep.subr.bf16.mxu0 0
  %1831 = vmatpush1.bf16.msra.mxu0 %v246
  %1832 = vmatprep.subr.bf16.mxu0 0
  %1833 = vmatpush1.bf16.msra.mxu0 %v249
  %1834 = vmatprep.subr.bf16.mxu0 0
  %1835 = vmatpush1.bf16.msra.mxu0 %v252
  %1836 = vmatprep.subr.bf16.mxu0 0
  %1837 = vmatpush1.bf16.msra.mxu0 %v255
  %1838 = vmatprep.subr.bf16.mxu0 0
  %1839 = vmatpush1.bf16.msra.mxu0 %v258
  %1840 = vmatprep.subr.bf16.mxu0 0
  %1841 = vmatpush1.bf16.msra.mxu0 %v261
  %1842 = vmatprep.subr.bf16.mxu0 0
  %1843 = vmatpush1.bf16.msra.mxu0 0
  %1844 = vmatprep.subr.bf16.mxu0 0
  %1845 = vmatpush1.bf16.msra.mxu0 0
  %1846 = vmatprep.subr.bf16.mxu0 0
  %1847 = vmatpush1.bf16.msra.mxu0 0
  %1848 = vmatprep.subr.bf16.mxu0 0
  %1849 = vmatpush1.bf16.msra.mxu0 0
  %1850 = vmatprep.subr.bf16.mxu0 0
  %1851 = vmatpush1.bf16.msra.mxu0 0
  %1852 = vmatprep.subr.bf16.mxu0 0
  %1853 = vmatpush1.bf16.msra.mxu0 0
  %1854 = vmatprep.subr.bf16.mxu0 0
  %1855 = vmatpush1.bf16.msra.mxu0 0
  %1856 = vmatprep.subr.bf16.mxu0 0
  %1857 = vmatpush1.bf16.msra.mxu0 0
  %1858 = vmatprep.mubr.bf16.mxu0 0
  %1859 = vmatmul.mubr.bf16.gmra.mrb[0].mxu0 %v1784
  %v1860 = vpop.f32.mrb[0].mxu0
  %v1861 = vadd.f32 %v154, %v1860
  %v1862 = vpop.f32.mrb[0].mxu0
  %v1863 = vpop.f32.mrb[0].mxu0
  %v1864 = vpop.f32.mrb[0].mxu0
  %1865 = vdwg.mxu0
  %v1866 = vadd.f32 %v1783, %v1820
  %v1867 = vxor.u32 %v1866, 2147483648
  %v1868 = vmul.f32 %v1867, 1.442695
  %v1869 = vpow.pop %v1868
  %v1870 = vadd.f32 %v1869, 1.0
  %v1871 = vrcp.pop %v1870
  %v1872 = vmul.f32 1.0, %v1871
  %v1874 = vrot.slane %v1783, 2
  %v1876 = vadd.f32 %v1874, %v1822
  %v1877 = vxor.u32 %v1876, 2147483648
  %v1878 = vmul.f32 %v1877, 1.442695
  %v1879 = vpow.pop %v1878
  %v1880 = vadd.f32 %v1879, 1.0
  %v1881 = vrcp.pop %v1880
  %v1882 = vmul.f32 1.0, %v1881
  %v1883 = vmul.f32 %v1872, %v1861
  %v1884 = vrot.slane %v1783, 4
  %v1886 = vadd.f32 %v1884, %v1883
  %v1887 = vtanh.pop %v1886
  %v1888 = vsub.f32 1.0, %v1882
  %v1889 = vmul.f32 %v1888, %v1887
  %v1890 = vmul.f32 %v1882, %v1665
  %v1891 = vadd.f32 %v1889, %v1890
  %s1892 = scalar_lea.vmem %s5, 12
  %1893 = vst [vmem:[%s1892] sm:$0x3] %v1891
  %s1894 = scalar_lea.vmem %s48, 3
  %v1895 = vld [vmem:[%s1894] sm:$0x7]
  %v1896 = vunpack.c.l.bf16 %v1895
  %v1897 = vpack.c.bf16 %v1778, %v1778
  %1898 = vmatprep.subr.bf16.mxu0 %v495
  %1899 = vmatpush1.bf16.msra.mxu0 %v494
  %1900 = vmatprep.subr.bf16.mxu0 %v498
  %1901 = vmatpush1.bf16.msra.mxu0 %v497
  %1902 = vmatprep.subr.bf16.mxu0 %v501
  %1903 = vmatpush1.bf16.msra.mxu0 %v500
  %1904 = vmatprep.subr.bf16.mxu0 %v504
  %1905 = vmatpush1.bf16.msra.mxu0 %v503
  %1906 = vmatprep.subr.bf16.mxu0 %v507
  %1907 = vmatpush1.bf16.msra.mxu0 %v506
  %1908 = vmatprep.subr.bf16.mxu0 %v510
  %1909 = vmatpush1.bf16.msra.mxu0 %v509
  %1910 = vmatprep.subr.bf16.mxu0 %v513
  %1911 = vmatpush1.bf16.msra.mxu0 %v512
  %1912 = vmatprep.subr.bf16.mxu0 %v516
  %1913 = vmatpush1.bf16.msra.mxu0 %v515
  %1914 = vmatprep.subr.bf16.mxu0 0
  %1915 = vmatpush1.bf16.msra.mxu0 0
  %1916 = vmatprep.subr.bf16.mxu0 0
  %1917 = vmatpush1.bf16.msra.mxu0 0
  %1918 = vmatprep.subr.bf16.mxu0 0
  %1919 = vmatpush1.bf16.msra.mxu0 0
  %1920 = vmatprep.subr.bf16.mxu0 0
  %1921 = vmatpush1.bf16.msra.mxu0 0
  %1922 = vmatprep.subr.bf16.mxu0 0
  %1923 = vmatpush1.bf16.msra.mxu0 0
  %1924 = vmatprep.subr.bf16.mxu0 0
  %1925 = vmatpush1.bf16.msra.mxu0 0
  %1926 = vmatprep.subr.bf16.mxu0 0
  %1927 = vmatpush1.bf16.msra.mxu0 0
  %1928 = vmatprep.subr.bf16.mxu0 0
  %1929 = vmatpush1.bf16.msra.mxu0 0
  %1930 = vmatprep.mubr.bf16.mxu0 0
  %1931 = vmatmul.mubr.bf16.gmra.mrb[0].mxu0 %v1897
  %v1932 = vpop.f32.mrb[0].mxu0
  %v1933 = vadd.f32 %v402, %v1932
  %v1934 = vpop.f32.mrb[0].mxu0
  %v1935 = vadd.f32 %v406, %v1934
  %v1936 = vpop.f32.mrb[0].mxu0
  %v1937 = vpop.f32.mrb[0].mxu0
  %1938 = vdwg.mxu0
  %1939 = vmatprep.subr.bf16.mxu0 0
  %1940 = vmatpush1.bf16.msra.mxu0 %v496
  %1941 = vmatprep.subr.bf16.mxu0 0
  %1942 = vmatpush1.bf16.msra.mxu0 %v499
  %1943 = vmatprep.subr.bf16.mxu0 0
  %1944 = vmatpush1.bf16.msra.mxu0 %v502
  %1945 = vmatprep.subr.bf16.mxu0 0
  %1946 = vmatpush1.bf16.msra.mxu0 %v505
  %1947 = vmatprep.subr.bf16.mxu0 0
  %1948 = vmatpush1.bf16.msra.mxu0 %v508
  %1949 = vmatprep.subr.bf16.mxu0 0
  %1950 = vmatpush1.bf16.msra.mxu0 %v511
  %1951 = vmatprep.subr.bf16.mxu0 0
  %1952 = vmatpush1.bf16.msra.mxu0 %v514
  %1953 = vmatprep.subr.bf16.mxu0 0
  %1954 = vmatpush1.bf16.msra.mxu0 %v517
  %1955 = vmatprep.subr.bf16.mxu0 0
  %1956 = vmatpush1.bf16.msra.mxu0 0
  %1957 = vmatprep.subr.bf16.mxu0 0
  %1958 = vmatpush1.bf16.msra.mxu0 0
  %1959 = vmatprep.subr.bf16.mxu0 0
  %1960 = vmatpush1.bf16.msra.mxu0 0
  %1961 = vmatprep.subr.bf16.mxu0 0
  %1962 = vmatpush1.bf16.msra.mxu0 0
  %1963 = vmatprep.subr.bf16.mxu0 0
  %1964 = vmatpush1.bf16.msra.mxu0 0
  %1965 = vmatprep.subr.bf16.mxu0 0
  %1966 = vmatpush1.bf16.msra.mxu0 0
  %1967 = vmatprep.subr.bf16.mxu0 0
  %1968 = vmatpush1.bf16.msra.mxu0 0
  %1969 = vmatprep.subr.bf16.mxu0 0
  %1970 = vmatpush1.bf16.msra.mxu0 0
  %1971 = vmatprep.mubr.bf16.mxu0 0
  %1972 = vmatmul.mubr.bf16.gmra.mrb[0].mxu0 %v1897
  %v1973 = vpop.f32.mrb[0].mxu0
  %v1974 = vadd.f32 %v410, %v1973
  %v1975 = vpop.f32.mrb[0].mxu0
  %v1976 = vpop.f32.mrb[0].mxu0
  %v1977 = vpop.f32.mrb[0].mxu0
  %1978 = vdwg.mxu0
  %v1979 = vadd.f32 %v1896, %v1933
  %v1980 = vxor.u32 %v1979, 2147483648
  %v1981 = vmul.f32 %v1980, 1.442695
  %v1982 = vpow.pop %v1981
  %v1983 = vadd.f32 %v1982, 1.0
  %v1984 = vrcp.pop %v1983
  %v1985 = vmul.f32 1.0, %v1984
  %v1987 = vrot.slane %v1896, 2
  %v1989 = vadd.f32 %v1987, %v1935
  %v1990 = vxor.u32 %v1989, 2147483648
  %v1991 = vmul.f32 %v1990, 1.442695
  %v1992 = vpow.pop %v1991
  %v1993 = vadd.f32 %v1992, 1.0
  %v1994 = vrcp.pop %v1993
  %v1995 = vmul.f32 1.0, %v1994
  %v1996 = vmul.f32 %v1985, %v1974
  %v1997 = vrot.slane %v1896, 4
  %v1999 = vadd.f32 %v1997, %v1996
  %v2000 = vtanh.pop %v1999
  %v2001 = vsub.f32 1.0, %v1995
  %v2002 = vmul.f32 %v2001, %v2000
  %v2003 = vmul.f32 %v1995, %v1778
  %v2004 = vadd.f32 %v2002, %v2003
  %s2005 = scalar_lea.vmem %s56, 2
  %2006 = vst [vmem:[%s2005] sm:$0x3] %v2004
  %s2007 = scalar_lea.vmem %s0, 21
  %v2008 = vld [vmem:[%s2007] sm:$0x7]
  %v2009 = vunpack.c.l.bf16 %v2008
  %v2010 = vpack.c.bf16 %v1891, %v1891
  %2011 = vmatprep.subr.bf16.mxu0 %v239
  %2012 = vmatpush1.bf16.msra.mxu0 %v238
  %2013 = vmatprep.subr.bf16.mxu0 %v242
  %2014 = vmatpush1.bf16.msra.mxu0 %v241
  %2015 = vmatprep.subr.bf16.mxu0 %v245
  %2016 = vmatpush1.bf16.msra.mxu0 %v244
  %2017 = vmatprep.subr.bf16.mxu0 %v248
  %2018 = vmatpush1.bf16.msra.mxu0 %v247
  %2019 = vmatprep.subr.bf16.mxu0 %v251
  %2020 = vmatpush1.bf16.msra.mxu0 %v250
  %2021 = vmatprep.subr.bf16.mxu0 %v254
  %2022 = vmatpush1.bf16.msra.mxu0 %v253
  %2023 = vmatprep.subr.bf16.mxu0 %v257
  %2024 = vmatpush1.bf16.msra.mxu0 %v256
  %2025 = vmatprep.subr.bf16.mxu0 %v260
  %2026 = vmatpush1.bf16.msra.mxu0 %v259
  %2027 = vmatprep.subr.bf16.mxu0 0
  %2028 = vmatpush1.bf16.msra.mxu0 0
  %2029 = vmatprep.subr.bf16.mxu0 0
  %2030 = vmatpush1.bf16.msra.mxu0 0
  %2031 = vmatprep.subr.bf16.mxu0 0
  %2032 = vmatpush1.bf16.msra.mxu0 0
  %2033 = vmatprep.subr.bf16.mxu0 0
  %2034 = vmatpush1.bf16.msra.mxu0 0
  %2035 = vmatprep.subr.bf16.mxu0 0
  %2036 = vmatpush1.bf16.msra.mxu0 0
  %2037 = vmatprep.subr.bf16.mxu0 0
  %2038 = vmatpush1.bf16.msra.mxu0 0
  %2039 = vmatprep.subr.bf16.mxu0 0
  %2040 = vmatpush1.bf16.msra.mxu0 0
  %2041 = vmatprep.subr.bf16.mxu0 0
  %2042 = vmatpush1.bf16.msra.mxu0 0
  %2043 = vmatprep.mubr.bf16.mxu0 0
  %2044 = vmatmul.mubr.bf16.gmra.mrb[0].mxu0 %v2010
  %v2045 = vpop.f32.mrb[0].mxu0
  %v2046 = vadd.f32 %v146, %v2045
  %v2047 = vpop.f32.mrb[0].mxu0
  %v2048 = vadd.f32 %v150, %v2047
  %v2049 = vpop.f32.mrb[0].mxu0
  %v2050 = vpop.f32.mrb[0].mxu0
  %2051 = vdwg.mxu0
  %2052 = vmatprep.subr.bf16.mxu0 0
  %2053 = vmatpush1.bf16.msra.mxu0 %v240
  %2054 = vmatprep.subr.bf16.mxu0 0
  %2055 = vmatpush1.bf16.msra.mxu0 %v243
  %2056 = vmatprep.subr.bf16.mxu0 0
  %2057 = vmatpush1.bf16.msra.mxu0 %v246
  %2058 = vmatprep.subr.bf16.mxu0 0
  %2059 = vmatpush1.bf16.msra.mxu0 %v249
  %2060 = vmatprep.subr.bf16.mxu0 0
  %2061 = vmatpush1.bf16.msra.mxu0 %v252
  %2062 = vmatprep.subr.bf16.mxu0 0
  %2063 = vmatpush1.bf16.msra.mxu0 %v255
  %2064 = vmatprep.subr.bf16.mxu0 0
  %2065 = vmatpush1.bf16.msra.mxu0 %v258
  %2066 = vmatprep.subr.bf16.mxu0 0
  %2067 = vmatpush1.bf16.msra.mxu0 %v261
  %2068 = vmatprep.subr.bf16.mxu0 0
  %2069 = vmatpush1.bf16.msra.mxu0 0
  %2070 = vmatprep.subr.bf16.mxu0 0
  %2071 = vmatpush1.bf16.msra.mxu0 0
  %2072 = vmatprep.subr.bf16.mxu0 0
  %2073 = vmatpush1.bf16.msra.mxu0 0
  %2074 = vmatprep.subr.bf16.mxu0 0
  %2075 = vmatpush1.bf16.msra.mxu0 0
  %2076 = vmatprep.subr.bf16.mxu0 0
  %2077 = vmatpush1.bf16.msra.mxu0 0
  %2078 = vmatprep.subr.bf16.mxu0 0
  %2079 = vmatpush1.bf16.msra.mxu0 0
  %2080 = vmatprep.subr.bf16.mxu0 0
  %2081 = vmatpush1.bf16.msra.mxu0 0
  %2082 = vmatprep.subr.bf16.mxu0 0
  %2083 = vmatpush1.bf16.msra.mxu0 0
  %2084 = vmatprep.mubr.bf16.mxu0 0
  %2085 = vmatmul.mubr.bf16.gmra.mrb[0].mxu0 %v2010
  %v2086 = vpop.f32.mrb[0].mxu0
  %v2087 = vadd.f32 %v154, %v2086
  %v2088 = vpop.f32.mrb[0].mxu0
  %v2089 = vpop.f32.mrb[0].mxu0
  %v2090 = vpop.f32.mrb[0].mxu0
  %2091 = vdwg.mxu0
  %v2092 = vadd.f32 %v2009, %v2046
  %v2093 = vxor.u32 %v2092, 2147483648
  %v2094 = vmul.f32 %v2093, 1.442695
  %v2095 = vpow.pop %v2094
  %v2096 = vadd.f32 %v2095, 1.0
  %v2097 = vrcp.pop %v2096
  %v2098 = vmul.f32 1.0, %v2097
  %v2100 = vrot.slane %v2009, 2
  %v2102 = vadd.f32 %v2100, %v2048
  %v2103 = vxor.u32 %v2102, 2147483648
  %v2104 = vmul.f32 %v2103, 1.442695
  %v2105 = vpow.pop %v2104
  %v2106 = vadd.f32 %v2105, 1.0
  %v2107 = vrcp.pop %v2106
  %v2108 = vmul.f32 1.0, %v2107
  %v2109 = vmul.f32 %v2098, %v2087
  %v2110 = vrot.slane %v2009, 4
  %v2112 = vadd.f32 %v2110, %v2109
  %v2113 = vtanh.pop %v2112
  %v2114 = vsub.f32 1.0, %v2108
  %v2115 = vmul.f32 %v2114, %v2113
  %v2116 = vmul.f32 %v2108, %v1891
  %v2117 = vadd.f32 %v2115, %v2116
  %s2118 = scalar_lea.vmem %s5, 14
  %2119 = vst [vmem:[%s2118] sm:$0x3] %v2117
  %v2120 = vld [vmem:[%s48] sm:$0x7]
  %v2121 = vunpack.c.l.bf16 %v2120
  %v2122 = vpack.c.bf16 %v2004, %v2004
  %2123 = vmatprep.subr.bf16.mxu0 %v495
  %2124 = vmatpush1.bf16.msra.mxu0 %v494
  %2125 = vmatprep.subr.bf16.mxu0 %v498
  %2126 = vmatpush1.bf16.msra.mxu0 %v497
  %2127 = vmatprep.subr.bf16.mxu0 %v501
  %2128 = vmatpush1.bf16.msra.mxu0 %v500
  %2129 = vmatprep.subr.bf16.mxu0 %v504
  %2130 = vmatpush1.bf16.msra.mxu0 %v503
  %2131 = vmatprep.subr.bf16.mxu0 %v507
  %2132 = vmatpush1.bf16.msra.mxu0 %v506
  %2133 = vmatprep.subr.bf16.mxu0 %v510
  %2134 = vmatpush1.bf16.msra.mxu0 %v509
  %2135 = vmatprep.subr.bf16.mxu0 %v513
  %2136 = vmatpush1.bf16.msra.mxu0 %v512
  %2137 = vmatprep.subr.bf16.mxu0 %v516
  %2138 = vmatpush1.bf16.msra.mxu0 %v515
  %2139 = vmatprep.subr.bf16.mxu0 0
  %2140 = vmatpush1.bf16.msra.mxu0 0
  %2141 = vmatprep.subr.bf16.mxu0 0
  %2142 = vmatpush1.bf16.msra.mxu0 0
  %2143 = vmatprep.subr.bf16.mxu0 0
  %2144 = vmatpush1.bf16.msra.mxu0 0
  %2145 = vmatprep.subr.bf16.mxu0 0
  %2146 = vmatpush1.bf16.msra.mxu0 0
  %2147 = vmatprep.subr.bf16.mxu0 0
  %2148 = vmatpush1.bf16.msra.mxu0 0
  %2149 = vmatprep.subr.bf16.mxu0 0
  %2150 = vmatpush1.bf16.msra.mxu0 0
  %2151 = vmatprep.subr.bf16.mxu0 0
  %2152 = vmatpush1.bf16.msra.mxu0 0
  %2153 = vmatprep.subr.bf16.mxu0 0
  %2154 = vmatpush1.bf16.msra.mxu0 0
  %2155 = vmatprep.mubr.bf16.mxu0 0
  %2156 = vmatmul.mubr.bf16.gmra.mrb[0].mxu0 %v2122
  %v2157 = vpop.f32.mrb[0].mxu0
  %v2158 = vadd.f32 %v402, %v2157
  %v2159 = vpop.f32.mrb[0].mxu0
  %v2160 = vadd.f32 %v406, %v2159
  %v2161 = vpop.f32.mrb[0].mxu0
  %v2162 = vpop.f32.mrb[0].mxu0
  %2163 = vdwg.mxu0
  %2164 = vmatprep.subr.bf16.mxu0 0
  %2165 = vmatpush1.bf16.msra.mxu0 %v496
  %2166 = vmatprep.subr.bf16.mxu0 0
  %2167 = vmatpush1.bf16.msra.mxu0 %v499
  %2168 = vmatprep.subr.bf16.mxu0 0
  %2169 = vmatpush1.bf16.msra.mxu0 %v502
  %2170 = vmatprep.subr.bf16.mxu0 0
  %2171 = vmatpush1.bf16.msra.mxu0 %v505
  %2172 = vmatprep.subr.bf16.mxu0 0
  %2173 = vmatpush1.bf16.msra.mxu0 %v508
  %2174 = vmatprep.subr.bf16.mxu0 0
  %2175 = vmatpush1.bf16.msra.mxu0 %v511
  %2176 = vmatprep.subr.bf16.mxu0 0
  %2177 = vmatpush1.bf16.msra.mxu0 %v514
  %2178 = vmatprep.subr.bf16.mxu0 0
  %2179 = vmatpush1.bf16.msra.mxu0 %v517
  %2180 = vmatprep.subr.bf16.mxu0 0
  %2181 = vmatpush1.bf16.msra.mxu0 0
  %2182 = vmatprep.subr.bf16.mxu0 0
  %2183 = vmatpush1.bf16.msra.mxu0 0
  %2184 = vmatprep.subr.bf16.mxu0 0
  %2185 = vmatpush1.bf16.msra.mxu0 0
  %2186 = vmatprep.subr.bf16.mxu0 0
  %2187 = vmatpush1.bf16.msra.mxu0 0
  %2188 = vmatprep.subr.bf16.mxu0 0
  %2189 = vmatpush1.bf16.msra.mxu0 0
  %2190 = vmatprep.subr.bf16.mxu0 0
  %2191 = vmatpush1.bf16.msra.mxu0 0
  %2192 = vmatprep.subr.bf16.mxu0 0
  %2193 = vmatpush1.bf16.msra.mxu0 0
  %2194 = vmatprep.subr.bf16.mxu0 0
  %2195 = vmatpush1.bf16.msra.mxu0 0
  %2196 = vmatprep.mubr.bf16.mxu0 0
  %2197 = vmatmul.mubr.bf16.gmra.mrb[0].mxu0 %v2122
  %v2198 = vpop.f32.mrb[0].mxu0
  %v2199 = vadd.f32 %v410, %v2198
  %v2200 = vpop.f32.mrb[0].mxu0
  %v2201 = vpop.f32.mrb[0].mxu0
  %v2202 = vpop.f32.mrb[0].mxu0
  %2203 = vdwg.mxu0
  %v2204 = vadd.f32 %v2121, %v2158
  %v2205 = vxor.u32 %v2204, 2147483648
  %v2206 = vmul.f32 %v2205, 1.442695
  %v2207 = vpow.pop %v2206
  %v2208 = vadd.f32 %v2207, 1.0
  %v2209 = vrcp.pop %v2208
  %v2210 = vmul.f32 1.0, %v2209
  %v2212 = vrot.slane %v2121, 2
  %v2214 = vadd.f32 %v2212, %v2160
  %v2215 = vxor.u32 %v2214, 2147483648
  %v2216 = vmul.f32 %v2215, 1.442695
  %v2217 = vpow.pop %v2216
  %v2218 = vadd.f32 %v2217, 1.0
  %v2219 = vrcp.pop %v2218
  %v2220 = vmul.f32 1.0, %v2219
  %v2221 = vmul.f32 %v2210, %v2199
  %v2222 = vrot.slane %v2121, 4
  %v2224 = vadd.f32 %v2222, %v2221
  %v2225 = vtanh.pop %v2224
  %v2226 = vsub.f32 1.0, %v2220
  %v2227 = vmul.f32 %v2226, %v2225
  %v2228 = vmul.f32 %v2220, %v2004
  %v2229 = vadd.f32 %v2227, %v2228
  %2230 = vst [vmem:[%s56] sm:$0x3] %v2229
  %2231 = vst [vmem:[#allocation2] sm:$0x3] %v2117
  %2232 = vst [vmem:[%s7] sm:$0x3] %v2117
  %2233 = vst [vmem:[#allocation3] sm:$0x3] %v2229
  %s2234 = scalar_lea.vmem %s7, 2
  %2235 = vst [vmem:[%s2234] sm:$0x3] %v2229
  %s2236 = ssub.s32 0, 0
  %s2237 = smul.u32 8, %s2236
  %p2238 = scmp.lt.s32.totalorder %s2237, 7
  %s2239 = scalar_select %p2238, %s2237, 7
  %s2240 = smul.addr %s2239, 2
  %s2241 = scalar_lea.vmem %s6, %s2240
  // Predicated region
  $region26: #{graph_encoder_forward.2} parent=0 // pred_check
    _
  $region27: #{graph_encoder_forward.2} parent=0 // pred_check_branch
    %2243 = sbr.rel (0) target = $region29
  $region28: #{graph_encoder_forward.2} parent=0 // pred_region
    _
  $region29: #{graph_encoder_forward.2} parent=0 // pred_fallthru
    _
  // Predicated region
  $region30: #{graph_encoder_forward.2} parent=0 // pred_check
    _
  $region31: #{graph_encoder_forward.2} parent=0 // pred_check_branch
    %2245 = sbr.rel (0) target = $region33
  $region32: #{graph_encoder_forward.2} parent=0 // pred_region
    %s2246 = ssub.s32 0, 0
    %s2247 = smul.u32 8, %s2246
  $region33: #{graph_encoder_forward.2} parent=0 // pred_fallthru
    _
  // Predicated region
  $region34: #{graph_encoder_forward.2} parent=0 // pred_check
    _
  $region35: #{graph_encoder_forward.2} parent=0 // pred_check_branch
    %2249 = sbr.rel (0) target = $region37
  $region36: #{graph_encoder_forward.2} parent=0 // pred_region
    _
  $region37: #{graph_encoder_forward.2} parent=0 // pred_fallthru
    _
  // Predicated region
  $region38: #{graph_encoder_forward.2} parent=0 // pred_check
    _
  $region39: #{graph_encoder_forward.2} parent=0 // pred_check_branch
    %2251 = sbr.rel (0) target = $region41
  $region40: #{graph_encoder_forward.2} parent=0 // pred_region
    _
  $region41: #{graph_encoder_forward.2} parent=0 // pred_fallthru
    _
  // Predicated region
  $region42: #{graph_encoder_forward.2} parent=0 // pred_check
    _
  $region43: #{graph_encoder_forward.2} parent=0 // pred_check_branch
    %2253 = sbr.rel (0) target = $region45
  $region44: #{graph_encoder_forward.2} parent=0 // pred_region
    %s2254 = ssub.s32 0, 0
    %s2255 = smul.u32 8, %s2254
    %p2256 = scmp.lt.s32.totalorder %s2255, 7
    %s2257 = scalar_select %p2256, %s2255, 7
    %s2258 = smul.addr %s2257, 2
    %s2259 = scalar_lea.vmem %s6, %s2258
  $region45: #{graph_encoder_forward.2} parent=0 // pred_fallthru
    _
  // Predicated region
  $region46: #{graph_encoder_forward.2} parent=0 // pred_check
    _
  $region47: #{graph_encoder_forward.2} parent=0 // pred_check_branch
    %2261 = sbr.rel (0) target = $region49
  $region48: #{graph_encoder_forward.2} parent=0 // pred_region
    _
  $region49: #{graph_encoder_forward.2} parent=0 // pred_fallthru
    _

</llo_original>
